<compile_context>
chip_gen: v7x
topology: tpu7x:2x2x1
jax: 0.10.0
libtpu: 0.0.40
codegen_flags: <defaults>
</compile_context>

<pallas_src>
import jax
import jax.numpy as jnp
from jax.experimental import pallas as pl
from jax.experimental.pallas import tpu as pltpu


def _round_up(x, m):
    return (x + m - 1) // m * m


def _prep_gates(w, h, hp):
    """(K, 4*h) in PyTorch gate order [i|f|g|o] -> (K, 4*hp) in kernel order [i|f|o|g],
    each gate block zero-padded along the lane axis to hp."""
    k = w.shape[0]
    w4 = w.reshape(k, 4, h)
    w4 = w4[:, jnp.array([0, 1, 3, 2]), :]            # i, f, o, g
    w4 = jnp.pad(w4, ((0, 0), (0, 0), (0, hp - h)))
    return w4.reshape(k, 4 * hp)


def _pad_rows(w, h, hp):
    return jnp.pad(w, ((0, hp - h), (0, 0)))


def _vmem_cap_bytes():
    """Per-core VMEM capacity; conservative fallback if the query is unavailable."""
    try:
        return int(pltpu.get_tpu_info().vmem_capacity_bytes)
    except Exception:
        return 64 << 20   # v7x per-TensorCore VMEM; safe lower bound on all generations


def lstm2_recurrence_kernel(x_ref, wih0_ref, b0_ref, whh0_ref, w1_ref, b1_ref, out_ref,
                            xg_sc, hcat_sc, c0_sc, c1_sc):
    """Serial 2-layer LSTM recurrence over one chunk of T timesteps.

    x_ref   : (T, Bp, I)    bf16  raw inputs for this chunk
    wih0_ref: (I, 4*Hp)     bf16  layer-0 input weights (gate order i|f|o|g)
    b0_ref  : (1, 4*Hp)     f32   layer-0 bias (b_ih + b_hh)
    whh0_ref: (Hp, 4*Hp)    bf16  layer-0 recurrent weights
    w1_ref  : (2*Hp, 4*Hp)  bf16  layer-1 fused [W_ih^1 ; W_hh^1]
    b1_ref  : (1, 4*Hp)     f32   layer-1 bias (b_ih + b_hh)
    out_ref : (T, Bp, Hp)         h1 for every timestep of this chunk (lane-dense slab)
    xg_sc   : (T, Bp, 4*Hp) f32   hoisted layer-0 input projection (VMEM only, no HBM trip)
    hcat_sc : (Bp, 2*Hp)    bf16  [h0 | h1] carried across steps/chunks, updated in place
    c0_sc/c1_sc: (Bp, Hp)   f32   cell states, carried across chunks
    """
    chunk = pl.program_id(0)
    T, Bp, I = x_ref.shape
    Hp = c0_sc.shape[-1]
    G = 4 * Hp

    # Zero initial hidden/cell state (PyTorch default) on the first chunk only.
    @pl.when(chunk == 0)
    def _():
        hcat_sc[...] = jnp.zeros_like(hcat_sc)
        c0_sc[...] = jnp.zeros_like(c0_sc)
        c1_sc[...] = jnp.zeros_like(c1_sc)

    # Hoisted layer-0 input projection: one large MXU-friendly matmul per chunk, result
    # kept in VMEM (never written back to HBM). Off the serial critical path.
    x_flat = x_ref[...].reshape(T * Bp, I)
    xg = jnp.dot(x_flat, wih0_ref[...], preferred_element_type=jnp.float32) + b0_ref[...]
    xg_sc[...] = xg.reshape(T, Bp, G)

    # Hoist weight loads and the bias broadcast out of the time loop.
    whh0 = whh0_ref[...]
    w1 = w1_ref[...]
    b1 = jnp.broadcast_to(b1_ref[...], (Bp, G))

    def gates_to_hc(gates, c):
        # Gate order [i | f | o | g]; sigmoids issue as ONE contiguous (Bp, 3*Hp) tanh
        # (sigmoid(x) == 0.5*tanh(0.5*x) + 0.5 -> single EUP transcendental).
        ifo = 0.5 * jnp.tanh(0.5 * gates[:, 0:3 * Hp]) + 0.5
        i = ifo[:, 0 * Hp:1 * Hp]
        f = ifo[:, 1 * Hp:2 * Hp]
        o = ifo[:, 2 * Hp:3 * Hp]
        g = jnp.tanh(gates[:, 3 * Hp:4 * Hp])
        c_new = f * c + i * g
        h_new = o * jnp.tanh(c_new)
        return h_new, c_new

    def step(t, carry):
        c0, c1 = carry
        # Layer 0: input projection already in VMEM; only h0 @ W_hh^0 is on the serial path.
        h0_prev = hcat_sc[:, :Hp]
        g0 = xg_sc[t] + jnp.dot(h0_prev, whh0, preferred_element_type=jnp.float32)
        h0n, c0n = gates_to_hc(g0, c0)
        hcat_sc[:, :Hp] = h0n.astype(hcat_sc.dtype)
        # Layer 1: single fused MXU dot [h0_new | h1_prev] @ [W_ih^1 ; W_hh^1] (no concat).
        g1 = jnp.dot(hcat_sc[...], w1, preferred_element_type=jnp.float32) + b1
        h1n, c1n = gates_to_hc(g1, c1)
        out_ref[t] = h1n.astype(out_ref.dtype)
        hcat_sc[:, Hp:] = h1n.astype(hcat_sc.dtype)
        return (c0n, c1n)

    unroll = T if T <= 16 else 4
    c0, c1 = jax.lax.fori_loop(0, T, step, (c0_sc[...], c1_sc[...]), unroll=unroll)

    # Persist cell state for the next time chunk (hcat_sc already holds h0/h1).
    c0_sc[...] = c0
    c1_sc[...] = c1


def lstm_classifier_forward(x, params, *, time_chunk=None, single_buffer_weights=False):
    """x: (S, B, I) float32.  Returns lstm_out: (S, B, H) float32."""
    S, B, I = x.shape
    H = params["whh0"].shape[0]
    Hp = _round_up(H, 128)    # lane-align the hidden dim -> aligned gate slices
    Bp = _round_up(B, 8)      # sublane-align the batch dim
    G = 4 * Hp
    bf, f32 = jnp.bfloat16, jnp.float32

    # ---- pad / reorder weights per gate block (zero padding is inert: padded h/c stay 0) --
    wih0 = _prep_gates(params["wih0"].astype(f32), H, Hp).astype(bf)                    # (I, G)
    b0 = _prep_gates(params["b0"].astype(f32), H, Hp)                                   # (1, G)
    whh0 = _prep_gates(_pad_rows(params["whh0"].astype(f32), H, Hp), H, Hp).astype(bf)  # (Hp, G)
    wih1 = _prep_gates(_pad_rows(params["wih1"].astype(f32), H, Hp), H, Hp)
    whh1 = _prep_gates(_pad_rows(params["whh1"].astype(f32), H, Hp), H, Hp)
    w1 = jnp.concatenate([wih1, whh1], axis=0).astype(bf)                               # (2Hp, G)
    b1 = _prep_gates(params["b1"].astype(f32), H, Hp)                                   # (1, G)

    # ---- VMEM budget & time chunking (amortize ~0.35us/grid-step; no T=1 degeneration) ----
    cap = (_vmem_cap_bytes() * 4) // 5         # leave Mosaic internal-scratch headroom
    per_t = Bp * G * 4 + 2 * Bp * I * 2 + 2 * Bp * Hp * 4   # xg scratch + dbuf x-in + dbuf out
    if time_chunk is None:
        budget = max(1 << 20, cap // 3)
        time_chunk = int(max(1, min(S, 128, budget // per_t)))
    T = int(time_chunk)
    S_pad = _round_up(S, T)
    num_chunks = S_pad // T

    # ---- pad seq/batch and cast x to bf16 (halves the dominant per-chunk input DMA) ----
    x_p = jnp.pad(x, ((0, S_pad - S), (0, Bp - B), (0, 0))).astype(bf)   # (S_pad, Bp, I)

    # ---- explicit VMEM limit from actual needs, capped below physical capacity ----
    weight_bytes = (I * G + Hp * G + 2 * Hp * G) * 2 + 2 * G * 4
    if not single_buffer_weights:
        weight_bytes *= 2                      # default double-buffered invariant weights
    io_bytes = 2 * (T * Bp * I * 2) + 2 * (T * Bp * Hp * 4)
    scratch_bytes = T * Bp * G * 4 + Bp * 2 * Hp * 2 + 2 * Bp * Hp * 4
    need = weight_bytes + io_bytes + scratch_bytes
    vmem_limit = int(min(cap, max(32 << 20, 2 * need)))

    def _wspec(shape):
        # Grid-invariant weights/biases. TODO(synk): default to pl.Buffered(1) on v7x at
        # large H — single-buffering halves resident weight VMEM at zero bandwidth cost.
        if single_buffer_weights:
            return pl.BlockSpec(shape, lambda c: (0,) * len(shape),
                                pipeline_mode=pl.Buffered(1))
        return pl.BlockSpec(shape, lambda c: (0,) * len(shape))

    grid_spec = pltpu.PrefetchScalarGridSpec(
        num_scalar_prefetch=0,
        grid=(num_chunks,),
        in_specs=[
            pl.BlockSpec((T, Bp, I), lambda c: (c, 0, 0)),   # raw x chunk (bf16)
            _wspec((I, G)),                                  # W_ih layer 0 (resident)
            _wspec((1, G)),                                  # b layer 0
            _wspec((Hp, G)),                                 # W_hh layer 0 (resident)
            _wspec((2 * Hp, G)),                             # fused layer-1 weights
            _wspec((1, G)),                                  # b layer 1
        ],
        out_specs=pl.BlockSpec((T, Bp, Hp), lambda c: (c, 0, 0)),
        scratch_shapes=[
            pltpu.VMEM((T, Bp, G), jnp.float32),             # hoisted layer-0 gates
            pltpu.VMEM((Bp, 2 * Hp), jnp.bfloat16),          # [h0 | h1] carry
            pltpu.VMEM((Bp, Hp), jnp.float32),               # c0
            pltpu.VMEM((Bp, Hp), jnp.float32),               # c1
        ],
    )

    out = pl.pallas_call(
        lstm2_recurrence_kernel,
        out_shape=jax.ShapeDtypeStruct((S_pad, Bp, Hp), x.dtype),
        grid_spec=grid_spec,
        compiler_params=pltpu.CompilerParams(
            dimension_semantics=("arbitrary",),   # recurrence is serial over time
            vmem_limit_bytes=vmem_limit,
        ),
    )(x_p, wih0, b0, whh0, w1, b1)

    return out[:S, :B, :H]


def init_params(key, inp_dim, hidden_dim):
    """Deterministic synthetic LSTM parameters.

    PyTorch stores weight_ih_l{k} as (4H, in_features); we store the transpose
    (in_features, 4H) so the kernel computes x @ W directly. Gate order i,f,g,o.
    The two biases (b_ih, b_hh) are pre-summed into a single (1, 4H) bias.
    """
    ks = jax.random.split(key, 8)
    H = hidden_dim
    scale = 1.0 / jnp.sqrt(H)
    u = lambda k, shape: jax.random.uniform(k, shape, jnp.float32, -scale, scale)
    return {
        "wih0": u(ks[0], (inp_dim, 4 * H)),
        "whh0": u(ks[1], (H, 4 * H)),
        "b0": (u(ks[2], (1, 4 * H)) + u(ks[3], (1, 4 * H))),
        "wih1": u(ks[4], (H, 4 * H)),
        "whh1": u(ks[5], (H, 4 * H)),
        "b1": (u(ks[6], (1, 4 * H)) + u(ks[7], (1, 4 * H))),
    }


def lstm_reference(x, params):
    """Pure-JAX lax.scan reference matching torch.nn.LSTM(num_layers=2) semantics,
    using the same bf16 weight / dot-input quantization as the kernel (f32 accumulate)."""
    S, B, I = x.shape
    H = params["whh0"].shape[0]
    bf, f32 = jnp.bfloat16, jnp.float32
    wih0 = params["wih0"].astype(bf)
    whh0 = params["whh0"].astype(bf)
    wih1 = params["wih1"].astype(bf)
    whh1 = params["whh1"].astype(bf)
    b0 = params["b0"].astype(f32)
    b1 = params["b1"].astype(f32)

    def gates_to_hc(gates, c):
        i = jax.nn.sigmoid(gates[:, 0 * H:1 * H])
        f = jax.nn.sigmoid(gates[:, 1 * H:2 * H])
        g = jnp.tanh(gates[:, 2 * H:3 * H])
        o = jax.nn.sigmoid(gates[:, 3 * H:4 * H])
        c_new = f * c + i * g
        return o * jnp.tanh(c_new), c_new

    def step(carry, x_t):
        h0, c0, h1, c1 = carry
        g0 = (jnp.dot(x_t.astype(bf), wih0, preferred_element_type=f32)
              + jnp.dot(h0.astype(bf), whh0, preferred_element_type=f32) + b0)
        h0, c0 = gates_to_hc(g0, c0)
        g1 = (jnp.dot(h0.astype(bf), wih1, preferred_element_type=f32)
              + jnp.dot(h1.astype(bf), whh1, preferred_element_type=f32) + b1)
        h1, c1 = gates_to_hc(g1, c1)
        return (h0, c0, h1, c1), h1

    zeros = jnp.zeros((B, H), f32)
    _, ys = jax.lax.scan(step, (zeros, zeros, zeros, zeros), x)
    return ys


if __name__ == "__main__":
    SEQ, BATCH, INP_DIM, HIDDEN = 8, 2, 16, 32

    key = jax.random.PRNGKey(0)
    k_x, k_p = jax.random.split(key)
    x = jax.random.normal(k_x, (SEQ, BATCH, INP_DIM), jnp.float32)
    params = init_params(k_p, INP_DIM, HIDDEN)

    forward = jax.jit(lstm_classifier_forward)
    out = jax.block_until_ready(forward(x, params))

    ref = jax.block_until_ready(lstm_reference(x, params))
    assert out.shape == (SEQ, BATCH, HIDDEN)
    err = float(jnp.abs(out - ref).max())
    assert jnp.allclose(out, ref, atol=2e-3, rtol=2e-3), err

    print("KERNEL_OK")
</pallas_src>

<mosaic_0001>
module attributes {stable_mosaic.version = 11 : i64} {
  func.func @lstm2_recurrence_kernel(%arg0: i32, %arg1: memref<8x8x16xbf16, #tpu.memory_space<vmem>>, %arg2: memref<16x512xbf16, #tpu.memory_space<vmem>>, %arg3: memref<1x512xf32, #tpu.memory_space<vmem>>, %arg4: memref<128x512xbf16, #tpu.memory_space<vmem>>, %arg5: memref<256x512xbf16, #tpu.memory_space<vmem>>, %arg6: memref<1x512xf32, #tpu.memory_space<vmem>>, %arg7: memref<8x8x128xf32, #tpu.memory_space<vmem>>, %arg8: memref<8x8x512xf32, #tpu.memory_space<vmem>>, %arg9: memref<8x256xbf16, #tpu.memory_space<vmem>>, %arg10: memref<8x128xf32, #tpu.memory_space<vmem>>, %arg11: memref<8x128xf32, #tpu.memory_space<vmem>>) attributes {dimension_semantics = [#tpu.dimension_semantics<arbitrary>], iteration_bounds = array<i64: 1>, scalar_prefetch = 0 : i64, scratch_operands = 4 : i64, tpu.core_type = #tpu.core_type<tc>, window_params = [{transform_indices = @transform_0, window_bounds = array<i64: 8, 8, 16>}, {pipeline_mode = #tpu.pipeline_mode<synchronous>, transform_indices = @transform_1, window_bounds = array<i64: 16, 512>}, {pipeline_mode = #tpu.pipeline_mode<synchronous>, transform_indices = @transform_2, window_bounds = array<i64: 1, 512>}, {pipeline_mode = #tpu.pipeline_mode<synchronous>, transform_indices = @transform_3, window_bounds = array<i64: 128, 512>}, {pipeline_mode = #tpu.pipeline_mode<synchronous>, transform_indices = @transform_4, window_bounds = array<i64: 256, 512>}, {pipeline_mode = #tpu.pipeline_mode<synchronous>, transform_indices = @transform_5, window_bounds = array<i64: 1, 512>}, {transform_indices = @transform_6, window_bounds = array<i64: 8, 8, 128>}]} {
    %c0_i32 = arith.constant 0 : i32
    %0 = arith.cmpi eq, %arg0, %c0_i32 : i32
    %1 = arith.extui %0 : i1 to i32
    %c0_i32_0 = arith.constant 0 : i32
    %2 = arith.cmpi ne, %1, %c0_i32_0 : i32
    scf.if %2 {
      %cst_184 = arith.constant 0.000000e+00 : bf16
      %445 = vector.broadcast %cst_184 : bf16 to vector<8x256xbf16>
      %c0_185 = arith.constant 0 : index
      %c0_186 = arith.constant 0 : index
      %446 = vector.load %arg9[%c0_185, %c0_186] : memref<8x256xbf16, #tpu.memory_space<vmem>>, vector<8x256xbf16>
      tpu.vector_store %arg9[%c0_185, %c0_186], %445 {strides = array<i32>} : memref<8x256xbf16, #tpu.memory_space<vmem>>, vector<8x256xbf16>,
      %cst_187 = arith.constant 0.000000e+00 : f32
      %447 = vector.broadcast %cst_187 : f32 to vector<8x128xf32>
      %c0_188 = arith.constant 0 : index
      %c0_189 = arith.constant 0 : index
      %448 = vector.load %arg10[%c0_188, %c0_189] : memref<8x128xf32, #tpu.memory_space<vmem>>, vector<8x128xf32>
      tpu.vector_store %arg10[%c0_188, %c0_189], %447 {strides = array<i32>} : memref<8x128xf32, #tpu.memory_space<vmem>>, vector<8x128xf32>,
      %cst_190 = arith.constant 0.000000e+00 : f32
      %449 = vector.broadcast %cst_190 : f32 to vector<8x128xf32>
      %c0_191 = arith.constant 0 : index
      %c0_192 = arith.constant 0 : index
      %450 = vector.load %arg11[%c0_191, %c0_192] : memref<8x128xf32, #tpu.memory_space<vmem>>, vector<8x128xf32>
      tpu.vector_store %arg11[%c0_191, %c0_192], %449 {strides = array<i32>} : memref<8x128xf32, #tpu.memory_space<vmem>>, vector<8x128xf32>,
    } else {
    }
    %c0 = arith.constant 0 : index
    %c0_1 = arith.constant 0 : index
    %c0_2 = arith.constant 0 : index
    %3 = vector.load %arg1[%c0, %c0_1, %c0_2] : memref<8x8x16xbf16, #tpu.memory_space<vmem>>, vector<8x8x16xbf16>
    %4 = vector.shape_cast %3 : vector<8x8x16xbf16> to vector<64x16xbf16>
    %c0_3 = arith.constant 0 : index
    %c0_4 = arith.constant 0 : index
    %5 = vector.load %arg2[%c0_3, %c0_4] : memref<16x512xbf16, #tpu.memory_space<vmem>>, vector<16x512xbf16>
    %cst = arith.constant dense<0.000000e+00> : vector<64x512xf32>
    %6 = tpu.matmul %4, %5, %cst {dimension_numbers = #tpu.dot_dimension_numbers<[1], [0], [0], [1], [0, 0, 1, 1], [], []>} : vector<64x16xbf16>, vector<16x512xbf16>, vector<64x512xf32> -> vector<64x512xf32>
    %c0_5 = arith.constant 0 : index
    %c0_6 = arith.constant 0 : index
    %7 = vector.load %arg3[%c0_5, %c0_6] : memref<1x512xf32, #tpu.memory_space<vmem>>, vector<1x512xf32>
    %8 = vector.broadcast %7 : vector<1x512xf32> to vector<64x512xf32>
    %9 = arith.addf %6, %8 : vector<64x512xf32>
    %10 = vector.shape_cast %9 : vector<64x512xf32> to vector<8x8x512xf32>
    %c0_7 = arith.constant 0 : index
    %c0_8 = arith.constant 0 : index
    %c0_9 = arith.constant 0 : index
    %11 = vector.load %arg8[%c0_7, %c0_8, %c0_9] : memref<8x8x512xf32, #tpu.memory_space<vmem>>, vector<8x8x512xf32>
    tpu.vector_store %arg8[%c0_7, %c0_8, %c0_9], %10 {strides = array<i32>} : memref<8x8x512xf32, #tpu.memory_space<vmem>>, vector<8x8x512xf32>,
    %c0_10 = arith.constant 0 : index
    %c0_11 = arith.constant 0 : index
    %12 = vector.load %arg4[%c0_10, %c0_11] : memref<128x512xbf16, #tpu.memory_space<vmem>>, vector<128x512xbf16>
    %c0_12 = arith.constant 0 : index
    %c0_13 = arith.constant 0 : index
    %13 = vector.load %arg5[%c0_12, %c0_13] : memref<256x512xbf16, #tpu.memory_space<vmem>>, vector<256x512xbf16>
    %c0_14 = arith.constant 0 : index
    %c0_15 = arith.constant 0 : index
    %14 = vector.load %arg6[%c0_14, %c0_15] : memref<1x512xf32, #tpu.memory_space<vmem>>, vector<1x512xf32>
    %15 = vector.shape_cast %14 : vector<1x512xf32> to vector<1x512xf32>
    %16 = vector.broadcast %15 : vector<1x512xf32> to vector<8x512xf32>
    %c0_16 = arith.constant 0 : index
    %c0_17 = arith.constant 0 : index
    %17 = vector.load %arg10[%c0_16, %c0_17] : memref<8x128xf32, #tpu.memory_space<vmem>>, vector<8x128xf32>
    %c0_18 = arith.constant 0 : index
    %c0_19 = arith.constant 0 : index
    %18 = vector.load %arg11[%c0_18, %c0_19] : memref<8x128xf32, #tpu.memory_space<vmem>>, vector<8x128xf32>
    %c0_i32_20 = arith.constant 0 : i32
    %c0_21 = arith.constant 0 : index
    %c0_22 = arith.constant 0 : index
    %19 = vector.load %arg9[%c0_21, %c0_22] : memref<8x256xbf16, #tpu.memory_space<vmem>>, vector<8x128xbf16>
    %20 = arith.index_cast %c0_i32_20 : i32 to index
    %c0_23 = arith.constant 0 : index
    %c0_24 = arith.constant 0 : index
    %21 = vector.load %arg8[%20, %c0_23, %c0_24] : memref<8x8x512xf32, #tpu.memory_space<vmem>>, vector<1x8x512xf32>
    %22 = vector.shape_cast %21 : vector<1x8x512xf32> to vector<8x512xf32>
    %cst_25 = arith.constant dense<0.000000e+00> : vector<8x512xf32>
    %23 = tpu.matmul %19, %12, %cst_25 {dimension_numbers = #tpu.dot_dimension_numbers<[1], [0], [0], [1], [0, 0, 1, 1], [], []>} : vector<8x128xbf16>, vector<128x512xbf16>, vector<8x512xf32> -> vector<8x512xf32>
    %24 = arith.addf %22, %23 : vector<8x512xf32>
    %25 = vector.extract_strided_slice %24 {offsets = [0, 0], sizes = [8, 384], strides = [1, 1]} : vector<8x512xf32> to vector<8x384xf32>
    %cst_26 = arith.constant 5.000000e-01 : f32
    %26 = vector.broadcast %cst_26 : f32 to vector<8x384xf32>
    %27 = arith.mulf %26, %25 : vector<8x384xf32>
    %28 = math.tanh %27 : vector<8x384xf32>
    %cst_27 = arith.constant 5.000000e-01 : f32
    %29 = vector.broadcast %cst_27 : f32 to vector<8x384xf32>
    %30 = arith.mulf %29, %28 : vector<8x384xf32>
    %cst_28 = arith.constant 5.000000e-01 : f32
    %31 = vector.broadcast %cst_28 : f32 to vector<8x384xf32>
    %32 = arith.addf %30, %31 : vector<8x384xf32>
    %33 = vector.extract_strided_slice %32 {offsets = [0, 0], sizes = [8, 128], strides = [1, 1]} : vector<8x384xf32> to vector<8x128xf32>
    %34 = vector.extract_strided_slice %32 {offsets = [0, 128], sizes = [8, 128], strides = [1, 1]} : vector<8x384xf32> to vector<8x128xf32>
    %35 = vector.extract_strided_slice %32 {offsets = [0, 256], sizes = [8, 128], strides = [1, 1]} : vector<8x384xf32> to vector<8x128xf32>
    %36 = vector.extract_strided_slice %24 {offsets = [0, 384], sizes = [8, 128], strides = [1, 1]} : vector<8x512xf32> to vector<8x128xf32>
    %37 = math.tanh %36 : vector<8x128xf32>
    %38 = arith.mulf %34, %17 : vector<8x128xf32>
    %39 = arith.mulf %33, %37 : vector<8x128xf32>
    %40 = arith.addf %38, %39 : vector<8x128xf32>
    %41 = math.tanh %40 : vector<8x128xf32>
    %42 = arith.mulf %35, %41 : vector<8x128xf32>
    %43 = arith.truncf %42 : vector<8x128xf32> to vector<8x128xbf16>
    %c0_29 = arith.constant 0 : index
    %c0_30 = arith.constant 0 : index
    %44 = vector.load %arg9[%c0_29, %c0_30] : memref<8x256xbf16, #tpu.memory_space<vmem>>, vector<8x128xbf16>
    tpu.vector_store %arg9[%c0_29, %c0_30], %43 {strides = array<i32>} : memref<8x256xbf16, #tpu.memory_space<vmem>>, vector<8x128xbf16>,
    %c0_31 = arith.constant 0 : index
    %c0_32 = arith.constant 0 : index
    %45 = vector.load %arg9[%c0_31, %c0_32] : memref<8x256xbf16, #tpu.memory_space<vmem>>, vector<8x256xbf16>
    %cst_33 = arith.constant dense<0.000000e+00> : vector<8x512xf32>
    %46 = tpu.matmul %45, %13, %cst_33 {dimension_numbers = #tpu.dot_dimension_numbers<[1], [0], [0], [1], [0, 0, 1, 1], [], []>} : vector<8x256xbf16>, vector<256x512xbf16>, vector<8x512xf32> -> vector<8x512xf32>
    %47 = arith.addf %46, %16 : vector<8x512xf32>
    %48 = vector.extract_strided_slice %47 {offsets = [0, 0], sizes = [8, 384], strides = [1, 1]} : vector<8x512xf32> to vector<8x384xf32>
    %cst_34 = arith.constant 5.000000e-01 : f32
    %49 = vector.broadcast %cst_34 : f32 to vector<8x384xf32>
    %50 = arith.mulf %49, %48 : vector<8x384xf32>
    %51 = math.tanh %50 : vector<8x384xf32>
    %cst_35 = arith.constant 5.000000e-01 : f32
    %52 = vector.broadcast %cst_35 : f32 to vector<8x384xf32>
    %53 = arith.mulf %52, %51 : vector<8x384xf32>
    %cst_36 = arith.constant 5.000000e-01 : f32
    %54 = vector.broadcast %cst_36 : f32 to vector<8x384xf32>
    %55 = arith.addf %53, %54 : vector<8x384xf32>
    %56 = vector.extract_strided_slice %55 {offsets = [0, 0], sizes = [8, 128], strides = [1, 1]} : vector<8x384xf32> to vector<8x128xf32>
    %57 = vector.extract_strided_slice %55 {offsets = [0, 128], sizes = [8, 128], strides = [1, 1]} : vector<8x384xf32> to vector<8x128xf32>
    %58 = vector.extract_strided_slice %55 {offsets = [0, 256], sizes = [8, 128], strides = [1, 1]} : vector<8x384xf32> to vector<8x128xf32>
    %59 = vector.extract_strided_slice %47 {offsets = [0, 384], sizes = [8, 128], strides = [1, 1]} : vector<8x512xf32> to vector<8x128xf32>
    %60 = math.tanh %59 : vector<8x128xf32>
    %61 = arith.mulf %57, %18 : vector<8x128xf32>
    %62 = arith.mulf %56, %60 : vector<8x128xf32>
    %63 = arith.addf %61, %62 : vector<8x128xf32>
    %64 = math.tanh %63 : vector<8x128xf32>
    %65 = arith.mulf %58, %64 : vector<8x128xf32>
    %66 = arith.index_cast %c0_i32_20 : i32 to index
    %c0_37 = arith.constant 0 : index
    %c0_38 = arith.constant 0 : index
    %67 = vector.load %arg7[%66, %c0_37, %c0_38] : memref<8x8x128xf32, #tpu.memory_space<vmem>>, vector<1x8x128xf32>
    %68 = vector.shape_cast %67 : vector<1x8x128xf32> to vector<8x128xf32>
    %69 = vector.shape_cast %65 : vector<8x128xf32> to vector<1x8x128xf32>
    tpu.vector_store %arg7[%66, %c0_37, %c0_38], %69 {strides = array<i32>} : memref<8x8x128xf32, #tpu.memory_space<vmem>>, vector<1x8x128xf32>,
    %70 = arith.truncf %65 : vector<8x128xf32> to vector<8x128xbf16>
    %c0_39 = arith.constant 0 : index
    %c128 = arith.constant 128 : index
    %71 = vector.load %arg9[%c0_39, %c128] : memref<8x256xbf16, #tpu.memory_space<vmem>>, vector<8x128xbf16>
    tpu.vector_store %arg9[%c0_39, %c128], %70 {strides = array<i32>} : memref<8x256xbf16, #tpu.memory_space<vmem>>, vector<8x128xbf16>,
    %c1_i32 = arith.constant 1 : i32
    %c0_40 = arith.constant 0 : index
    %c0_41 = arith.constant 0 : index
    %72 = vector.load %arg9[%c0_40, %c0_41] : memref<8x256xbf16, #tpu.memory_space<vmem>>, vector<8x128xbf16>
    %73 = arith.index_cast %c1_i32 : i32 to index
    %c0_42 = arith.constant 0 : index
    %c0_43 = arith.constant 0 : index
    %74 = vector.load %arg8[%73, %c0_42, %c0_43] : memref<8x8x512xf32, #tpu.memory_space<vmem>>, vector<1x8x512xf32>
    %75 = vector.shape_cast %74 : vector<1x8x512xf32> to vector<8x512xf32>
    %cst_44 = arith.constant dense<0.000000e+00> : vector<8x512xf32>
    %76 = tpu.matmul %72, %12, %cst_44 {dimension_numbers = #tpu.dot_dimension_numbers<[1], [0], [0], [1], [0, 0, 1, 1], [], []>} : vector<8x128xbf16>, vector<128x512xbf16>, vector<8x512xf32> -> vector<8x512xf32>
    %77 = arith.addf %75, %76 : vector<8x512xf32>
    %78 = vector.extract_strided_slice %77 {offsets = [0, 0], sizes = [8, 384], strides = [1, 1]} : vector<8x512xf32> to vector<8x384xf32>
    %cst_45 = arith.constant 5.000000e-01 : f32
    %79 = vector.broadcast %cst_45 : f32 to vector<8x384xf32>
    %80 = arith.mulf %79, %78 : vector<8x384xf32>
    %81 = math.tanh %80 : vector<8x384xf32>
    %cst_46 = arith.constant 5.000000e-01 : f32
    %82 = vector.broadcast %cst_46 : f32 to vector<8x384xf32>
    %83 = arith.mulf %82, %81 : vector<8x384xf32>
    %cst_47 = arith.constant 5.000000e-01 : f32
    %84 = vector.broadcast %cst_47 : f32 to vector<8x384xf32>
    %85 = arith.addf %83, %84 : vector<8x384xf32>
    %86 = vector.extract_strided_slice %85 {offsets = [0, 0], sizes = [8, 128], strides = [1, 1]} : vector<8x384xf32> to vector<8x128xf32>
    %87 = vector.extract_strided_slice %85 {offsets = [0, 128], sizes = [8, 128], strides = [1, 1]} : vector<8x384xf32> to vector<8x128xf32>
    %88 = vector.extract_strided_slice %85 {offsets = [0, 256], sizes = [8, 128], strides = [1, 1]} : vector<8x384xf32> to vector<8x128xf32>
    %89 = vector.extract_strided_slice %77 {offsets = [0, 384], sizes = [8, 128], strides = [1, 1]} : vector<8x512xf32> to vector<8x128xf32>
    %90 = math.tanh %89 : vector<8x128xf32>
    %91 = arith.mulf %87, %40 : vector<8x128xf32>
    %92 = arith.mulf %86, %90 : vector<8x128xf32>
    %93 = arith.addf %91, %92 : vector<8x128xf32>
    %94 = math.tanh %93 : vector<8x128xf32>
    %95 = arith.mulf %88, %94 : vector<8x128xf32>
    %96 = arith.truncf %95 : vector<8x128xf32> to vector<8x128xbf16>
    %c0_48 = arith.constant 0 : index
    %c0_49 = arith.constant 0 : index
    %97 = vector.load %arg9[%c0_48, %c0_49] : memref<8x256xbf16, #tpu.memory_space<vmem>>, vector<8x128xbf16>
    tpu.vector_store %arg9[%c0_48, %c0_49], %96 {strides = array<i32>} : memref<8x256xbf16, #tpu.memory_space<vmem>>, vector<8x128xbf16>,
    %c0_50 = arith.constant 0 : index
    %c0_51 = arith.constant 0 : index
    %98 = vector.load %arg9[%c0_50, %c0_51] : memref<8x256xbf16, #tpu.memory_space<vmem>>, vector<8x256xbf16>
    %cst_52 = arith.constant dense<0.000000e+00> : vector<8x512xf32>
    %99 = tpu.matmul %98, %13, %cst_52 {dimension_numbers = #tpu.dot_dimension_numbers<[1], [0], [0], [1], [0, 0, 1, 1], [], []>} : vector<8x256xbf16>, vector<256x512xbf16>, vector<8x512xf32> -> vector<8x512xf32>
    %100 = arith.addf %99, %16 : vector<8x512xf32>
    %101 = vector.extract_strided_slice %100 {offsets = [0, 0], sizes = [8, 384], strides = [1, 1]} : vector<8x512xf32> to vector<8x384xf32>
    %cst_53 = arith.constant 5.000000e-01 : f32
    %102 = vector.broadcast %cst_53 : f32 to vector<8x384xf32>
    %103 = arith.mulf %102, %101 : vector<8x384xf32>
    %104 = math.tanh %103 : vector<8x384xf32>
    %cst_54 = arith.constant 5.000000e-01 : f32
    %105 = vector.broadcast %cst_54 : f32 to vector<8x384xf32>
    %106 = arith.mulf %105, %104 : vector<8x384xf32>
    %cst_55 = arith.constant 5.000000e-01 : f32
    %107 = vector.broadcast %cst_55 : f32 to vector<8x384xf32>
    %108 = arith.addf %106, %107 : vector<8x384xf32>
    %109 = vector.extract_strided_slice %108 {offsets = [0, 0], sizes = [8, 128], strides = [1, 1]} : vector<8x384xf32> to vector<8x128xf32>
    %110 = vector.extract_strided_slice %108 {offsets = [0, 128], sizes = [8, 128], strides = [1, 1]} : vector<8x384xf32> to vector<8x128xf32>
    %111 = vector.extract_strided_slice %108 {offsets = [0, 256], sizes = [8, 128], strides = [1, 1]} : vector<8x384xf32> to vector<8x128xf32>
    %112 = vector.extract_strided_slice %100 {offsets = [0, 384], sizes = [8, 128], strides = [1, 1]} : vector<8x512xf32> to vector<8x128xf32>
    %113 = math.tanh %112 : vector<8x128xf32>
    %114 = arith.mulf %110, %63 : vector<8x128xf32>
    %115 = arith.mulf %109, %113 : vector<8x128xf32>
    %116 = arith.addf %114, %115 : vector<8x128xf32>
    %117 = math.tanh %116 : vector<8x128xf32>
    %118 = arith.mulf %111, %117 : vector<8x128xf32>
    %119 = arith.index_cast %c1_i32 : i32 to index
    %c0_56 = arith.constant 0 : index
    %c0_57 = arith.constant 0 : index
    %120 = vector.load %arg7[%119, %c0_56, %c0_57] : memref<8x8x128xf32, #tpu.memory_space<vmem>>, vector<1x8x128xf32>
    %121 = vector.shape_cast %120 : vector<1x8x128xf32> to vector<8x128xf32>
    %122 = vector.shape_cast %118 : vector<8x128xf32> to vector<1x8x128xf32>
    tpu.vector_store %arg7[%119, %c0_56, %c0_57], %122 {strides = array<i32>} : memref<8x8x128xf32, #tpu.memory_space<vmem>>, vector<1x8x128xf32>,
    %123 = arith.truncf %118 : vector<8x128xf32> to vector<8x128xbf16>
    %c0_58 = arith.constant 0 : index
    %c128_59 = arith.constant 128 : index
    %124 = vector.load %arg9[%c0_58, %c128_59] : memref<8x256xbf16, #tpu.memory_space<vmem>>, vector<8x128xbf16>
    tpu.vector_store %arg9[%c0_58, %c128_59], %123 {strides = array<i32>} : memref<8x256xbf16, #tpu.memory_space<vmem>>, vector<8x128xbf16>,
    %c2_i32 = arith.constant 2 : i32
    %c0_60 = arith.constant 0 : index
    %c0_61 = arith.constant 0 : index
    %125 = vector.load %arg9[%c0_60, %c0_61] : memref<8x256xbf16, #tpu.memory_space<vmem>>, vector<8x128xbf16>
    %126 = arith.index_cast %c2_i32 : i32 to index
    %c0_62 = arith.constant 0 : index
    %c0_63 = arith.constant 0 : index
    %127 = vector.load %arg8[%126, %c0_62, %c0_63] : memref<8x8x512xf32, #tpu.memory_space<vmem>>, vector<1x8x512xf32>
    %128 = vector.shape_cast %127 : vector<1x8x512xf32> to vector<8x512xf32>
    %cst_64 = arith.constant dense<0.000000e+00> : vector<8x512xf32>
    %129 = tpu.matmul %125, %12, %cst_64 {dimension_numbers = #tpu.dot_dimension_numbers<[1], [0], [0], [1], [0, 0, 1, 1], [], []>} : vector<8x128xbf16>, vector<128x512xbf16>, vector<8x512xf32> -> vector<8x512xf32>
    %130 = arith.addf %128, %129 : vector<8x512xf32>
    %131 = vector.extract_strided_slice %130 {offsets = [0, 0], sizes = [8, 384], strides = [1, 1]} : vector<8x512xf32> to vector<8x384xf32>
    %cst_65 = arith.constant 5.000000e-01 : f32
    %132 = vector.broadcast %cst_65 : f32 to vector<8x384xf32>
    %133 = arith.mulf %132, %131 : vector<8x384xf32>
    %134 = math.tanh %133 : vector<8x384xf32>
    %cst_66 = arith.constant 5.000000e-01 : f32
    %135 = vector.broadcast %cst_66 : f32 to vector<8x384xf32>
    %136 = arith.mulf %135, %134 : vector<8x384xf32>
    %cst_67 = arith.constant 5.000000e-01 : f32
    %137 = vector.broadcast %cst_67 : f32 to vector<8x384xf32>
    %138 = arith.addf %136, %137 : vector<8x384xf32>
    %139 = vector.extract_strided_slice %138 {offsets = [0, 0], sizes = [8, 128], strides = [1, 1]} : vector<8x384xf32> to vector<8x128xf32>
    %140 = vector.extract_strided_slice %138 {offsets = [0, 128], sizes = [8, 128], strides = [1, 1]} : vector<8x384xf32> to vector<8x128xf32>
    %141 = vector.extract_strided_slice %138 {offsets = [0, 256], sizes = [8, 128], strides = [1, 1]} : vector<8x384xf32> to vector<8x128xf32>
    %142 = vector.extract_strided_slice %130 {offsets = [0, 384], sizes = [8, 128], strides = [1, 1]} : vector<8x512xf32> to vector<8x128xf32>
    %143 = math.tanh %142 : vector<8x128xf32>
    %144 = arith.mulf %140, %93 : vector<8x128xf32>
    %145 = arith.mulf %139, %143 : vector<8x128xf32>
    %146 = arith.addf %144, %145 : vector<8x128xf32>
    %147 = math.tanh %146 : vector<8x128xf32>
    %148 = arith.mulf %141, %147 : vector<8x128xf32>
    %149 = arith.truncf %148 : vector<8x128xf32> to vector<8x128xbf16>
    %c0_68 = arith.constant 0 : index
    %c0_69 = arith.constant 0 : index
    %150 = vector.load %arg9[%c0_68, %c0_69] : memref<8x256xbf16, #tpu.memory_space<vmem>>, vector<8x128xbf16>
    tpu.vector_store %arg9[%c0_68, %c0_69], %149 {strides = array<i32>} : memref<8x256xbf16, #tpu.memory_space<vmem>>, vector<8x128xbf16>,
    %c0_70 = arith.constant 0 : index
    %c0_71 = arith.constant 0 : index
    %151 = vector.load %arg9[%c0_70, %c0_71] : memref<8x256xbf16, #tpu.memory_space<vmem>>, vector<8x256xbf16>
    %cst_72 = arith.constant dense<0.000000e+00> : vector<8x512xf32>
    %152 = tpu.matmul %151, %13, %cst_72 {dimension_numbers = #tpu.dot_dimension_numbers<[1], [0], [0], [1], [0, 0, 1, 1], [], []>} : vector<8x256xbf16>, vector<256x512xbf16>, vector<8x512xf32> -> vector<8x512xf32>
    %153 = arith.addf %152, %16 : vector<8x512xf32>
    %154 = vector.extract_strided_slice %153 {offsets = [0, 0], sizes = [8, 384], strides = [1, 1]} : vector<8x512xf32> to vector<8x384xf32>
    %cst_73 = arith.constant 5.000000e-01 : f32
    %155 = vector.broadcast %cst_73 : f32 to vector<8x384xf32>
    %156 = arith.mulf %155, %154 : vector<8x384xf32>
    %157 = math.tanh %156 : vector<8x384xf32>
    %cst_74 = arith.constant 5.000000e-01 : f32
    %158 = vector.broadcast %cst_74 : f32 to vector<8x384xf32>
    %159 = arith.mulf %158, %157 : vector<8x384xf32>
    %cst_75 = arith.constant 5.000000e-01 : f32
    %160 = vector.broadcast %cst_75 : f32 to vector<8x384xf32>
    %161 = arith.addf %159, %160 : vector<8x384xf32>
    %162 = vector.extract_strided_slice %161 {offsets = [0, 0], sizes = [8, 128], strides = [1, 1]} : vector<8x384xf32> to vector<8x128xf32>
    %163 = vector.extract_strided_slice %161 {offsets = [0, 128], sizes = [8, 128], strides = [1, 1]} : vector<8x384xf32> to vector<8x128xf32>
    %164 = vector.extract_strided_slice %161 {offsets = [0, 256], sizes = [8, 128], strides = [1, 1]} : vector<8x384xf32> to vector<8x128xf32>
    %165 = vector.extract_strided_slice %153 {offsets = [0, 384], sizes = [8, 128], strides = [1, 1]} : vector<8x512xf32> to vector<8x128xf32>
    %166 = math.tanh %165 : vector<8x128xf32>
    %167 = arith.mulf %163, %116 : vector<8x128xf32>
    %168 = arith.mulf %162, %166 : vector<8x128xf32>
    %169 = arith.addf %167, %168 : vector<8x128xf32>
    %170 = math.tanh %169 : vector<8x128xf32>
    %171 = arith.mulf %164, %170 : vector<8x128xf32>
    %172 = arith.index_cast %c2_i32 : i32 to index
    %c0_76 = arith.constant 0 : index
    %c0_77 = arith.constant 0 : index
    %173 = vector.load %arg7[%172, %c0_76, %c0_77] : memref<8x8x128xf32, #tpu.memory_space<vmem>>, vector<1x8x128xf32>
    %174 = vector.shape_cast %173 : vector<1x8x128xf32> to vector<8x128xf32>
    %175 = vector.shape_cast %171 : vector<8x128xf32> to vector<1x8x128xf32>
    tpu.vector_store %arg7[%172, %c0_76, %c0_77], %175 {strides = array<i32>} : memref<8x8x128xf32, #tpu.memory_space<vmem>>, vector<1x8x128xf32>,
    %176 = arith.truncf %171 : vector<8x128xf32> to vector<8x128xbf16>
    %c0_78 = arith.constant 0 : index
    %c128_79 = arith.constant 128 : index
    %177 = vector.load %arg9[%c0_78, %c128_79] : memref<8x256xbf16, #tpu.memory_space<vmem>>, vector<8x128xbf16>
    tpu.vector_store %arg9[%c0_78, %c128_79], %176 {strides = array<i32>} : memref<8x256xbf16, #tpu.memory_space<vmem>>, vector<8x128xbf16>,
    %c3_i32 = arith.constant 3 : i32
    %c0_80 = arith.constant 0 : index
    %c0_81 = arith.constant 0 : index
    %178 = vector.load %arg9[%c0_80, %c0_81] : memref<8x256xbf16, #tpu.memory_space<vmem>>, vector<8x128xbf16>
    %179 = arith.index_cast %c3_i32 : i32 to index
    %c0_82 = arith.constant 0 : index
    %c0_83 = arith.constant 0 : index
    %180 = vector.load %arg8[%179, %c0_82, %c0_83] : memref<8x8x512xf32, #tpu.memory_space<vmem>>, vector<1x8x512xf32>
    %181 = vector.shape_cast %180 : vector<1x8x512xf32> to vector<8x512xf32>
    %cst_84 = arith.constant dense<0.000000e+00> : vector<8x512xf32>
    %182 = tpu.matmul %178, %12, %cst_84 {dimension_numbers = #tpu.dot_dimension_numbers<[1], [0], [0], [1], [0, 0, 1, 1], [], []>} : vector<8x128xbf16>, vector<128x512xbf16>, vector<8x512xf32> -> vector<8x512xf32>
    %183 = arith.addf %181, %182 : vector<8x512xf32>
    %184 = vector.extract_strided_slice %183 {offsets = [0, 0], sizes = [8, 384], strides = [1, 1]} : vector<8x512xf32> to vector<8x384xf32>
    %cst_85 = arith.constant 5.000000e-01 : f32
    %185 = vector.broadcast %cst_85 : f32 to vector<8x384xf32>
    %186 = arith.mulf %185, %184 : vector<8x384xf32>
    %187 = math.tanh %186 : vector<8x384xf32>
    %cst_86 = arith.constant 5.000000e-01 : f32
    %188 = vector.broadcast %cst_86 : f32 to vector<8x384xf32>
    %189 = arith.mulf %188, %187 : vector<8x384xf32>
    %cst_87 = arith.constant 5.000000e-01 : f32
    %190 = vector.broadcast %cst_87 : f32 to vector<8x384xf32>
    %191 = arith.addf %189, %190 : vector<8x384xf32>
    %192 = vector.extract_strided_slice %191 {offsets = [0, 0], sizes = [8, 128], strides = [1, 1]} : vector<8x384xf32> to vector<8x128xf32>
    %193 = vector.extract_strided_slice %191 {offsets = [0, 128], sizes = [8, 128], strides = [1, 1]} : vector<8x384xf32> to vector<8x128xf32>
    %194 = vector.extract_strided_slice %191 {offsets = [0, 256], sizes = [8, 128], strides = [1, 1]} : vector<8x384xf32> to vector<8x128xf32>
    %195 = vector.extract_strided_slice %183 {offsets = [0, 384], sizes = [8, 128], strides = [1, 1]} : vector<8x512xf32> to vector<8x128xf32>
    %196 = math.tanh %195 : vector<8x128xf32>
    %197 = arith.mulf %193, %146 : vector<8x128xf32>
    %198 = arith.mulf %192, %196 : vector<8x128xf32>
    %199 = arith.addf %197, %198 : vector<8x128xf32>
    %200 = math.tanh %199 : vector<8x128xf32>
    %201 = arith.mulf %194, %200 : vector<8x128xf32>
    %202 = arith.truncf %201 : vector<8x128xf32> to vector<8x128xbf16>
    %c0_88 = arith.constant 0 : index
    %c0_89 = arith.constant 0 : index
    %203 = vector.load %arg9[%c0_88, %c0_89] : memref<8x256xbf16, #tpu.memory_space<vmem>>, vector<8x128xbf16>
    tpu.vector_store %arg9[%c0_88, %c0_89], %202 {strides = array<i32>} : memref<8x256xbf16, #tpu.memory_space<vmem>>, vector<8x128xbf16>,
    %c0_90 = arith.constant 0 : index
    %c0_91 = arith.constant 0 : index
    %204 = vector.load %arg9[%c0_90, %c0_91] : memref<8x256xbf16, #tpu.memory_space<vmem>>, vector<8x256xbf16>
    %cst_92 = arith.constant dense<0.000000e+00> : vector<8x512xf32>
    %205 = tpu.matmul %204, %13, %cst_92 {dimension_numbers = #tpu.dot_dimension_numbers<[1], [0], [0], [1], [0, 0, 1, 1], [], []>} : vector<8x256xbf16>, vector<256x512xbf16>, vector<8x512xf32> -> vector<8x512xf32>
    %206 = arith.addf %205, %16 : vector<8x512xf32>
    %207 = vector.extract_strided_slice %206 {offsets = [0, 0], sizes = [8, 384], strides = [1, 1]} : vector<8x512xf32> to vector<8x384xf32>
    %cst_93 = arith.constant 5.000000e-01 : f32
    %208 = vector.broadcast %cst_93 : f32 to vector<8x384xf32>
    %209 = arith.mulf %208, %207 : vector<8x384xf32>
    %210 = math.tanh %209 : vector<8x384xf32>
    %cst_94 = arith.constant 5.000000e-01 : f32
    %211 = vector.broadcast %cst_94 : f32 to vector<8x384xf32>
    %212 = arith.mulf %211, %210 : vector<8x384xf32>
    %cst_95 = arith.constant 5.000000e-01 : f32
    %213 = vector.broadcast %cst_95 : f32 to vector<8x384xf32>
    %214 = arith.addf %212, %213 : vector<8x384xf32>
    %215 = vector.extract_strided_slice %214 {offsets = [0, 0], sizes = [8, 128], strides = [1, 1]} : vector<8x384xf32> to vector<8x128xf32>
    %216 = vector.extract_strided_slice %214 {offsets = [0, 128], sizes = [8, 128], strides = [1, 1]} : vector<8x384xf32> to vector<8x128xf32>
    %217 = vector.extract_strided_slice %214 {offsets = [0, 256], sizes = [8, 128], strides = [1, 1]} : vector<8x384xf32> to vector<8x128xf32>
    %218 = vector.extract_strided_slice %206 {offsets = [0, 384], sizes = [8, 128], strides = [1, 1]} : vector<8x512xf32> to vector<8x128xf32>
    %219 = math.tanh %218 : vector<8x128xf32>
    %220 = arith.mulf %216, %169 : vector<8x128xf32>
    %221 = arith.mulf %215, %219 : vector<8x128xf32>
    %222 = arith.addf %220, %221 : vector<8x128xf32>
    %223 = math.tanh %222 : vector<8x128xf32>
    %224 = arith.mulf %217, %223 : vector<8x128xf32>
    %225 = arith.index_cast %c3_i32 : i32 to index
    %c0_96 = arith.constant 0 : index
    %c0_97 = arith.constant 0 : index
    %226 = vector.load %arg7[%225, %c0_96, %c0_97] : memref<8x8x128xf32, #tpu.memory_space<vmem>>, vector<1x8x128xf32>
    %227 = vector.shape_cast %226 : vector<1x8x128xf32> to vector<8x128xf32>
    %228 = vector.shape_cast %224 : vector<8x128xf32> to vector<1x8x128xf32>
    tpu.vector_store %arg7[%225, %c0_96, %c0_97], %228 {strides = array<i32>} : memref<8x8x128xf32, #tpu.memory_space<vmem>>, vector<1x8x128xf32>,
    %229 = arith.truncf %224 : vector<8x128xf32> to vector<8x128xbf16>
    %c0_98 = arith.constant 0 : index
    %c128_99 = arith.constant 128 : index
    %230 = vector.load %arg9[%c0_98, %c128_99] : memref<8x256xbf16, #tpu.memory_space<vmem>>, vector<8x128xbf16>
    tpu.vector_store %arg9[%c0_98, %c128_99], %229 {strides = array<i32>} : memref<8x256xbf16, #tpu.memory_space<vmem>>, vector<8x128xbf16>,
    %c4_i32 = arith.constant 4 : i32
    %c0_100 = arith.constant 0 : index
    %c0_101 = arith.constant 0 : index
    %231 = vector.load %arg9[%c0_100, %c0_101] : memref<8x256xbf16, #tpu.memory_space<vmem>>, vector<8x128xbf16>
    %232 = arith.index_cast %c4_i32 : i32 to index
    %c0_102 = arith.constant 0 : index
    %c0_103 = arith.constant 0 : index
    %233 = vector.load %arg8[%232, %c0_102, %c0_103] : memref<8x8x512xf32, #tpu.memory_space<vmem>>, vector<1x8x512xf32>
    %234 = vector.shape_cast %233 : vector<1x8x512xf32> to vector<8x512xf32>
    %cst_104 = arith.constant dense<0.000000e+00> : vector<8x512xf32>
    %235 = tpu.matmul %231, %12, %cst_104 {dimension_numbers = #tpu.dot_dimension_numbers<[1], [0], [0], [1], [0, 0, 1, 1], [], []>} : vector<8x128xbf16>, vector<128x512xbf16>, vector<8x512xf32> -> vector<8x512xf32>
    %236 = arith.addf %234, %235 : vector<8x512xf32>
    %237 = vector.extract_strided_slice %236 {offsets = [0, 0], sizes = [8, 384], strides = [1, 1]} : vector<8x512xf32> to vector<8x384xf32>
    %cst_105 = arith.constant 5.000000e-01 : f32
    %238 = vector.broadcast %cst_105 : f32 to vector<8x384xf32>
    %239 = arith.mulf %238, %237 : vector<8x384xf32>
    %240 = math.tanh %239 : vector<8x384xf32>
    %cst_106 = arith.constant 5.000000e-01 : f32
    %241 = vector.broadcast %cst_106 : f32 to vector<8x384xf32>
    %242 = arith.mulf %241, %240 : vector<8x384xf32>
    %cst_107 = arith.constant 5.000000e-01 : f32
    %243 = vector.broadcast %cst_107 : f32 to vector<8x384xf32>
    %244 = arith.addf %242, %243 : vector<8x384xf32>
    %245 = vector.extract_strided_slice %244 {offsets = [0, 0], sizes = [8, 128], strides = [1, 1]} : vector<8x384xf32> to vector<8x128xf32>
    %246 = vector.extract_strided_slice %244 {offsets = [0, 128], sizes = [8, 128], strides = [1, 1]} : vector<8x384xf32> to vector<8x128xf32>
    %247 = vector.extract_strided_slice %244 {offsets = [0, 256], sizes = [8, 128], strides = [1, 1]} : vector<8x384xf32> to vector<8x128xf32>
    %248 = vector.extract_strided_slice %236 {offsets = [0, 384], sizes = [8, 128], strides = [1, 1]} : vector<8x512xf32> to vector<8x128xf32>
    %249 = math.tanh %248 : vector<8x128xf32>
    %250 = arith.mulf %246, %199 : vector<8x128xf32>
    %251 = arith.mulf %245, %249 : vector<8x128xf32>
    %252 = arith.addf %250, %251 : vector<8x128xf32>
    %253 = math.tanh %252 : vector<8x128xf32>
    %254 = arith.mulf %247, %253 : vector<8x128xf32>
    %255 = arith.truncf %254 : vector<8x128xf32> to vector<8x128xbf16>
    %c0_108 = arith.constant 0 : index
    %c0_109 = arith.constant 0 : index
    %256 = vector.load %arg9[%c0_108, %c0_109] : memref<8x256xbf16, #tpu.memory_space<vmem>>, vector<8x128xbf16>
    tpu.vector_store %arg9[%c0_108, %c0_109], %255 {strides = array<i32>} : memref<8x256xbf16, #tpu.memory_space<vmem>>, vector<8x128xbf16>,
    %c0_110 = arith.constant 0 : index
    %c0_111 = arith.constant 0 : index
    %257 = vector.load %arg9[%c0_110, %c0_111] : memref<8x256xbf16, #tpu.memory_space<vmem>>, vector<8x256xbf16>
    %cst_112 = arith.constant dense<0.000000e+00> : vector<8x512xf32>
    %258 = tpu.matmul %257, %13, %cst_112 {dimension_numbers = #tpu.dot_dimension_numbers<[1], [0], [0], [1], [0, 0, 1, 1], [], []>} : vector<8x256xbf16>, vector<256x512xbf16>, vector<8x512xf32> -> vector<8x512xf32>
    %259 = arith.addf %258, %16 : vector<8x512xf32>
    %260 = vector.extract_strided_slice %259 {offsets = [0, 0], sizes = [8, 384], strides = [1, 1]} : vector<8x512xf32> to vector<8x384xf32>
    %cst_113 = arith.constant 5.000000e-01 : f32
    %261 = vector.broadcast %cst_113 : f32 to vector<8x384xf32>
    %262 = arith.mulf %261, %260 : vector<8x384xf32>
    %263 = math.tanh %262 : vector<8x384xf32>
    %cst_114 = arith.constant 5.000000e-01 : f32
    %264 = vector.broadcast %cst_114 : f32 to vector<8x384xf32>
    %265 = arith.mulf %264, %263 : vector<8x384xf32>
    %cst_115 = arith.constant 5.000000e-01 : f32
    %266 = vector.broadcast %cst_115 : f32 to vector<8x384xf32>
    %267 = arith.addf %265, %266 : vector<8x384xf32>
    %268 = vector.extract_strided_slice %267 {offsets = [0, 0], sizes = [8, 128], strides = [1, 1]} : vector<8x384xf32> to vector<8x128xf32>
    %269 = vector.extract_strided_slice %267 {offsets = [0, 128], sizes = [8, 128], strides = [1, 1]} : vector<8x384xf32> to vector<8x128xf32>
    %270 = vector.extract_strided_slice %267 {offsets = [0, 256], sizes = [8, 128], strides = [1, 1]} : vector<8x384xf32> to vector<8x128xf32>
    %271 = vector.extract_strided_slice %259 {offsets = [0, 384], sizes = [8, 128], strides = [1, 1]} : vector<8x512xf32> to vector<8x128xf32>
    %272 = math.tanh %271 : vector<8x128xf32>
    %273 = arith.mulf %269, %222 : vector<8x128xf32>
    %274 = arith.mulf %268, %272 : vector<8x128xf32>
    %275 = arith.addf %273, %274 : vector<8x128xf32>
    %276 = math.tanh %275 : vector<8x128xf32>
    %277 = arith.mulf %270, %276 : vector<8x128xf32>
    %278 = arith.index_cast %c4_i32 : i32 to index
    %c0_116 = arith.constant 0 : index
    %c0_117 = arith.constant 0 : index
    %279 = vector.load %arg7[%278, %c0_116, %c0_117] : memref<8x8x128xf32, #tpu.memory_space<vmem>>, vector<1x8x128xf32>
    %280 = vector.shape_cast %279 : vector<1x8x128xf32> to vector<8x128xf32>
    %281 = vector.shape_cast %277 : vector<8x128xf32> to vector<1x8x128xf32>
    tpu.vector_store %arg7[%278, %c0_116, %c0_117], %281 {strides = array<i32>} : memref<8x8x128xf32, #tpu.memory_space<vmem>>, vector<1x8x128xf32>,
    %282 = arith.truncf %277 : vector<8x128xf32> to vector<8x128xbf16>
    %c0_118 = arith.constant 0 : index
    %c128_119 = arith.constant 128 : index
    %283 = vector.load %arg9[%c0_118, %c128_119] : memref<8x256xbf16, #tpu.memory_space<vmem>>, vector<8x128xbf16>
    tpu.vector_store %arg9[%c0_118, %c128_119], %282 {strides = array<i32>} : memref<8x256xbf16, #tpu.memory_space<vmem>>, vector<8x128xbf16>,
    %c5_i32 = arith.constant 5 : i32
    %c0_120 = arith.constant 0 : index
    %c0_121 = arith.constant 0 : index
    %284 = vector.load %arg9[%c0_120, %c0_121] : memref<8x256xbf16, #tpu.memory_space<vmem>>, vector<8x128xbf16>
    %285 = arith.index_cast %c5_i32 : i32 to index
    %c0_122 = arith.constant 0 : index
    %c0_123 = arith.constant 0 : index
    %286 = vector.load %arg8[%285, %c0_122, %c0_123] : memref<8x8x512xf32, #tpu.memory_space<vmem>>, vector<1x8x512xf32>
    %287 = vector.shape_cast %286 : vector<1x8x512xf32> to vector<8x512xf32>
    %cst_124 = arith.constant dense<0.000000e+00> : vector<8x512xf32>
    %288 = tpu.matmul %284, %12, %cst_124 {dimension_numbers = #tpu.dot_dimension_numbers<[1], [0], [0], [1], [0, 0, 1, 1], [], []>} : vector<8x128xbf16>, vector<128x512xbf16>, vector<8x512xf32> -> vector<8x512xf32>
    %289 = arith.addf %287, %288 : vector<8x512xf32>
    %290 = vector.extract_strided_slice %289 {offsets = [0, 0], sizes = [8, 384], strides = [1, 1]} : vector<8x512xf32> to vector<8x384xf32>
    %cst_125 = arith.constant 5.000000e-01 : f32
    %291 = vector.broadcast %cst_125 : f32 to vector<8x384xf32>
    %292 = arith.mulf %291, %290 : vector<8x384xf32>
    %293 = math.tanh %292 : vector<8x384xf32>
    %cst_126 = arith.constant 5.000000e-01 : f32
    %294 = vector.broadcast %cst_126 : f32 to vector<8x384xf32>
    %295 = arith.mulf %294, %293 : vector<8x384xf32>
    %cst_127 = arith.constant 5.000000e-01 : f32
    %296 = vector.broadcast %cst_127 : f32 to vector<8x384xf32>
    %297 = arith.addf %295, %296 : vector<8x384xf32>
    %298 = vector.extract_strided_slice %297 {offsets = [0, 0], sizes = [8, 128], strides = [1, 1]} : vector<8x384xf32> to vector<8x128xf32>
    %299 = vector.extract_strided_slice %297 {offsets = [0, 128], sizes = [8, 128], strides = [1, 1]} : vector<8x384xf32> to vector<8x128xf32>
    %300 = vector.extract_strided_slice %297 {offsets = [0, 256], sizes = [8, 128], strides = [1, 1]} : vector<8x384xf32> to vector<8x128xf32>
    %301 = vector.extract_strided_slice %289 {offsets = [0, 384], sizes = [8, 128], strides = [1, 1]} : vector<8x512xf32> to vector<8x128xf32>
    %302 = math.tanh %301 : vector<8x128xf32>
    %303 = arith.mulf %299, %252 : vector<8x128xf32>
    %304 = arith.mulf %298, %302 : vector<8x128xf32>
    %305 = arith.addf %303, %304 : vector<8x128xf32>
    %306 = math.tanh %305 : vector<8x128xf32>
    %307 = arith.mulf %300, %306 : vector<8x128xf32>
    %308 = arith.truncf %307 : vector<8x128xf32> to vector<8x128xbf16>
    %c0_128 = arith.constant 0 : index
    %c0_129 = arith.constant 0 : index
    %309 = vector.load %arg9[%c0_128, %c0_129] : memref<8x256xbf16, #tpu.memory_space<vmem>>, vector<8x128xbf16>
    tpu.vector_store %arg9[%c0_128, %c0_129], %308 {strides = array<i32>} : memref<8x256xbf16, #tpu.memory_space<vmem>>, vector<8x128xbf16>,
    %c0_130 = arith.constant 0 : index
    %c0_131 = arith.constant 0 : index
    %310 = vector.load %arg9[%c0_130, %c0_131] : memref<8x256xbf16, #tpu.memory_space<vmem>>, vector<8x256xbf16>
    %cst_132 = arith.constant dense<0.000000e+00> : vector<8x512xf32>
    %311 = tpu.matmul %310, %13, %cst_132 {dimension_numbers = #tpu.dot_dimension_numbers<[1], [0], [0], [1], [0, 0, 1, 1], [], []>} : vector<8x256xbf16>, vector<256x512xbf16>, vector<8x512xf32> -> vector<8x512xf32>
    %312 = arith.addf %311, %16 : vector<8x512xf32>
    %313 = vector.extract_strided_slice %312 {offsets = [0, 0], sizes = [8, 384], strides = [1, 1]} : vector<8x512xf32> to vector<8x384xf32>
    %cst_133 = arith.constant 5.000000e-01 : f32
    %314 = vector.broadcast %cst_133 : f32 to vector<8x384xf32>
    %315 = arith.mulf %314, %313 : vector<8x384xf32>
    %316 = math.tanh %315 : vector<8x384xf32>
    %cst_134 = arith.constant 5.000000e-01 : f32
    %317 = vector.broadcast %cst_134 : f32 to vector<8x384xf32>
    %318 = arith.mulf %317, %316 : vector<8x384xf32>
    %cst_135 = arith.constant 5.000000e-01 : f32
    %319 = vector.broadcast %cst_135 : f32 to vector<8x384xf32>
    %320 = arith.addf %318, %319 : vector<8x384xf32>
    %321 = vector.extract_strided_slice %320 {offsets = [0, 0], sizes = [8, 128], strides = [1, 1]} : vector<8x384xf32> to vector<8x128xf32>
    %322 = vector.extract_strided_slice %320 {offsets = [0, 128], sizes = [8, 128], strides = [1, 1]} : vector<8x384xf32> to vector<8x128xf32>
    %323 = vector.extract_strided_slice %320 {offsets = [0, 256], sizes = [8, 128], strides = [1, 1]} : vector<8x384xf32> to vector<8x128xf32>
    %324 = vector.extract_strided_slice %312 {offsets = [0, 384], sizes = [8, 128], strides = [1, 1]} : vector<8x512xf32> to vector<8x128xf32>
    %325 = math.tanh %324 : vector<8x128xf32>
    %326 = arith.mulf %322, %275 : vector<8x128xf32>
    %327 = arith.mulf %321, %325 : vector<8x128xf32>
    %328 = arith.addf %326, %327 : vector<8x128xf32>
    %329 = math.tanh %328 : vector<8x128xf32>
    %330 = arith.mulf %323, %329 : vector<8x128xf32>
    %331 = arith.index_cast %c5_i32 : i32 to index
    %c0_136 = arith.constant 0 : index
    %c0_137 = arith.constant 0 : index
    %332 = vector.load %arg7[%331, %c0_136, %c0_137] : memref<8x8x128xf32, #tpu.memory_space<vmem>>, vector<1x8x128xf32>
    %333 = vector.shape_cast %332 : vector<1x8x128xf32> to vector<8x128xf32>
    %334 = vector.shape_cast %330 : vector<8x128xf32> to vector<1x8x128xf32>
    tpu.vector_store %arg7[%331, %c0_136, %c0_137], %334 {strides = array<i32>} : memref<8x8x128xf32, #tpu.memory_space<vmem>>, vector<1x8x128xf32>,
    %335 = arith.truncf %330 : vector<8x128xf32> to vector<8x128xbf16>
    %c0_138 = arith.constant 0 : index
    %c128_139 = arith.constant 128 : index
    %336 = vector.load %arg9[%c0_138, %c128_139] : memref<8x256xbf16, #tpu.memory_space<vmem>>, vector<8x128xbf16>
    tpu.vector_store %arg9[%c0_138, %c128_139], %335 {strides = array<i32>} : memref<8x256xbf16, #tpu.memory_space<vmem>>, vector<8x128xbf16>,
    %c6_i32 = arith.constant 6 : i32
    %c0_140 = arith.constant 0 : index
    %c0_141 = arith.constant 0 : index
    %337 = vector.load %arg9[%c0_140, %c0_141] : memref<8x256xbf16, #tpu.memory_space<vmem>>, vector<8x128xbf16>
    %338 = arith.index_cast %c6_i32 : i32 to index
    %c0_142 = arith.constant 0 : index
    %c0_143 = arith.constant 0 : index
    %339 = vector.load %arg8[%338, %c0_142, %c0_143] : memref<8x8x512xf32, #tpu.memory_space<vmem>>, vector<1x8x512xf32>
    %340 = vector.shape_cast %339 : vector<1x8x512xf32> to vector<8x512xf32>
    %cst_144 = arith.constant dense<0.000000e+00> : vector<8x512xf32>
    %341 = tpu.matmul %337, %12, %cst_144 {dimension_numbers = #tpu.dot_dimension_numbers<[1], [0], [0], [1], [0, 0, 1, 1], [], []>} : vector<8x128xbf16>, vector<128x512xbf16>, vector<8x512xf32> -> vector<8x512xf32>
    %342 = arith.addf %340, %341 : vector<8x512xf32>
    %343 = vector.extract_strided_slice %342 {offsets = [0, 0], sizes = [8, 384], strides = [1, 1]} : vector<8x512xf32> to vector<8x384xf32>
    %cst_145 = arith.constant 5.000000e-01 : f32
    %344 = vector.broadcast %cst_145 : f32 to vector<8x384xf32>
    %345 = arith.mulf %344, %343 : vector<8x384xf32>
    %346 = math.tanh %345 : vector<8x384xf32>
    %cst_146 = arith.constant 5.000000e-01 : f32
    %347 = vector.broadcast %cst_146 : f32 to vector<8x384xf32>
    %348 = arith.mulf %347, %346 : vector<8x384xf32>
    %cst_147 = arith.constant 5.000000e-01 : f32
    %349 = vector.broadcast %cst_147 : f32 to vector<8x384xf32>
    %350 = arith.addf %348, %349 : vector<8x384xf32>
    %351 = vector.extract_strided_slice %350 {offsets = [0, 0], sizes = [8, 128], strides = [1, 1]} : vector<8x384xf32> to vector<8x128xf32>
    %352 = vector.extract_strided_slice %350 {offsets = [0, 128], sizes = [8, 128], strides = [1, 1]} : vector<8x384xf32> to vector<8x128xf32>
    %353 = vector.extract_strided_slice %350 {offsets = [0, 256], sizes = [8, 128], strides = [1, 1]} : vector<8x384xf32> to vector<8x128xf32>
    %354 = vector.extract_strided_slice %342 {offsets = [0, 384], sizes = [8, 128], strides = [1, 1]} : vector<8x512xf32> to vector<8x128xf32>
    %355 = math.tanh %354 : vector<8x128xf32>
    %356 = arith.mulf %352, %305 : vector<8x128xf32>
    %357 = arith.mulf %351, %355 : vector<8x128xf32>
    %358 = arith.addf %356, %357 : vector<8x128xf32>
    %359 = math.tanh %358 : vector<8x128xf32>
    %360 = arith.mulf %353, %359 : vector<8x128xf32>
    %361 = arith.truncf %360 : vector<8x128xf32> to vector<8x128xbf16>
    %c0_148 = arith.constant 0 : index
    %c0_149 = arith.constant 0 : index
    %362 = vector.load %arg9[%c0_148, %c0_149] : memref<8x256xbf16, #tpu.memory_space<vmem>>, vector<8x128xbf16>
    tpu.vector_store %arg9[%c0_148, %c0_149], %361 {strides = array<i32>} : memref<8x256xbf16, #tpu.memory_space<vmem>>, vector<8x128xbf16>,
    %c0_150 = arith.constant 0 : index
    %c0_151 = arith.constant 0 : index
    %363 = vector.load %arg9[%c0_150, %c0_151] : memref<8x256xbf16, #tpu.memory_space<vmem>>, vector<8x256xbf16>
    %cst_152 = arith.constant dense<0.000000e+00> : vector<8x512xf32>
    %364 = tpu.matmul %363, %13, %cst_152 {dimension_numbers = #tpu.dot_dimension_numbers<[1], [0], [0], [1], [0, 0, 1, 1], [], []>} : vector<8x256xbf16>, vector<256x512xbf16>, vector<8x512xf32> -> vector<8x512xf32>
    %365 = arith.addf %364, %16 : vector<8x512xf32>
    %366 = vector.extract_strided_slice %365 {offsets = [0, 0], sizes = [8, 384], strides = [1, 1]} : vector<8x512xf32> to vector<8x384xf32>
    %cst_153 = arith.constant 5.000000e-01 : f32
    %367 = vector.broadcast %cst_153 : f32 to vector<8x384xf32>
    %368 = arith.mulf %367, %366 : vector<8x384xf32>
    %369 = math.tanh %368 : vector<8x384xf32>
    %cst_154 = arith.constant 5.000000e-01 : f32
    %370 = vector.broadcast %cst_154 : f32 to vector<8x384xf32>
    %371 = arith.mulf %370, %369 : vector<8x384xf32>
    %cst_155 = arith.constant 5.000000e-01 : f32
    %372 = vector.broadcast %cst_155 : f32 to vector<8x384xf32>
    %373 = arith.addf %371, %372 : vector<8x384xf32>
    %374 = vector.extract_strided_slice %373 {offsets = [0, 0], sizes = [8, 128], strides = [1, 1]} : vector<8x384xf32> to vector<8x128xf32>
    %375 = vector.extract_strided_slice %373 {offsets = [0, 128], sizes = [8, 128], strides = [1, 1]} : vector<8x384xf32> to vector<8x128xf32>
    %376 = vector.extract_strided_slice %373 {offsets = [0, 256], sizes = [8, 128], strides = [1, 1]} : vector<8x384xf32> to vector<8x128xf32>
    %377 = vector.extract_strided_slice %365 {offsets = [0, 384], sizes = [8, 128], strides = [1, 1]} : vector<8x512xf32> to vector<8x128xf32>
    %378 = math.tanh %377 : vector<8x128xf32>
    %379 = arith.mulf %375, %328 : vector<8x128xf32>
    %380 = arith.mulf %374, %378 : vector<8x128xf32>
    %381 = arith.addf %379, %380 : vector<8x128xf32>
    %382 = math.tanh %381 : vector<8x128xf32>
    %383 = arith.mulf %376, %382 : vector<8x128xf32>
    %384 = arith.index_cast %c6_i32 : i32 to index
    %c0_156 = arith.constant 0 : index
    %c0_157 = arith.constant 0 : index
    %385 = vector.load %arg7[%384, %c0_156, %c0_157] : memref<8x8x128xf32, #tpu.memory_space<vmem>>, vector<1x8x128xf32>
    %386 = vector.shape_cast %385 : vector<1x8x128xf32> to vector<8x128xf32>
    %387 = vector.shape_cast %383 : vector<8x128xf32> to vector<1x8x128xf32>
    tpu.vector_store %arg7[%384, %c0_156, %c0_157], %387 {strides = array<i32>} : memref<8x8x128xf32, #tpu.memory_space<vmem>>, vector<1x8x128xf32>,
    %388 = arith.truncf %383 : vector<8x128xf32> to vector<8x128xbf16>
    %c0_158 = arith.constant 0 : index
    %c128_159 = arith.constant 128 : index
    %389 = vector.load %arg9[%c0_158, %c128_159] : memref<8x256xbf16, #tpu.memory_space<vmem>>, vector<8x128xbf16>
    tpu.vector_store %arg9[%c0_158, %c128_159], %388 {strides = array<i32>} : memref<8x256xbf16, #tpu.memory_space<vmem>>, vector<8x128xbf16>,
    %c7_i32 = arith.constant 7 : i32
    %c0_160 = arith.constant 0 : index
    %c0_161 = arith.constant 0 : index
    %390 = vector.load %arg9[%c0_160, %c0_161] : memref<8x256xbf16, #tpu.memory_space<vmem>>, vector<8x128xbf16>
    %391 = arith.index_cast %c7_i32 : i32 to index
    %c0_162 = arith.constant 0 : index
    %c0_163 = arith.constant 0 : index
    %392 = vector.load %arg8[%391, %c0_162, %c0_163] : memref<8x8x512xf32, #tpu.memory_space<vmem>>, vector<1x8x512xf32>
    %393 = vector.shape_cast %392 : vector<1x8x512xf32> to vector<8x512xf32>
    %cst_164 = arith.constant dense<0.000000e+00> : vector<8x512xf32>
    %394 = tpu.matmul %390, %12, %cst_164 {dimension_numbers = #tpu.dot_dimension_numbers<[1], [0], [0], [1], [0, 0, 1, 1], [], []>} : vector<8x128xbf16>, vector<128x512xbf16>, vector<8x512xf32> -> vector<8x512xf32>
    %395 = arith.addf %393, %394 : vector<8x512xf32>
    %396 = vector.extract_strided_slice %395 {offsets = [0, 0], sizes = [8, 384], strides = [1, 1]} : vector<8x512xf32> to vector<8x384xf32>
    %cst_165 = arith.constant 5.000000e-01 : f32
    %397 = vector.broadcast %cst_165 : f32 to vector<8x384xf32>
    %398 = arith.mulf %397, %396 : vector<8x384xf32>
    %399 = math.tanh %398 : vector<8x384xf32>
    %cst_166 = arith.constant 5.000000e-01 : f32
    %400 = vector.broadcast %cst_166 : f32 to vector<8x384xf32>
    %401 = arith.mulf %400, %399 : vector<8x384xf32>
    %cst_167 = arith.constant 5.000000e-01 : f32
    %402 = vector.broadcast %cst_167 : f32 to vector<8x384xf32>
    %403 = arith.addf %401, %402 : vector<8x384xf32>
    %404 = vector.extract_strided_slice %403 {offsets = [0, 0], sizes = [8, 128], strides = [1, 1]} : vector<8x384xf32> to vector<8x128xf32>
    %405 = vector.extract_strided_slice %403 {offsets = [0, 128], sizes = [8, 128], strides = [1, 1]} : vector<8x384xf32> to vector<8x128xf32>
    %406 = vector.extract_strided_slice %403 {offsets = [0, 256], sizes = [8, 128], strides = [1, 1]} : vector<8x384xf32> to vector<8x128xf32>
    %407 = vector.extract_strided_slice %395 {offsets = [0, 384], sizes = [8, 128], strides = [1, 1]} : vector<8x512xf32> to vector<8x128xf32>
    %408 = math.tanh %407 : vector<8x128xf32>
    %409 = arith.mulf %405, %358 : vector<8x128xf32>
    %410 = arith.mulf %404, %408 : vector<8x128xf32>
    %411 = arith.addf %409, %410 : vector<8x128xf32>
    %412 = math.tanh %411 : vector<8x128xf32>
    %413 = arith.mulf %406, %412 : vector<8x128xf32>
    %414 = arith.truncf %413 : vector<8x128xf32> to vector<8x128xbf16>
    %c0_168 = arith.constant 0 : index
    %c0_169 = arith.constant 0 : index
    %415 = vector.load %arg9[%c0_168, %c0_169] : memref<8x256xbf16, #tpu.memory_space<vmem>>, vector<8x128xbf16>
    tpu.vector_store %arg9[%c0_168, %c0_169], %414 {strides = array<i32>} : memref<8x256xbf16, #tpu.memory_space<vmem>>, vector<8x128xbf16>,
    %c0_170 = arith.constant 0 : index
    %c0_171 = arith.constant 0 : index
    %416 = vector.load %arg9[%c0_170, %c0_171] : memref<8x256xbf16, #tpu.memory_space<vmem>>, vector<8x256xbf16>
    %cst_172 = arith.constant dense<0.000000e+00> : vector<8x512xf32>
    %417 = tpu.matmul %416, %13, %cst_172 {dimension_numbers = #tpu.dot_dimension_numbers<[1], [0], [0], [1], [0, 0, 1, 1], [], []>} : vector<8x256xbf16>, vector<256x512xbf16>, vector<8x512xf32> -> vector<8x512xf32>
    %418 = arith.addf %417, %16 : vector<8x512xf32>
    %419 = vector.extract_strided_slice %418 {offsets = [0, 0], sizes = [8, 384], strides = [1, 1]} : vector<8x512xf32> to vector<8x384xf32>
    %cst_173 = arith.constant 5.000000e-01 : f32
    %420 = vector.broadcast %cst_173 : f32 to vector<8x384xf32>
    %421 = arith.mulf %420, %419 : vector<8x384xf32>
    %422 = math.tanh %421 : vector<8x384xf32>
    %cst_174 = arith.constant 5.000000e-01 : f32
    %423 = vector.broadcast %cst_174 : f32 to vector<8x384xf32>
    %424 = arith.mulf %423, %422 : vector<8x384xf32>
    %cst_175 = arith.constant 5.000000e-01 : f32
    %425 = vector.broadcast %cst_175 : f32 to vector<8x384xf32>
    %426 = arith.addf %424, %425 : vector<8x384xf32>
    %427 = vector.extract_strided_slice %426 {offsets = [0, 0], sizes = [8, 128], strides = [1, 1]} : vector<8x384xf32> to vector<8x128xf32>
    %428 = vector.extract_strided_slice %426 {offsets = [0, 128], sizes = [8, 128], strides = [1, 1]} : vector<8x384xf32> to vector<8x128xf32>
    %429 = vector.extract_strided_slice %426 {offsets = [0, 256], sizes = [8, 128], strides = [1, 1]} : vector<8x384xf32> to vector<8x128xf32>
    %430 = vector.extract_strided_slice %418 {offsets = [0, 384], sizes = [8, 128], strides = [1, 1]} : vector<8x512xf32> to vector<8x128xf32>
    %431 = math.tanh %430 : vector<8x128xf32>
    %432 = arith.mulf %428, %381 : vector<8x128xf32>
    %433 = arith.mulf %427, %431 : vector<8x128xf32>
    %434 = arith.addf %432, %433 : vector<8x128xf32>
    %435 = math.tanh %434 : vector<8x128xf32>
    %436 = arith.mulf %429, %435 : vector<8x128xf32>
    %437 = arith.index_cast %c7_i32 : i32 to index
    %c0_176 = arith.constant 0 : index
    %c0_177 = arith.constant 0 : index
    %438 = vector.load %arg7[%437, %c0_176, %c0_177] : memref<8x8x128xf32, #tpu.memory_space<vmem>>, vector<1x8x128xf32>
    %439 = vector.shape_cast %438 : vector<1x8x128xf32> to vector<8x128xf32>
    %440 = vector.shape_cast %436 : vector<8x128xf32> to vector<1x8x128xf32>
    tpu.vector_store %arg7[%437, %c0_176, %c0_177], %440 {strides = array<i32>} : memref<8x8x128xf32, #tpu.memory_space<vmem>>, vector<1x8x128xf32>,
    %441 = arith.truncf %436 : vector<8x128xf32> to vector<8x128xbf16>
    %c0_178 = arith.constant 0 : index
    %c128_179 = arith.constant 128 : index
    %442 = vector.load %arg9[%c0_178, %c128_179] : memref<8x256xbf16, #tpu.memory_space<vmem>>, vector<8x128xbf16>
    tpu.vector_store %arg9[%c0_178, %c128_179], %441 {strides = array<i32>} : memref<8x256xbf16, #tpu.memory_space<vmem>>, vector<8x128xbf16>,
    %c8_i32 = arith.constant 8 : i32
    %c0_180 = arith.constant 0 : index
    %c0_181 = arith.constant 0 : index
    %443 = vector.load %arg10[%c0_180, %c0_181] : memref<8x128xf32, #tpu.memory_space<vmem>>, vector<8x128xf32>
    tpu.vector_store %arg10[%c0_180, %c0_181], %411 {strides = array<i32>} : memref<8x128xf32, #tpu.memory_space<vmem>>, vector<8x128xf32>,
    %c0_182 = arith.constant 0 : index
    %c0_183 = arith.constant 0 : index
    %444 = vector.load %arg11[%c0_182, %c0_183] : memref<8x128xf32, #tpu.memory_space<vmem>>, vector<8x128xf32>
    tpu.vector_store %arg11[%c0_182, %c0_183], %434 {strides = array<i32>} : memref<8x128xf32, #tpu.memory_space<vmem>>, vector<8x128xf32>,
    return
  }
  func.func @transform_0(%arg0: i32) -> (i32, i32, i32) {
    %c0_i32 = arith.constant 0 : i32
    %c0_i32_0 = arith.constant 0 : i32
    %c0_i32_1 = arith.constant 0 : i32
    return %arg0, %c0_i32, %c0_i32_0 : i32, i32, i32
  }
  func.func @transform_1(%arg0: i32) -> (i32, i32) {
    %c0_i32 = arith.constant 0 : i32
    %c0_i32_0 = arith.constant 0 : i32
    %c0_i32_1 = arith.constant 0 : i32
    return %c0_i32, %c0_i32_0 : i32, i32
  }
  func.func @transform_2(%arg0: i32) -> (i32, i32) {
    %c0_i32 = arith.constant 0 : i32
    %c0_i32_0 = arith.constant 0 : i32
    %c0_i32_1 = arith.constant 0 : i32
    return %c0_i32, %c0_i32_0 : i32, i32
  }
  func.func @transform_3(%arg0: i32) -> (i32, i32) {
    %c0_i32 = arith.constant 0 : i32
    %c0_i32_0 = arith.constant 0 : i32
    %c0_i32_1 = arith.constant 0 : i32
    return %c0_i32, %c0_i32_0 : i32, i32
  }
  func.func @transform_4(%arg0: i32) -> (i32, i32) {
    %c0_i32 = arith.constant 0 : i32
    %c0_i32_0 = arith.constant 0 : i32
    %c0_i32_1 = arith.constant 0 : i32
    return %c0_i32, %c0_i32_0 : i32, i32
  }
  func.func @transform_5(%arg0: i32) -> (i32, i32) {
    %c0_i32 = arith.constant 0 : i32
    %c0_i32_0 = arith.constant 0 : i32
    %c0_i32_1 = arith.constant 0 : i32
    return %c0_i32, %c0_i32_0 : i32, i32
  }
  func.func @transform_6(%arg0: i32) -> (i32, i32, i32) {
    %c0_i32 = arith.constant 0 : i32
    %c0_i32_0 = arith.constant 0 : i32
    %c0_i32_1 = arith.constant 0 : i32
    return %arg0, %c0_i32, %c0_i32_0 : i32, i32, i32
  }
}

</mosaic_0001>

<llo_original>
// kernel: lstm_classifier_forward.1
$region0: #{lstm_classifier_forward.1}
  #allocation0 [shape = 'u32[]', space=smem, size = 0x4, offset = 0x4, fixed_abs, tag = 'smem constant byte address 0x4 - core index']
  #allocation1 [shape = 'u32[144,128]{1,0:T(1,128)}', space=vmem, size = 0x12000, scoped, tag = 'internal scratch']
  #allocation2 [shape = 'f32[8,8,512]{2,1,0:T(8,128)}', space=vmem, size = 0x20000, scoped, tag = 'scratch operand']
  #allocation3 [shape = 'bf16[8,256]{1,0:T(8,128)(2,1)}', space=vmem, size = 0x1000, scoped, tag = 'scratch operand']
  #allocation4 [shape = 'f32[8,128]{1,0:T(8,128)}', space=vmem, size = 0x1000, scoped, tag = 'scratch operand']
  #allocation5 [shape = 'f32[8,128]{1,0:T(8,128)}', space=vmem, size = 0x1000, scoped, tag = 'scratch operand']
  %s0 = inlined_call_operand.vmem [shape: bf16[8,8,16], index: 0, kind: input, shape index: {}]
  %s1 = inlined_call_operand.vmem [shape: bf16[16,512], index: 1, kind: input, shape index: {}]
  %s2 = inlined_call_operand.vmem [shape: f32[1,512], index: 2, kind: input, shape index: {}]
  %s3 = inlined_call_operand.vmem [shape: bf16[128,512], index: 3, kind: input, shape index: {}]
  %s4 = inlined_call_operand.vmem [shape: bf16[256,512], index: 4, kind: input, shape index: {}]
  %s5 = inlined_call_operand.vmem [shape: f32[1,512], index: 5, kind: input, shape index: {}]
  %s6 = inlined_call_operand.vmem [shape: f32[8,8,128], index: 6, kind: output, shape index: {}]
  %s7 = sld [smem:[#allocation0]]
  $region38: #{lstm_classifier_forward.1} parent=0
    _
  %s9 = ssub.s32 1, %s7
  %s10 = scalar_select 0, %s9, %s7
  // Predicated region
  $region2: #{lstm_classifier_forward.1} parent=0 // pred_check
    _
  $region3: #{lstm_classifier_forward.1} parent=0 // pred_check_branch
    %12 = sbr.rel (0) target = $region5
  $region4: #{lstm_classifier_forward.1} parent=0 // pred_region
    _
  $region5: #{lstm_classifier_forward.1} parent=0 // pred_fallthru
    _
  // Predicated region
  $region6: #{lstm_classifier_forward.1} parent=0 // pred_check
    _
  $region7: #{lstm_classifier_forward.1} parent=0 // pred_check_branch
    %14 = sbr.rel (0) target = $region9
  $region8: #{lstm_classifier_forward.1} parent=0 // pred_region
    _
  $region9: #{lstm_classifier_forward.1} parent=0 // pred_fallthru
    _
  // Predicated region
  $region10: #{lstm_classifier_forward.1} parent=0 // pred_check
    _
  $region11: #{lstm_classifier_forward.1} parent=0 // pred_check_branch
    %16 = sbr.rel (0) target = $region13
  $region12: #{lstm_classifier_forward.1} parent=0 // pred_region
    _
  $region13: #{lstm_classifier_forward.1} parent=0 // pred_fallthru
    _
  // Predicated region
  $region14: #{lstm_classifier_forward.1} parent=0 // pred_check
    _
  $region15: #{lstm_classifier_forward.1} parent=0 // pred_check_branch
    %18 = sbr.rel (0) target = $region17
  $region16: #{lstm_classifier_forward.1} parent=0 // pred_region
    _
  $region17: #{lstm_classifier_forward.1} parent=0 // pred_fallthru
    _
  // Predicated region
  $region18: #{lstm_classifier_forward.1} parent=0 // pred_check
    _
  $region19: #{lstm_classifier_forward.1} parent=0 // pred_check_branch
    %20 = sbr.rel (0) target = $region21
  $region20: #{lstm_classifier_forward.1} parent=0 // pred_region
    _
  $region21: #{lstm_classifier_forward.1} parent=0 // pred_fallthru
    _
  // Predicated region
  $region22: #{lstm_classifier_forward.1} parent=0 // pred_check
    _
  $region23: #{lstm_classifier_forward.1} parent=0 // pred_check_branch
    %22 = sbr.rel (0) target = $region25
  $region24: #{lstm_classifier_forward.1} parent=0 // pred_region
    _
  $region25: #{lstm_classifier_forward.1} parent=0 // pred_fallthru
    _
  %p24 = scmp.eq.s32.totalorder 0, 0
  // Predicated region
  $region26: #{lstm_classifier_forward.1} parent=0 // pred_check
    %p25 = pneg %p24
  $region27: #{lstm_classifier_forward.1} parent=0 // pred_check_branch
    %27 = sbr.rel (%p25) target = $region29
  $region28: #{lstm_classifier_forward.1} parent=0 // pred_region
    %28 = vst [vmem:[#allocation3] sm:$0xff] 0
    %29 = vst [vmem:[#allocation4] sm:$0xff] 0.0
    %30 = vst [vmem:[#allocation5] sm:$0xff] 0.0
  $region29: #{lstm_classifier_forward.1} parent=0 // pred_fallthru
    _
  %v31 = vld [vmem:[%s0] sm:$0xf]
  %v32 = vld [vmem:[%s0 + $0x4] sm:$0xf]
  %v33 = vld [vmem:[%s0 + $0x8] sm:$0xf]
  %v34 = vld [vmem:[%s0 + $0xc] sm:$0xf]
  %v35 = vld [vmem:[%s0 + $0x10] sm:$0xf]
  %v36 = vld [vmem:[%s0 + $0x14] sm:$0xf]
  %v37 = vld [vmem:[%s0 + $0x18] sm:$0xf]
  %v38 = vld [vmem:[%s0 + $0x1c] sm:$0xf]
  %v39 = vld [vmem:[%s1] sm:$0xff]
  %v40 = vld [vmem:[%s1 + $0x8] sm:$0xff]
  %v41 = vld [vmem:[%s1 + $0x10] sm:$0xff]
  %v42 = vld [vmem:[%s1 + $0x18] sm:$0xff]
  %v43 = vld [vmem:[%s2] sm:$0xf]
  %v45 = vlaneseq
  %v46 = vshrl.u32 %v45, 7
  %v47 = vsub.s32 0, %v46
  %v48 = vrot.slane %v43, %v47
  %v49 = vlaneseq
  %v50 = vshrl.u32 %v49, 7
  %v51 = vsub.s32 1, %v50
  %v52 = vrot.slane %v43, %v51
  %v53 = vlaneseq
  %v54 = vshrl.u32 %v53, 7
  %v55 = vsub.s32 2, %v54
  %v56 = vrot.slane %v43, %v55
  %v57 = vlaneseq
  %v58 = vshrl.u32 %v57, 7
  %v59 = vsub.s32 3, %v58
  %v60 = vrot.slane %v43, %v59
  %v73 = vunpack.c.l.b16 %v31
  %v74 = vunpack.c.l.b16 %v32
  %v75 = vunpack.c.l.b16 %v33
  %v76 = vunpack.c.l.b16 %v34
  %v77 = vunpack.c.l.b16 %v35
  %v78 = vunpack.c.l.b16 %v36
  %v79 = vunpack.c.l.b16 %v37
  %v80 = vunpack.c.l.b16 %v38
  %v81 = vpack.c.b16 %v74, %v73
  %v82 = vpack.c.b16 %v76, %v75
  %v83 = vpack.c.b16 %v78, %v77
  %v84 = vpack.c.b16 %v80, %v79
  %v89 = vunpack.c.l.b16 %v39
  %v90 = vunpack.c.h.b16 %v39
  %v91 = vunpack.c.l.b16 %v40
  %v92 = vunpack.c.h.b16 %v40
  %v93 = vunpack.c.l.b16 %v41
  %v94 = vunpack.c.h.b16 %v41
  %v95 = vunpack.c.l.b16 %v42
  %v96 = vunpack.c.h.b16 %v42
  %v97 = vpack.c.b16 %v93, %v89
  %v98 = vpack.c.b16 %v94, %v90
  %v99 = vpack.c.b16 %v95, %v91
  %v100 = vpack.c.b16 %v96, %v92
  %vm105 = vcmask 130048
  %v107 = vsel %vm105, %v81, 0
  %v110 = vsel %vm105, %v82, 0
  %v113 = vsel %vm105, %v83, 0
  %v116 = vsel %vm105, %v84, 0
  %118 = vmatprep.subr.bf16.mxu0 %v98
  %119 = vmatpush1.bf16.msra.mxu0 %v97
  %120 = vmatprep.subr.bf16.mxu0 0
  %121 = vmatpush1.bf16.msra.mxu0 0
  %122 = vmatprep.subr.bf16.mxu0 0
  %123 = vmatpush1.bf16.msra.mxu0 0
  %124 = vmatprep.subr.bf16.mxu0 0
  %125 = vmatpush1.bf16.msra.mxu0 0
  %126 = vmatprep.subr.bf16.mxu0 0
  %127 = vmatpush1.bf16.msra.mxu0 0
  %128 = vmatprep.subr.bf16.mxu0 0
  %129 = vmatpush1.bf16.msra.mxu0 0
  %130 = vmatprep.subr.bf16.mxu0 0
  %131 = vmatpush1.bf16.msra.mxu0 0
  %132 = vmatprep.subr.bf16.mxu0 0
  %133 = vmatpush1.bf16.msra.mxu0 0
  %134 = vmatprep.subr.bf16.mxu0 0
  %135 = vmatpush1.bf16.msra.mxu0 0
  %136 = vmatprep.subr.bf16.mxu0 0
  %137 = vmatpush1.bf16.msra.mxu0 0
  %138 = vmatprep.subr.bf16.mxu0 0
  %139 = vmatpush1.bf16.msra.mxu0 0
  %140 = vmatprep.subr.bf16.mxu0 0
  %141 = vmatpush1.bf16.msra.mxu0 0
  %142 = vmatprep.subr.bf16.mxu0 0
  %143 = vmatpush1.bf16.msra.mxu0 0
  %144 = vmatprep.subr.bf16.mxu0 0
  %145 = vmatpush1.bf16.msra.mxu0 0
  %146 = vmatprep.subr.bf16.mxu0 0
  %147 = vmatpush1.bf16.msra.mxu0 0
  %148 = vmatprep.subr.bf16.mxu0 0
  %149 = vmatpush1.bf16.msra.mxu0 0
  %150 = vmatprep.mubr.bf16.mxu0 0
  %151 = vmatmul.mubr.bf16.gmra.mrb[0].mxu0 %v107
  %v152 = vpop.f32.mrb[0].mxu0
  %v153 = vadd.f32 %v48, %v152
  %v154 = vpop.f32.mrb[0].mxu0
  %v155 = vadd.f32 %v52, %v154
  %v156 = vpop.f32.mrb[0].mxu0
  %v157 = vadd.f32 %v48, %v156
  %v158 = vpop.f32.mrb[0].mxu0
  %v159 = vadd.f32 %v52, %v158
  %160 = vmatprep.mubr.bf16.mxu0 0
  %161 = vmatmul.mubr.bf16.gmra.mrb[0].mxu0 %v110
  %v162 = vpop.f32.mrb[0].mxu0
  %v163 = vadd.f32 %v48, %v162
  %v164 = vpop.f32.mrb[0].mxu0
  %v165 = vadd.f32 %v52, %v164
  %v166 = vpop.f32.mrb[0].mxu0
  %v167 = vadd.f32 %v48, %v166
  %v168 = vpop.f32.mrb[0].mxu0
  %v169 = vadd.f32 %v52, %v168
  %170 = vmatprep.mubr.bf16.mxu0 0
  %171 = vmatmul.mubr.bf16.gmra.mrb[0].mxu0 %v113
  %v172 = vpop.f32.mrb[0].mxu0
  %v173 = vadd.f32 %v48, %v172
  %v174 = vpop.f32.mrb[0].mxu0
  %v175 = vadd.f32 %v52, %v174
  %v176 = vpop.f32.mrb[0].mxu0
  %v177 = vadd.f32 %v48, %v176
  %v178 = vpop.f32.mrb[0].mxu0
  %v179 = vadd.f32 %v52, %v178
  %180 = vmatprep.mubr.bf16.mxu0 0
  %181 = vmatmul.mubr.bf16.gmra.mrb[0].mxu0 %v116
  %v182 = vpop.f32.mrb[0].mxu0
  %v183 = vadd.f32 %v48, %v182
  %v184 = vpop.f32.mrb[0].mxu0
  %v185 = vadd.f32 %v52, %v184
  %v186 = vpop.f32.mrb[0].mxu0
  %v187 = vadd.f32 %v48, %v186
  %v188 = vpop.f32.mrb[0].mxu0
  %v189 = vadd.f32 %v52, %v188
  %190 = vdwg.mxu0
  %191 = vmatprep.subr.bf16.mxu0 %v100
  %192 = vmatpush1.bf16.msra.mxu0 %v99
  %193 = vmatprep.subr.bf16.mxu0 0
  %194 = vmatpush1.bf16.msra.mxu0 0
  %195 = vmatprep.subr.bf16.mxu0 0
  %196 = vmatpush1.bf16.msra.mxu0 0
  %197 = vmatprep.subr.bf16.mxu0 0
  %198 = vmatpush1.bf16.msra.mxu0 0
  %199 = vmatprep.subr.bf16.mxu0 0
  %200 = vmatpush1.bf16.msra.mxu0 0
  %201 = vmatprep.subr.bf16.mxu0 0
  %202 = vmatpush1.bf16.msra.mxu0 0
  %203 = vmatprep.subr.bf16.mxu0 0
  %204 = vmatpush1.bf16.msra.mxu0 0
  %205 = vmatprep.subr.bf16.mxu0 0
  %206 = vmatpush1.bf16.msra.mxu0 0
  %207 = vmatprep.subr.bf16.mxu0 0
  %208 = vmatpush1.bf16.msra.mxu0 0
  %209 = vmatprep.subr.bf16.mxu0 0
  %210 = vmatpush1.bf16.msra.mxu0 0
  %211 = vmatprep.subr.bf16.mxu0 0
  %212 = vmatpush1.bf16.msra.mxu0 0
  %213 = vmatprep.subr.bf16.mxu0 0
  %214 = vmatpush1.bf16.msra.mxu0 0
  %215 = vmatprep.subr.bf16.mxu0 0
  %216 = vmatpush1.bf16.msra.mxu0 0
  %217 = vmatprep.subr.bf16.mxu0 0
  %218 = vmatpush1.bf16.msra.mxu0 0
  %219 = vmatprep.subr.bf16.mxu0 0
  %220 = vmatpush1.bf16.msra.mxu0 0
  %221 = vmatprep.subr.bf16.mxu0 0
  %222 = vmatpush1.bf16.msra.mxu0 0
  %223 = vmatprep.mubr.bf16.mxu0 0
  %224 = vmatmul.mubr.bf16.gmra.mrb[0].mxu0 %v107
  %v225 = vpop.f32.mrb[0].mxu0
  %v226 = vadd.f32 %v56, %v225
  %v227 = vpop.f32.mrb[0].mxu0
  %v228 = vadd.f32 %v60, %v227
  %v229 = vpop.f32.mrb[0].mxu0
  %v230 = vadd.f32 %v56, %v229
  %v231 = vpop.f32.mrb[0].mxu0
  %v232 = vadd.f32 %v60, %v231
  %233 = vmatprep.mubr.bf16.mxu0 0
  %234 = vmatmul.mubr.bf16.gmra.mrb[0].mxu0 %v110
  %v235 = vpop.f32.mrb[0].mxu0
  %v236 = vadd.f32 %v56, %v235
  %v237 = vpop.f32.mrb[0].mxu0
  %v238 = vadd.f32 %v60, %v237
  %v239 = vpop.f32.mrb[0].mxu0
  %v240 = vadd.f32 %v56, %v239
  %v241 = vpop.f32.mrb[0].mxu0
  %v242 = vadd.f32 %v60, %v241
  %243 = vmatprep.mubr.bf16.mxu0 0
  %244 = vmatmul.mubr.bf16.gmra.mrb[0].mxu0 %v113
  %v245 = vpop.f32.mrb[0].mxu0
  %v246 = vadd.f32 %v56, %v245
  %v247 = vpop.f32.mrb[0].mxu0
  %v248 = vadd.f32 %v60, %v247
  %v249 = vpop.f32.mrb[0].mxu0
  %v250 = vadd.f32 %v56, %v249
  %v251 = vpop.f32.mrb[0].mxu0
  %v252 = vadd.f32 %v60, %v251
  %253 = vmatprep.mubr.bf16.mxu0 0
  %254 = vmatmul.mubr.bf16.gmra.mrb[0].mxu0 %v116
  %v255 = vpop.f32.mrb[0].mxu0
  %v256 = vadd.f32 %v56, %v255
  %v257 = vpop.f32.mrb[0].mxu0
  %v258 = vadd.f32 %v60, %v257
  %v259 = vpop.f32.mrb[0].mxu0
  %v260 = vadd.f32 %v56, %v259
  %v261 = vpop.f32.mrb[0].mxu0
  %v262 = vadd.f32 %v60, %v261
  %263 = vdwg.mxu0
  %264 = vst [vmem:[#allocation2] sm:$0xff] %v153
  %265 = vst [vmem:[#allocation2 + $0x8] sm:$0xff] %v155
  %266 = vst [vmem:[#allocation2 + $0x10] sm:$0xff] %v226
  %267 = vst [vmem:[#allocation2 + $0x18] sm:$0xff] %v228
  %268 = vst [vmem:[#allocation2 + $0x20] sm:$0xff] %v157
  %269 = vst [vmem:[#allocation2 + $0x28] sm:$0xff] %v159
  %270 = vst [vmem:[#allocation2 + $0x30] sm:$0xff] %v230
  %271 = vst [vmem:[#allocation2 + $0x38] sm:$0xff] %v232
  %272 = vst [vmem:[#allocation2 + $0x40] sm:$0xff] %v163
  %273 = vst [vmem:[#allocation2 + $0x48] sm:$0xff] %v165
  %274 = vst [vmem:[#allocation2 + $0x50] sm:$0xff] %v236
  %275 = vst [vmem:[#allocation2 + $0x58] sm:$0xff] %v238
  %276 = vst [vmem:[#allocation2 + $0x60] sm:$0xff] %v167
  %277 = vst [vmem:[#allocation2 + $0x68] sm:$0xff] %v169
  %278 = vst [vmem:[#allocation2 + $0x70] sm:$0xff] %v240
  %279 = vst [vmem:[#allocation2 + $0x78] sm:$0xff] %v242
  %280 = vst [vmem:[#allocation2 + $0x80] sm:$0xff] %v173
  %281 = vst [vmem:[#allocation2 + $0x88] sm:$0xff] %v175
  %282 = vst [vmem:[#allocation2 + $0x90] sm:$0xff] %v246
  %283 = vst [vmem:[#allocation2 + $0x98] sm:$0xff] %v248
  %284 = vst [vmem:[#allocation2 + $0xa0] sm:$0xff] %v177
  %285 = vst [vmem:[#allocation2 + $0xa8] sm:$0xff] %v179
  %286 = vst [vmem:[#allocation2 + $0xb0] sm:$0xff] %v250
  %287 = vst [vmem:[#allocation2 + $0xb8] sm:$0xff] %v252
  %288 = vst [vmem:[#allocation2 + $0xc0] sm:$0xff] %v183
  %289 = vst [vmem:[#allocation2 + $0xc8] sm:$0xff] %v185
  %290 = vst [vmem:[#allocation2 + $0xd0] sm:$0xff] %v256
  %291 = vst [vmem:[#allocation2 + $0xd8] sm:$0xff] %v258
  %292 = vst [vmem:[#allocation2 + $0xe0] sm:$0xff] %v187
  %293 = vst [vmem:[#allocation2 + $0xe8] sm:$0xff] %v189
  %294 = vst [vmem:[#allocation2 + $0xf0] sm:$0xff] %v260
  %295 = vst [vmem:[#allocation2 + $0xf8] sm:$0xff] %v262
  %v296 = vld [vmem:[%s3] sm:$0xff]
  %v297 = vld [vmem:[%s3 + $0x8] sm:$0xff]
  %v298 = vld [vmem:[%s3 + $0x10] sm:$0xff]
  %v299 = vld [vmem:[%s3 + $0x18] sm:$0xff]
  %v300 = vld [vmem:[%s3 + $0x20] sm:$0xff]
  %v301 = vld [vmem:[%s3 + $0x28] sm:$0xff]
  %v302 = vld [vmem:[%s3 + $0x30] sm:$0xff]
  %v303 = vld [vmem:[%s3 + $0x38] sm:$0xff]
  %v304 = vld [vmem:[%s3 + $0x40] sm:$0xff]
  %v305 = vld [vmem:[%s3 + $0x48] sm:$0xff]
  %v306 = vld [vmem:[%s3 + $0x50] sm:$0xff]
  %v307 = vld [vmem:[%s3 + $0x58] sm:$0xff]
  %v308 = vld [vmem:[%s3 + $0x60] sm:$0xff]
  %v309 = vld [vmem:[%s3 + $0x68] sm:$0xff]
  %v310 = vld [vmem:[%s3 + $0x70] sm:$0xff]
  %v311 = vld [vmem:[%s3 + $0x78] sm:$0xff]
  %v312 = vld [vmem:[%s3 + $0x80] sm:$0xff]
  %v313 = vld [vmem:[%s3 + $0x88] sm:$0xff]
  %v314 = vld [vmem:[%s3 + $0x90] sm:$0xff]
  %v315 = vld [vmem:[%s3 + $0x98] sm:$0xff]
  %v316 = vld [vmem:[%s3 + $0xa0] sm:$0xff]
  %v317 = vld [vmem:[%s3 + $0xa8] sm:$0xff]
  %v318 = vld [vmem:[%s3 + $0xb0] sm:$0xff]
  %v319 = vld [vmem:[%s3 + $0xb8] sm:$0xff]
  %v320 = vld [vmem:[%s3 + $0xc0] sm:$0xff]
  %v321 = vld [vmem:[%s3 + $0xc8] sm:$0xff]
  %v322 = vld [vmem:[%s3 + $0xd0] sm:$0xff]
  %v323 = vld [vmem:[%s3 + $0xd8] sm:$0xff]
  %v324 = vld [vmem:[%s3 + $0xe0] sm:$0xff]
  %v325 = vld [vmem:[%s3 + $0xe8] sm:$0xff]
  %v326 = vld [vmem:[%s3 + $0xf0] sm:$0xff]
  %v327 = vld [vmem:[%s3 + $0xf8] sm:$0xff]
  %v328 = vld [vmem:[%s4] sm:$0xff]
  %v329 = vld [vmem:[%s4 + $0x8] sm:$0xff]
  %v330 = vld [vmem:[%s4 + $0x10] sm:$0xff]
  %v331 = vld [vmem:[%s4 + $0x18] sm:$0xff]
  %v332 = vld [vmem:[%s4 + $0x20] sm:$0xff]
  %v333 = vld [vmem:[%s4 + $0x28] sm:$0xff]
  %v334 = vld [vmem:[%s4 + $0x30] sm:$0xff]
  %v335 = vld [vmem:[%s4 + $0x38] sm:$0xff]
  %v336 = vld [vmem:[%s4 + $0x40] sm:$0xff]
  %v337 = vld [vmem:[%s4 + $0x48] sm:$0xff]
  %v338 = vld [vmem:[%s4 + $0x50] sm:$0xff]
  %v339 = vld [vmem:[%s4 + $0x58] sm:$0xff]
  %v340 = vld [vmem:[%s4 + $0x60] sm:$0xff]
  %v341 = vld [vmem:[%s4 + $0x68] sm:$0xff]
  %v342 = vld [vmem:[%s4 + $0x70] sm:$0xff]
  %v343 = vld [vmem:[%s4 + $0x78] sm:$0xff]
  %v344 = vld [vmem:[%s4 + $0x80] sm:$0xff]
  %v345 = vld [vmem:[%s4 + $0x88] sm:$0xff]
  %v346 = vld [vmem:[%s4 + $0x90] sm:$0xff]
  %v347 = vld [vmem:[%s4 + $0x98] sm:$0xff]
  %v348 = vld [vmem:[%s4 + $0xa0] sm:$0xff]
  %v349 = vld [vmem:[%s4 + $0xa8] sm:$0xff]
  %v350 = vld [vmem:[%s4 + $0xb0] sm:$0xff]
  %v351 = vld [vmem:[%s4 + $0xb8] sm:$0xff]
  %v352 = vld [vmem:[%s4 + $0xc0] sm:$0xff]
  %v353 = vld [vmem:[%s4 + $0xc8] sm:$0xff]
  %v354 = vld [vmem:[%s4 + $0xd0] sm:$0xff]
  %v355 = vld [vmem:[%s4 + $0xd8] sm:$0xff]
  %v356 = vld [vmem:[%s4 + $0xe0] sm:$0xff]
  %v357 = vld [vmem:[%s4 + $0xe8] sm:$0xff]
  %v358 = vld [vmem:[%s4 + $0xf0] sm:$0xff]
  %v359 = vld [vmem:[%s4 + $0xf8] sm:$0xff]
  %v360 = vld [vmem:[%s4 + $0x100] sm:$0xff]
  %v361 = vld [vmem:[%s4 + $0x108] sm:$0xff]
  %v362 = vld [vmem:[%s4 + $0x110] sm:$0xff]
  %v363 = vld [vmem:[%s4 + $0x118] sm:$0xff]
  %v364 = vld [vmem:[%s4 + $0x120] sm:$0xff]
  %v365 = vld [vmem:[%s4 + $0x128] sm:$0xff]
  %v366 = vld [vmem:[%s4 + $0x130] sm:$0xff]
  %v367 = vld [vmem:[%s4 + $0x138] sm:$0xff]
  %v368 = vld [vmem:[%s4 + $0x140] sm:$0xff]
  %v369 = vld [vmem:[%s4 + $0x148] sm:$0xff]
  %v370 = vld [vmem:[%s4 + $0x150] sm:$0xff]
  %v371 = vld [vmem:[%s4 + $0x158] sm:$0xff]
  %v372 = vld [vmem:[%s4 + $0x160] sm:$0xff]
  %v373 = vld [vmem:[%s4 + $0x168] sm:$0xff]
  %v374 = vld [vmem:[%s4 + $0x170] sm:$0xff]
  %v375 = vld [vmem:[%s4 + $0x178] sm:$0xff]
  %v376 = vld [vmem:[%s4 + $0x180] sm:$0xff]
  %v377 = vld [vmem:[%s4 + $0x188] sm:$0xff]
  %v378 = vld [vmem:[%s4 + $0x190] sm:$0xff]
  %v379 = vld [vmem:[%s4 + $0x198] sm:$0xff]
  %v380 = vld [vmem:[%s4 + $0x1a0] sm:$0xff]
  %v381 = vld [vmem:[%s4 + $0x1a8] sm:$0xff]
  %v382 = vld [vmem:[%s4 + $0x1b0] sm:$0xff]
  %v383 = vld [vmem:[%s4 + $0x1b8] sm:$0xff]
  %v384 = vld [vmem:[%s4 + $0x1c0] sm:$0xff]
  %v385 = vld [vmem:[%s4 + $0x1c8] sm:$0xff]
  %v386 = vld [vmem:[%s4 + $0x1d0] sm:$0xff]
  %v387 = vld [vmem:[%s4 + $0x1d8] sm:$0xff]
  %v388 = vld [vmem:[%s4 + $0x1e0] sm:$0xff]
  %v389 = vld [vmem:[%s4 + $0x1e8] sm:$0xff]
  %v390 = vld [vmem:[%s4 + $0x1f0] sm:$0xff]
  %v391 = vld [vmem:[%s4 + $0x1f8] sm:$0xff]
  %v392 = vld [vmem:[%s5] sm:$0xf]
  %v394 = vlaneseq
  %v395 = vshrl.u32 %v394, 7
  %v396 = vsub.s32 0, %v395
  %v397 = vrot.slane %v392, %v396
  %v398 = vlaneseq
  %v399 = vshrl.u32 %v398, 7
  %v400 = vsub.s32 1, %v399
  %v401 = vrot.slane %v392, %v400
  %v402 = vlaneseq
  %v403 = vshrl.u32 %v402, 7
  %v404 = vsub.s32 2, %v403
  %v405 = vrot.slane %v392, %v404
  %v406 = vlaneseq
  %v407 = vshrl.u32 %v406, 7
  %v408 = vsub.s32 3, %v407
  %v409 = vrot.slane %v392, %v408
  %v414 = vld [vmem:[#allocation4] sm:$0xff]
  %v415 = vld [vmem:[#allocation5] sm:$0xff]
  %v416 = vld [vmem:[#allocation3] sm:$0xf]
  %v417 = vld [vmem:[#allocation2] sm:$0xff]
  %v418 = vld [vmem:[#allocation2 + $0x8] sm:$0xff]
  %v419 = vld [vmem:[#allocation2 + $0x10] sm:$0xff]
  %v420 = vld [vmem:[#allocation2 + $0x18] sm:$0xff]
  %v453 = vunpack.c.l.b16 %v296
  %v454 = vunpack.c.h.b16 %v296
  %v455 = vunpack.c.l.b16 %v297
  %v456 = vunpack.c.h.b16 %v297
  %v457 = vunpack.c.l.b16 %v298
  %v458 = vunpack.c.h.b16 %v298
  %v459 = vunpack.c.l.b16 %v299
  %v460 = vunpack.c.h.b16 %v299
  %v461 = vunpack.c.l.b16 %v300
  %v462 = vunpack.c.h.b16 %v300
  %v463 = vunpack.c.l.b16 %v301
  %v464 = vunpack.c.h.b16 %v301
  %v465 = vunpack.c.l.b16 %v302
  %v466 = vunpack.c.h.b16 %v302
  %v467 = vunpack.c.l.b16 %v303
  %v468 = vunpack.c.h.b16 %v303
  %v469 = vunpack.c.l.b16 %v304
  %v470 = vunpack.c.h.b16 %v304
  %v471 = vunpack.c.l.b16 %v305
  %v472 = vunpack.c.h.b16 %v305
  %v473 = vunpack.c.l.b16 %v306
  %v474 = vunpack.c.h.b16 %v306
  %v475 = vunpack.c.l.b16 %v307
  %v476 = vunpack.c.h.b16 %v307
  %v477 = vunpack.c.l.b16 %v308
  %v478 = vunpack.c.h.b16 %v308
  %v479 = vunpack.c.l.b16 %v309
  %v480 = vunpack.c.h.b16 %v309
  %v481 = vunpack.c.l.b16 %v310
  %v482 = vunpack.c.h.b16 %v310
  %v483 = vunpack.c.l.b16 %v311
  %v484 = vunpack.c.h.b16 %v311
  %v485 = vunpack.c.l.b16 %v312
  %v486 = vunpack.c.h.b16 %v312
  %v487 = vunpack.c.l.b16 %v313
  %v488 = vunpack.c.h.b16 %v313
  %v489 = vunpack.c.l.b16 %v314
  %v490 = vunpack.c.h.b16 %v314
  %v491 = vunpack.c.l.b16 %v315
  %v492 = vunpack.c.h.b16 %v315
  %v493 = vunpack.c.l.b16 %v316
  %v494 = vunpack.c.h.b16 %v316
  %v495 = vunpack.c.l.b16 %v317
  %v496 = vunpack.c.h.b16 %v317
  %v497 = vunpack.c.l.b16 %v318
  %v498 = vunpack.c.h.b16 %v318
  %v499 = vunpack.c.l.b16 %v319
  %v500 = vunpack.c.h.b16 %v319
  %v501 = vunpack.c.l.b16 %v320
  %v502 = vunpack.c.h.b16 %v320
  %v503 = vunpack.c.l.b16 %v321
  %v504 = vunpack.c.h.b16 %v321
  %v505 = vunpack.c.l.b16 %v322
  %v506 = vunpack.c.h.b16 %v322
  %v507 = vunpack.c.l.b16 %v323
  %v508 = vunpack.c.h.b16 %v323
  %v509 = vunpack.c.l.b16 %v324
  %v510 = vunpack.c.h.b16 %v324
  %v511 = vunpack.c.l.b16 %v325
  %v512 = vunpack.c.h.b16 %v325
  %v513 = vunpack.c.l.b16 %v326
  %v514 = vunpack.c.h.b16 %v326
  %v515 = vunpack.c.l.b16 %v327
  %v516 = vunpack.c.h.b16 %v327
  %v517 = vpack.c.b16 %v457, %v453
  %v518 = vpack.c.b16 %v458, %v454
  %v519 = vpack.c.b16 %v459, %v455
  %v520 = vpack.c.b16 %v460, %v456
  %v521 = vpack.c.b16 %v465, %v461
  %v522 = vpack.c.b16 %v466, %v462
  %v523 = vpack.c.b16 %v467, %v463
  %v524 = vpack.c.b16 %v468, %v464
  %v525 = vpack.c.b16 %v473, %v469
  %v526 = vpack.c.b16 %v474, %v470
  %v527 = vpack.c.b16 %v475, %v471
  %v528 = vpack.c.b16 %v476, %v472
  %v529 = vpack.c.b16 %v481, %v477
  %v530 = vpack.c.b16 %v482, %v478
  %v531 = vpack.c.b16 %v483, %v479
  %v532 = vpack.c.b16 %v484, %v480
  %v533 = vpack.c.b16 %v489, %v485
  %v534 = vpack.c.b16 %v490, %v486
  %v535 = vpack.c.b16 %v491, %v487
  %v536 = vpack.c.b16 %v492, %v488
  %v537 = vpack.c.b16 %v497, %v493
  %v538 = vpack.c.b16 %v498, %v494
  %v539 = vpack.c.b16 %v499, %v495
  %v540 = vpack.c.b16 %v500, %v496
  %v541 = vpack.c.b16 %v505, %v501
  %v542 = vpack.c.b16 %v506, %v502
  %v543 = vpack.c.b16 %v507, %v503
  %v544 = vpack.c.b16 %v508, %v504
  %v545 = vpack.c.b16 %v513, %v509
  %v546 = vpack.c.b16 %v514, %v510
  %v547 = vpack.c.b16 %v515, %v511
  %v548 = vpack.c.b16 %v516, %v512
  %581 = vmatprep.subr.bf16.mxu0 %v518
  %582 = vmatpush1.bf16.msra.mxu0 %v517
  %583 = vmatprep.subr.bf16.mxu0 %v522
  %584 = vmatpush1.bf16.msra.mxu0 %v521
  %585 = vmatprep.subr.bf16.mxu0 %v526
  %586 = vmatpush1.bf16.msra.mxu0 %v525
  %587 = vmatprep.subr.bf16.mxu0 %v530
  %588 = vmatpush1.bf16.msra.mxu0 %v529
  %589 = vmatprep.subr.bf16.mxu0 %v534
  %590 = vmatpush1.bf16.msra.mxu0 %v533
  %591 = vmatprep.subr.bf16.mxu0 %v538
  %592 = vmatpush1.bf16.msra.mxu0 %v537
  %593 = vmatprep.subr.bf16.mxu0 %v542
  %594 = vmatpush1.bf16.msra.mxu0 %v541
  %595 = vmatprep.subr.bf16.mxu0 %v546
  %596 = vmatpush1.bf16.msra.mxu0 %v545
  %597 = vmatprep.subr.bf16.mxu0 0
  %598 = vmatpush1.bf16.msra.mxu0 0
  %599 = vmatprep.subr.bf16.mxu0 0
  %600 = vmatpush1.bf16.msra.mxu0 0
  %601 = vmatprep.subr.bf16.mxu0 0
  %602 = vmatpush1.bf16.msra.mxu0 0
  %603 = vmatprep.subr.bf16.mxu0 0
  %604 = vmatpush1.bf16.msra.mxu0 0
  %605 = vmatprep.subr.bf16.mxu0 0
  %606 = vmatpush1.bf16.msra.mxu0 0
  %607 = vmatprep.subr.bf16.mxu0 0
  %608 = vmatpush1.bf16.msra.mxu0 0
  %609 = vmatprep.subr.bf16.mxu0 0
  %610 = vmatpush1.bf16.msra.mxu0 0
  %611 = vmatprep.subr.bf16.mxu0 0
  %612 = vmatpush1.bf16.msra.mxu0 0
  %613 = vmatprep.mubr.bf16.mxu0 0
  %614 = vmatmul.mubr.bf16.gmra.mrb[0].mxu0 %v416
  %v615 = vpop.f32.mrb[0].mxu0
  %v616 = vadd.f32 0.0, %v615
  %v617 = vpop.f32.mrb[0].mxu0
  %v618 = vadd.f32 0.0, %v617
  %v619 = vpop.f32.mrb[0].mxu0
  %v620 = vpop.f32.mrb[0].mxu0
  %621 = vdwg.mxu0
  %622 = vmatprep.subr.bf16.mxu0 %v520
  %623 = vmatpush1.bf16.msra.mxu0 %v519
  %624 = vmatprep.subr.bf16.mxu0 %v524
  %625 = vmatpush1.bf16.msra.mxu0 %v523
  %626 = vmatprep.subr.bf16.mxu0 %v528
  %627 = vmatpush1.bf16.msra.mxu0 %v527
  %628 = vmatprep.subr.bf16.mxu0 %v532
  %629 = vmatpush1.bf16.msra.mxu0 %v531
  %630 = vmatprep.subr.bf16.mxu0 %v536
  %631 = vmatpush1.bf16.msra.mxu0 %v535
  %632 = vmatprep.subr.bf16.mxu0 %v540
  %633 = vmatpush1.bf16.msra.mxu0 %v539
  %634 = vmatprep.subr.bf16.mxu0 %v544
  %635 = vmatpush1.bf16.msra.mxu0 %v543
  %636 = vmatprep.subr.bf16.mxu0 %v548
  %637 = vmatpush1.bf16.msra.mxu0 %v547
  %638 = vmatprep.subr.bf16.mxu0 0
  %639 = vmatpush1.bf16.msra.mxu0 0
  %640 = vmatprep.subr.bf16.mxu0 0
  %641 = vmatpush1.bf16.msra.mxu0 0
  %642 = vmatprep.subr.bf16.mxu0 0
  %643 = vmatpush1.bf16.msra.mxu0 0
  %644 = vmatprep.subr.bf16.mxu0 0
  %645 = vmatpush1.bf16.msra.mxu0 0
  %646 = vmatprep.subr.bf16.mxu0 0
  %647 = vmatpush1.bf16.msra.mxu0 0
  %648 = vmatprep.subr.bf16.mxu0 0
  %649 = vmatpush1.bf16.msra.mxu0 0
  %650 = vmatprep.subr.bf16.mxu0 0
  %651 = vmatpush1.bf16.msra.mxu0 0
  %652 = vmatprep.subr.bf16.mxu0 0
  %653 = vmatpush1.bf16.msra.mxu0 0
  %654 = vmatprep.mubr.bf16.mxu0 0
  %655 = vmatmul.mubr.bf16.gmra.mrb[0].mxu0 %v416
  %v656 = vpop.f32.mrb[0].mxu0
  %v657 = vadd.f32 0.0, %v656
  %v658 = vpop.f32.mrb[0].mxu0
  %v659 = vadd.f32 0.0, %v658
  %v660 = vpop.f32.mrb[0].mxu0
  %v661 = vpop.f32.mrb[0].mxu0
  %662 = vdwg.mxu0
  %v663 = vadd.f32 %v417, %v616
  %v664 = vadd.f32 %v418, %v618
  %v665 = vadd.f32 %v419, %v657
  %v666 = vadd.f32 %v420, %v659
  %v667 = vmul.f32 %v663, 0.5
  %v668 = vmul.f32 %v664, 0.5
  %v669 = vmul.f32 %v665, 0.5
  %v670 = vtanh.pop %v667
  %v671 = vtanh.pop %v668
  %v672 = vtanh.pop %v669
  %v673 = vmul.f32 %v670, 0.5
  %v674 = vmul.f32 %v671, 0.5
  %v675 = vmul.f32 %v672, 0.5
  %v676 = vadd.f32 %v673, 0.5
  %v677 = vadd.f32 %v674, 0.5
  %v678 = vadd.f32 %v675, 0.5
  %v679 = vtanh.pop %v666
  %v680 = vmul.f32 %v677, %v414
  %v681 = vmul.f32 %v676, %v679
  %v682 = vadd.f32 %v680, %v681
  %v683 = vtanh.pop %v682
  %v684 = vmul.f32 %v678, %v683
  %v685 = vpack.c.bf16 %v684, %v684
  %686 = vst [vmem:[#allocation3] sm:$0xf] %v685
  %v687 = vld [vmem:[#allocation3] sm:$0xff]
  %v689 = vunpack.c.l.b16 %v687
  %v690 = vunpack.c.h.b16 %v687
  %v691 = vpack.c.b16 %v689, %v689
  %v692 = vpack.c.b16 %v690, %v690
  %v759 = vunpack.c.l.b16 %v328
  %v760 = vunpack.c.h.b16 %v328
  %v761 = vunpack.c.l.b16 %v329
  %v762 = vunpack.c.h.b16 %v329
  %v763 = vunpack.c.l.b16 %v330
  %v764 = vunpack.c.h.b16 %v330
  %v765 = vunpack.c.l.b16 %v331
  %v766 = vunpack.c.h.b16 %v331
  %v767 = vunpack.c.l.b16 %v332
  %v768 = vunpack.c.h.b16 %v332
  %v769 = vunpack.c.l.b16 %v333
  %v770 = vunpack.c.h.b16 %v333
  %v771 = vunpack.c.l.b16 %v334
  %v772 = vunpack.c.h.b16 %v334
  %v773 = vunpack.c.l.b16 %v335
  %v774 = vunpack.c.h.b16 %v335
  %v775 = vunpack.c.l.b16 %v336
  %v776 = vunpack.c.h.b16 %v336
  %v777 = vunpack.c.l.b16 %v337
  %v778 = vunpack.c.h.b16 %v337
  %v779 = vunpack.c.l.b16 %v338
  %v780 = vunpack.c.h.b16 %v338
  %v781 = vunpack.c.l.b16 %v339
  %v782 = vunpack.c.h.b16 %v339
  %v783 = vunpack.c.l.b16 %v340
  %v784 = vunpack.c.h.b16 %v340
  %v785 = vunpack.c.l.b16 %v341
  %v786 = vunpack.c.h.b16 %v341
  %v787 = vunpack.c.l.b16 %v342
  %v788 = vunpack.c.h.b16 %v342
  %v789 = vunpack.c.l.b16 %v343
  %v790 = vunpack.c.h.b16 %v343
  %v791 = vunpack.c.l.b16 %v344
  %v792 = vunpack.c.h.b16 %v344
  %v793 = vunpack.c.l.b16 %v345
  %v794 = vunpack.c.h.b16 %v345
  %v795 = vunpack.c.l.b16 %v346
  %v796 = vunpack.c.h.b16 %v346
  %v797 = vunpack.c.l.b16 %v347
  %v798 = vunpack.c.h.b16 %v347
  %v799 = vunpack.c.l.b16 %v348
  %v800 = vunpack.c.h.b16 %v348
  %v801 = vunpack.c.l.b16 %v349
  %v802 = vunpack.c.h.b16 %v349
  %v803 = vunpack.c.l.b16 %v350
  %v804 = vunpack.c.h.b16 %v350
  %v805 = vunpack.c.l.b16 %v351
  %v806 = vunpack.c.h.b16 %v351
  %v807 = vunpack.c.l.b16 %v352
  %v808 = vunpack.c.h.b16 %v352
  %v809 = vunpack.c.l.b16 %v353
  %v810 = vunpack.c.h.b16 %v353
  %v811 = vunpack.c.l.b16 %v354
  %v812 = vunpack.c.h.b16 %v354
  %v813 = vunpack.c.l.b16 %v355
  %v814 = vunpack.c.h.b16 %v355
  %v815 = vunpack.c.l.b16 %v356
  %v816 = vunpack.c.h.b16 %v356
  %v817 = vunpack.c.l.b16 %v357
  %v818 = vunpack.c.h.b16 %v357
  %v819 = vunpack.c.l.b16 %v358
  %v820 = vunpack.c.h.b16 %v358
  %v821 = vunpack.c.l.b16 %v359
  %v822 = vunpack.c.h.b16 %v359
  %v823 = vunpack.c.l.b16 %v360
  %v824 = vunpack.c.h.b16 %v360
  %v825 = vunpack.c.l.b16 %v361
  %v826 = vunpack.c.h.b16 %v361
  %v827 = vunpack.c.l.b16 %v362
  %v828 = vunpack.c.h.b16 %v362
  %v829 = vunpack.c.l.b16 %v363
  %v830 = vunpack.c.h.b16 %v363
  %v831 = vunpack.c.l.b16 %v364
  %v832 = vunpack.c.h.b16 %v364
  %v833 = vunpack.c.l.b16 %v365
  %v834 = vunpack.c.h.b16 %v365
  %v835 = vunpack.c.l.b16 %v366
  %v836 = vunpack.c.h.b16 %v366
  %v837 = vunpack.c.l.b16 %v367
  %v838 = vunpack.c.h.b16 %v367
  %v839 = vunpack.c.l.b16 %v368
  %v840 = vunpack.c.h.b16 %v368
  %v841 = vunpack.c.l.b16 %v369
  %v842 = vunpack.c.h.b16 %v369
  %v843 = vunpack.c.l.b16 %v370
  %v844 = vunpack.c.h.b16 %v370
  %v845 = vunpack.c.l.b16 %v371
  %v846 = vunpack.c.h.b16 %v371
  %v847 = vunpack.c.l.b16 %v372
  %v848 = vunpack.c.h.b16 %v372
  %v849 = vunpack.c.l.b16 %v373
  %v850 = vunpack.c.h.b16 %v373
  %v851 = vunpack.c.l.b16 %v374
  %v852 = vunpack.c.h.b16 %v374
  %v853 = vunpack.c.l.b16 %v375
  %v854 = vunpack.c.h.b16 %v375
  %v855 = vunpack.c.l.b16 %v376
  %v856 = vunpack.c.h.b16 %v376
  %v857 = vunpack.c.l.b16 %v377
  %v858 = vunpack.c.h.b16 %v377
  %v859 = vunpack.c.l.b16 %v378
  %v860 = vunpack.c.h.b16 %v378
  %v861 = vunpack.c.l.b16 %v379
  %v862 = vunpack.c.h.b16 %v379
  %v863 = vunpack.c.l.b16 %v380
  %v864 = vunpack.c.h.b16 %v380
  %v865 = vunpack.c.l.b16 %v381
  %v866 = vunpack.c.h.b16 %v381
  %v867 = vunpack.c.l.b16 %v382
  %v868 = vunpack.c.h.b16 %v382
  %v869 = vunpack.c.l.b16 %v383
  %v870 = vunpack.c.h.b16 %v383
  %v871 = vunpack.c.l.b16 %v384
  %v872 = vunpack.c.h.b16 %v384
  %v873 = vunpack.c.l.b16 %v385
  %v874 = vunpack.c.h.b16 %v385
  %v875 = vunpack.c.l.b16 %v386
  %v876 = vunpack.c.h.b16 %v386
  %v877 = vunpack.c.l.b16 %v387
  %v878 = vunpack.c.h.b16 %v387
  %v879 = vunpack.c.l.b16 %v388
  %v880 = vunpack.c.h.b16 %v388
  %v881 = vunpack.c.l.b16 %v389
  %v882 = vunpack.c.h.b16 %v389
  %v883 = vunpack.c.l.b16 %v390
  %v884 = vunpack.c.h.b16 %v390
  %v885 = vunpack.c.l.b16 %v391
  %v886 = vunpack.c.h.b16 %v391
  %v887 = vpack.c.b16 %v763, %v759
  %v888 = vpack.c.b16 %v764, %v760
  %v889 = vpack.c.b16 %v765, %v761
  %v890 = vpack.c.b16 %v766, %v762
  %v891 = vpack.c.b16 %v771, %v767
  %v892 = vpack.c.b16 %v772, %v768
  %v893 = vpack.c.b16 %v773, %v769
  %v894 = vpack.c.b16 %v774, %v770
  %v895 = vpack.c.b16 %v779, %v775
  %v896 = vpack.c.b16 %v780, %v776
  %v897 = vpack.c.b16 %v781, %v777
  %v898 = vpack.c.b16 %v782, %v778
  %v899 = vpack.c.b16 %v787, %v783
  %v900 = vpack.c.b16 %v788, %v784
  %v901 = vpack.c.b16 %v789, %v785
  %v902 = vpack.c.b16 %v790, %v786
  %v903 = vpack.c.b16 %v795, %v791
  %v904 = vpack.c.b16 %v796, %v792
  %v905 = vpack.c.b16 %v797, %v793
  %v906 = vpack.c.b16 %v798, %v794
  %v907 = vpack.c.b16 %v803, %v799
  %v908 = vpack.c.b16 %v804, %v800
  %v909 = vpack.c.b16 %v805, %v801
  %v910 = vpack.c.b16 %v806, %v802
  %v911 = vpack.c.b16 %v811, %v807
  %v912 = vpack.c.b16 %v812, %v808
  %v913 = vpack.c.b16 %v813, %v809
  %v914 = vpack.c.b16 %v814, %v810
  %v915 = vpack.c.b16 %v819, %v815
  %v916 = vpack.c.b16 %v820, %v816
  %v917 = vpack.c.b16 %v821, %v817
  %v918 = vpack.c.b16 %v822, %v818
  %v919 = vpack.c.b16 %v827, %v823
  %v920 = vpack.c.b16 %v828, %v824
  %v921 = vpack.c.b16 %v829, %v825
  %v922 = vpack.c.b16 %v830, %v826
  %v923 = vpack.c.b16 %v835, %v831
  %v924 = vpack.c.b16 %v836, %v832
  %v925 = vpack.c.b16 %v837, %v833
  %v926 = vpack.c.b16 %v838, %v834
  %v927 = vpack.c.b16 %v843, %v839
  %v928 = vpack.c.b16 %v844, %v840
  %v929 = vpack.c.b16 %v845, %v841
  %v930 = vpack.c.b16 %v846, %v842
  %v931 = vpack.c.b16 %v851, %v847
  %v932 = vpack.c.b16 %v852, %v848
  %v933 = vpack.c.b16 %v853, %v849
  %v934 = vpack.c.b16 %v854, %v850
  %v935 = vpack.c.b16 %v859, %v855
  %v936 = vpack.c.b16 %v860, %v856
  %v937 = vpack.c.b16 %v861, %v857
  %v938 = vpack.c.b16 %v862, %v858
  %v939 = vpack.c.b16 %v867, %v863
  %v940 = vpack.c.b16 %v868, %v864
  %v941 = vpack.c.b16 %v869, %v865
  %v942 = vpack.c.b16 %v870, %v866
  %v943 = vpack.c.b16 %v875, %v871
  %v944 = vpack.c.b16 %v876, %v872
  %v945 = vpack.c.b16 %v877, %v873
  %v946 = vpack.c.b16 %v878, %v874
  %v947 = vpack.c.b16 %v883, %v879
  %v948 = vpack.c.b16 %v884, %v880
  %v949 = vpack.c.b16 %v885, %v881
  %v950 = vpack.c.b16 %v886, %v882
  %1015 = vmatprep.subr.bf16.mxu0 %v888
  %1016 = vmatpush1.bf16.msra.mxu0 %v887
  %1017 = vmatprep.subr.bf16.mxu0 %v892
  %1018 = vmatpush1.bf16.msra.mxu0 %v891
  %1019 = vmatprep.subr.bf16.mxu0 %v896
  %1020 = vmatpush1.bf16.msra.mxu0 %v895
  %1021 = vmatprep.subr.bf16.mxu0 %v900
  %1022 = vmatpush1.bf16.msra.mxu0 %v899
  %1023 = vmatprep.subr.bf16.mxu0 %v904
  %1024 = vmatpush1.bf16.msra.mxu0 %v903
  %1025 = vmatprep.subr.bf16.mxu0 %v908
  %1026 = vmatpush1.bf16.msra.mxu0 %v907
  %1027 = vmatprep.subr.bf16.mxu0 %v912
  %1028 = vmatpush1.bf16.msra.mxu0 %v911
  %1029 = vmatprep.subr.bf16.mxu0 %v916
  %1030 = vmatpush1.bf16.msra.mxu0 %v915
  %1031 = vmatprep.subr.bf16.mxu0 %v920
  %1032 = vmatpush1.bf16.msra.mxu0 %v919
  %1033 = vmatprep.subr.bf16.mxu0 %v924
  %1034 = vmatpush1.bf16.msra.mxu0 %v923
  %1035 = vmatprep.subr.bf16.mxu0 %v928
  %1036 = vmatpush1.bf16.msra.mxu0 %v927
  %1037 = vmatprep.subr.bf16.mxu0 %v932
  %1038 = vmatpush1.bf16.msra.mxu0 %v931
  %1039 = vmatprep.subr.bf16.mxu0 %v936
  %1040 = vmatpush1.bf16.msra.mxu0 %v935
  %1041 = vmatprep.subr.bf16.mxu0 %v940
  %1042 = vmatpush1.bf16.msra.mxu0 %v939
  %1043 = vmatprep.subr.bf16.mxu0 %v944
  %1044 = vmatpush1.bf16.msra.mxu0 %v943
  %1045 = vmatprep.subr.bf16.mxu0 %v948
  %1046 = vmatpush1.bf16.msra.mxu0 %v947
  %1047 = vmatprep.mubr.bf16.mxu0 %v692
  %1048 = vmatmul.mubr.bf16.gmra.mrb[0].mxu0 %v691
  %v1049 = vpop.f32.mrb[0].mxu0
  %v1050 = vadd.f32 %v397, %v1049
  %v1051 = vpop.f32.mrb[0].mxu0
  %v1052 = vadd.f32 %v401, %v1051
  %v1053 = vpop.f32.mrb[0].mxu0
  %v1054 = vpop.f32.mrb[0].mxu0
  %1055 = vdwg.mxu0
  %1056 = vmatprep.subr.bf16.mxu0 %v890
  %1057 = vmatpush1.bf16.msra.mxu0 %v889
  %1058 = vmatprep.subr.bf16.mxu0 %v894
  %1059 = vmatpush1.bf16.msra.mxu0 %v893
  %1060 = vmatprep.subr.bf16.mxu0 %v898
  %1061 = vmatpush1.bf16.msra.mxu0 %v897
  %1062 = vmatprep.subr.bf16.mxu0 %v902
  %1063 = vmatpush1.bf16.msra.mxu0 %v901
  %1064 = vmatprep.subr.bf16.mxu0 %v906
  %1065 = vmatpush1.bf16.msra.mxu0 %v905
  %1066 = vmatprep.subr.bf16.mxu0 %v910
  %1067 = vmatpush1.bf16.msra.mxu0 %v909
  %1068 = vmatprep.subr.bf16.mxu0 %v914
  %1069 = vmatpush1.bf16.msra.mxu0 %v913
  %1070 = vmatprep.subr.bf16.mxu0 %v918
  %1071 = vmatpush1.bf16.msra.mxu0 %v917
  %1072 = vmatprep.subr.bf16.mxu0 %v922
  %1073 = vmatpush1.bf16.msra.mxu0 %v921
  %1074 = vmatprep.subr.bf16.mxu0 %v926
  %1075 = vmatpush1.bf16.msra.mxu0 %v925
  %1076 = vmatprep.subr.bf16.mxu0 %v930
  %1077 = vmatpush1.bf16.msra.mxu0 %v929
  %1078 = vmatprep.subr.bf16.mxu0 %v934
  %1079 = vmatpush1.bf16.msra.mxu0 %v933
  %1080 = vmatprep.subr.bf16.mxu0 %v938
  %1081 = vmatpush1.bf16.msra.mxu0 %v937
  %1082 = vmatprep.subr.bf16.mxu0 %v942
  %1083 = vmatpush1.bf16.msra.mxu0 %v941
  %1084 = vmatprep.subr.bf16.mxu0 %v946
  %1085 = vmatpush1.bf16.msra.mxu0 %v945
  %1086 = vmatprep.subr.bf16.mxu0 %v950
  %1087 = vmatpush1.bf16.msra.mxu0 %v949
  %1088 = vmatprep.mubr.bf16.mxu0 %v692
  %1089 = vmatmul.mubr.bf16.gmra.mrb[0].mxu0 %v691
  %v1090 = vpop.f32.mrb[0].mxu0
  %v1091 = vadd.f32 %v405, %v1090
  %v1092 = vpop.f32.mrb[0].mxu0
  %v1093 = vadd.f32 %v409, %v1092
  %v1094 = vpop.f32.mrb[0].mxu0
  %v1095 = vpop.f32.mrb[0].mxu0
  %1096 = vdwg.mxu0
  %v1097 = vmul.f32 %v1050, 0.5
  %v1098 = vmul.f32 %v1052, 0.5
  %v1099 = vmul.f32 %v1091, 0.5
  %v1100 = vtanh.pop %v1097
  %v1101 = vtanh.pop %v1098
  %v1102 = vtanh.pop %v1099
  %v1103 = vmul.f32 %v1100, 0.5
  %v1104 = vmul.f32 %v1101, 0.5
  %v1105 = vmul.f32 %v1102, 0.5
  %v1106 = vadd.f32 %v1103, 0.5
  %v1107 = vadd.f32 %v1104, 0.5
  %v1108 = vadd.f32 %v1105, 0.5
  %v1109 = vtanh.pop %v1093
  %v1110 = vmul.f32 %v1107, %v415
  %v1111 = vmul.f32 %v1106, %v1109
  %v1112 = vadd.f32 %v1110, %v1111
  %v1113 = vtanh.pop %v1112
  %v1114 = vmul.f32 %v1108, %v1113
  %1115 = vst [vmem:[%s6] sm:$0xff] %v1114
  %v1116 = vpack.c.bf16 %v1114, %v1114
  %1117 = vst [vmem:[#allocation3 + $0x4] sm:$0xf] %v1116
  %v1118 = vld [vmem:[#allocation3] sm:$0xf]
  %s1119 = scalar_lea.vmem [#allocation2], 32
  %v1120 = vld [vmem:[%s1119] sm:$0xff]
  %v1121 = vld [vmem:[%s1119 + $0x8] sm:$0xff]
  %v1122 = vld [vmem:[%s1119 + $0x10] sm:$0xff]
  %v1123 = vld [vmem:[%s1119 + $0x18] sm:$0xff]
  %1124 = vmatprep.subr.bf16.mxu0 %v518
  %1125 = vmatpush1.bf16.msra.mxu0 %v517
  %1126 = vmatprep.subr.bf16.mxu0 %v522
  %1127 = vmatpush1.bf16.msra.mxu0 %v521
  %1128 = vmatprep.subr.bf16.mxu0 %v526
  %1129 = vmatpush1.bf16.msra.mxu0 %v525
  %1130 = vmatprep.subr.bf16.mxu0 %v530
  %1131 = vmatpush1.bf16.msra.mxu0 %v529
  %1132 = vmatprep.subr.bf16.mxu0 %v534
  %1133 = vmatpush1.bf16.msra.mxu0 %v533
  %1134 = vmatprep.subr.bf16.mxu0 %v538
  %1135 = vmatpush1.bf16.msra.mxu0 %v537
  %1136 = vmatprep.subr.bf16.mxu0 %v542
  %1137 = vmatpush1.bf16.msra.mxu0 %v541
  %1138 = vmatprep.subr.bf16.mxu0 %v546
  %1139 = vmatpush1.bf16.msra.mxu0 %v545
  %1140 = vmatprep.subr.bf16.mxu0 0
  %1141 = vmatpush1.bf16.msra.mxu0 0
  %1142 = vmatprep.subr.bf16.mxu0 0
  %1143 = vmatpush1.bf16.msra.mxu0 0
  %1144 = vmatprep.subr.bf16.mxu0 0
  %1145 = vmatpush1.bf16.msra.mxu0 0
  %1146 = vmatprep.subr.bf16.mxu0 0
  %1147 = vmatpush1.bf16.msra.mxu0 0
  %1148 = vmatprep.subr.bf16.mxu0 0
  %1149 = vmatpush1.bf16.msra.mxu0 0
  %1150 = vmatprep.subr.bf16.mxu0 0
  %1151 = vmatpush1.bf16.msra.mxu0 0
  %1152 = vmatprep.subr.bf16.mxu0 0
  %1153 = vmatpush1.bf16.msra.mxu0 0
  %1154 = vmatprep.subr.bf16.mxu0 0
  %1155 = vmatpush1.bf16.msra.mxu0 0
  %1156 = vmatprep.mubr.bf16.mxu0 0
  %1157 = vmatmul.mubr.bf16.gmra.mrb[0].mxu0 %v1118
  %v1158 = vpop.f32.mrb[0].mxu0
  %v1159 = vadd.f32 0.0, %v1158
  %v1160 = vpop.f32.mrb[0].mxu0
  %v1161 = vadd.f32 0.0, %v1160
  %v1162 = vpop.f32.mrb[0].mxu0
  %v1163 = vpop.f32.mrb[0].mxu0
  %1164 = vdwg.mxu0
  %1165 = vmatprep.subr.bf16.mxu0 %v520
  %1166 = vmatpush1.bf16.msra.mxu0 %v519
  %1167 = vmatprep.subr.bf16.mxu0 %v524
  %1168 = vmatpush1.bf16.msra.mxu0 %v523
  %1169 = vmatprep.subr.bf16.mxu0 %v528
  %1170 = vmatpush1.bf16.msra.mxu0 %v527
  %1171 = vmatprep.subr.bf16.mxu0 %v532
  %1172 = vmatpush1.bf16.msra.mxu0 %v531
  %1173 = vmatprep.subr.bf16.mxu0 %v536
  %1174 = vmatpush1.bf16.msra.mxu0 %v535
  %1175 = vmatprep.subr.bf16.mxu0 %v540
  %1176 = vmatpush1.bf16.msra.mxu0 %v539
  %1177 = vmatprep.subr.bf16.mxu0 %v544
  %1178 = vmatpush1.bf16.msra.mxu0 %v543
  %1179 = vmatprep.subr.bf16.mxu0 %v548
  %1180 = vmatpush1.bf16.msra.mxu0 %v547
  %1181 = vmatprep.subr.bf16.mxu0 0
  %1182 = vmatpush1.bf16.msra.mxu0 0
  %1183 = vmatprep.subr.bf16.mxu0 0
  %1184 = vmatpush1.bf16.msra.mxu0 0
  %1185 = vmatprep.subr.bf16.mxu0 0
  %1186 = vmatpush1.bf16.msra.mxu0 0
  %1187 = vmatprep.subr.bf16.mxu0 0
  %1188 = vmatpush1.bf16.msra.mxu0 0
  %1189 = vmatprep.subr.bf16.mxu0 0
  %1190 = vmatpush1.bf16.msra.mxu0 0
  %1191 = vmatprep.subr.bf16.mxu0 0
  %1192 = vmatpush1.bf16.msra.mxu0 0
  %1193 = vmatprep.subr.bf16.mxu0 0
  %1194 = vmatpush1.bf16.msra.mxu0 0
  %1195 = vmatprep.subr.bf16.mxu0 0
  %1196 = vmatpush1.bf16.msra.mxu0 0
  %1197 = vmatprep.mubr.bf16.mxu0 0
  %1198 = vmatmul.mubr.bf16.gmra.mrb[0].mxu0 %v1118
  %v1199 = vpop.f32.mrb[0].mxu0
  %v1200 = vadd.f32 0.0, %v1199
  %v1201 = vpop.f32.mrb[0].mxu0
  %v1202 = vadd.f32 0.0, %v1201
  %v1203 = vpop.f32.mrb[0].mxu0
  %v1204 = vpop.f32.mrb[0].mxu0
  %1205 = vdwg.mxu0
  %v1206 = vadd.f32 %v1120, %v1159
  %v1207 = vadd.f32 %v1121, %v1161
  %v1208 = vadd.f32 %v1122, %v1200
  %v1209 = vadd.f32 %v1123, %v1202
  %v1210 = vmul.f32 %v1206, 0.5
  %v1211 = vmul.f32 %v1207, 0.5
  %v1212 = vmul.f32 %v1208, 0.5
  %v1213 = vtanh.pop %v1210
  %v1214 = vtanh.pop %v1211
  %v1215 = vtanh.pop %v1212
  %v1216 = vmul.f32 %v1213, 0.5
  %v1217 = vmul.f32 %v1214, 0.5
  %v1218 = vmul.f32 %v1215, 0.5
  %v1219 = vadd.f32 %v1216, 0.5
  %v1220 = vadd.f32 %v1217, 0.5
  %v1221 = vadd.f32 %v1218, 0.5
  %v1222 = vtanh.pop %v1209
  %v1223 = vmul.f32 %v1220, %v682
  %v1224 = vmul.f32 %v1219, %v1222
  %v1225 = vadd.f32 %v1223, %v1224
  %v1226 = vtanh.pop %v1225
  %v1227 = vmul.f32 %v1221, %v1226
  %v1228 = vpack.c.bf16 %v1227, %v1227
  %1229 = vst [vmem:[#allocation3] sm:$0xf] %v1228
  %v1230 = vld [vmem:[#allocation3] sm:$0xff]
  %v1232 = vunpack.c.l.b16 %v1230
  %v1233 = vunpack.c.h.b16 %v1230
  %v1234 = vpack.c.b16 %v1232, %v1232
  %v1235 = vpack.c.b16 %v1233, %v1233
  %1238 = vmatprep.subr.bf16.mxu0 %v888
  %1239 = vmatpush1.bf16.msra.mxu0 %v887
  %1240 = vmatprep.subr.bf16.mxu0 %v892
  %1241 = vmatpush1.bf16.msra.mxu0 %v891
  %1242 = vmatprep.subr.bf16.mxu0 %v896
  %1243 = vmatpush1.bf16.msra.mxu0 %v895
  %1244 = vmatprep.subr.bf16.mxu0 %v900
  %1245 = vmatpush1.bf16.msra.mxu0 %v899
  %1246 = vmatprep.subr.bf16.mxu0 %v904
  %1247 = vmatpush1.bf16.msra.mxu0 %v903
  %1248 = vmatprep.subr.bf16.mxu0 %v908
  %1249 = vmatpush1.bf16.msra.mxu0 %v907
  %1250 = vmatprep.subr.bf16.mxu0 %v912
  %1251 = vmatpush1.bf16.msra.mxu0 %v911
  %1252 = vmatprep.subr.bf16.mxu0 %v916
  %1253 = vmatpush1.bf16.msra.mxu0 %v915
  %1254 = vmatprep.subr.bf16.mxu0 %v920
  %1255 = vmatpush1.bf16.msra.mxu0 %v919
  %1256 = vmatprep.subr.bf16.mxu0 %v924
  %1257 = vmatpush1.bf16.msra.mxu0 %v923
  %1258 = vmatprep.subr.bf16.mxu0 %v928
  %1259 = vmatpush1.bf16.msra.mxu0 %v927
  %1260 = vmatprep.subr.bf16.mxu0 %v932
  %1261 = vmatpush1.bf16.msra.mxu0 %v931
  %1262 = vmatprep.subr.bf16.mxu0 %v936
  %1263 = vmatpush1.bf16.msra.mxu0 %v935
  %1264 = vmatprep.subr.bf16.mxu0 %v940
  %1265 = vmatpush1.bf16.msra.mxu0 %v939
  %1266 = vmatprep.subr.bf16.mxu0 %v944
  %1267 = vmatpush1.bf16.msra.mxu0 %v943
  %1268 = vmatprep.subr.bf16.mxu0 %v948
  %1269 = vmatpush1.bf16.msra.mxu0 %v947
  %1270 = vmatprep.mubr.bf16.mxu0 %v1235
  %1271 = vmatmul.mubr.bf16.gmra.mrb[0].mxu0 %v1234
  %v1272 = vpop.f32.mrb[0].mxu0
  %v1273 = vadd.f32 %v397, %v1272
  %v1274 = vpop.f32.mrb[0].mxu0
  %v1275 = vadd.f32 %v401, %v1274
  %v1276 = vpop.f32.mrb[0].mxu0
  %v1277 = vpop.f32.mrb[0].mxu0
  %1278 = vdwg.mxu0
  %1279 = vmatprep.subr.bf16.mxu0 %v890
  %1280 = vmatpush1.bf16.msra.mxu0 %v889
  %1281 = vmatprep.subr.bf16.mxu0 %v894
  %1282 = vmatpush1.bf16.msra.mxu0 %v893
  %1283 = vmatprep.subr.bf16.mxu0 %v898
  %1284 = vmatpush1.bf16.msra.mxu0 %v897
  %1285 = vmatprep.subr.bf16.mxu0 %v902
  %1286 = vmatpush1.bf16.msra.mxu0 %v901
  %1287 = vmatprep.subr.bf16.mxu0 %v906
  %1288 = vmatpush1.bf16.msra.mxu0 %v905
  %1289 = vmatprep.subr.bf16.mxu0 %v910
  %1290 = vmatpush1.bf16.msra.mxu0 %v909
  %1291 = vmatprep.subr.bf16.mxu0 %v914
  %1292 = vmatpush1.bf16.msra.mxu0 %v913
  %1293 = vmatprep.subr.bf16.mxu0 %v918
  %1294 = vmatpush1.bf16.msra.mxu0 %v917
  %1295 = vmatprep.subr.bf16.mxu0 %v922
  %1296 = vmatpush1.bf16.msra.mxu0 %v921
  %1297 = vmatprep.subr.bf16.mxu0 %v926
  %1298 = vmatpush1.bf16.msra.mxu0 %v925
  %1299 = vmatprep.subr.bf16.mxu0 %v930
  %1300 = vmatpush1.bf16.msra.mxu0 %v929
  %1301 = vmatprep.subr.bf16.mxu0 %v934
  %1302 = vmatpush1.bf16.msra.mxu0 %v933
  %1303 = vmatprep.subr.bf16.mxu0 %v938
  %1304 = vmatpush1.bf16.msra.mxu0 %v937
  %1305 = vmatprep.subr.bf16.mxu0 %v942
  %1306 = vmatpush1.bf16.msra.mxu0 %v941
  %1307 = vmatprep.subr.bf16.mxu0 %v946
  %1308 = vmatpush1.bf16.msra.mxu0 %v945
  %1309 = vmatprep.subr.bf16.mxu0 %v950
  %1310 = vmatpush1.bf16.msra.mxu0 %v949
  %1311 = vmatprep.mubr.bf16.mxu0 %v1235
  %1312 = vmatmul.mubr.bf16.gmra.mrb[0].mxu0 %v1234
  %v1313 = vpop.f32.mrb[0].mxu0
  %v1314 = vadd.f32 %v405, %v1313
  %v1315 = vpop.f32.mrb[0].mxu0
  %v1316 = vadd.f32 %v409, %v1315
  %v1317 = vpop.f32.mrb[0].mxu0
  %v1318 = vpop.f32.mrb[0].mxu0
  %1319 = vdwg.mxu0
  %v1320 = vmul.f32 %v1273, 0.5
  %v1321 = vmul.f32 %v1275, 0.5
  %v1322 = vmul.f32 %v1314, 0.5
  %v1323 = vtanh.pop %v1320
  %v1324 = vtanh.pop %v1321
  %v1325 = vtanh.pop %v1322
  %v1326 = vmul.f32 %v1323, 0.5
  %v1327 = vmul.f32 %v1324, 0.5
  %v1328 = vmul.f32 %v1325, 0.5
  %v1329 = vadd.f32 %v1326, 0.5
  %v1330 = vadd.f32 %v1327, 0.5
  %v1331 = vadd.f32 %v1328, 0.5
  %v1332 = vtanh.pop %v1316
  %v1333 = vmul.f32 %v1330, %v1112
  %v1334 = vmul.f32 %v1329, %v1332
  %v1335 = vadd.f32 %v1333, %v1334
  %v1336 = vtanh.pop %v1335
  %v1337 = vmul.f32 %v1331, %v1336
  %s1338 = scalar_lea.vmem %s6, 8
  %1339 = vst [vmem:[%s1338] sm:$0xff] %v1337
  %v1340 = vpack.c.bf16 %v1337, %v1337
  %1341 = vst [vmem:[#allocation3 + $0x4] sm:$0xf] %v1340
  %v1342 = vld [vmem:[#allocation3] sm:$0xf]
  %s1343 = scalar_lea.vmem [#allocation2], 64
  %v1344 = vld [vmem:[%s1343] sm:$0xff]
  %v1345 = vld [vmem:[%s1343 + $0x8] sm:$0xff]
  %v1346 = vld [vmem:[%s1343 + $0x10] sm:$0xff]
  %v1347 = vld [vmem:[%s1343 + $0x18] sm:$0xff]
  %1348 = vmatprep.subr.bf16.mxu0 %v518
  %1349 = vmatpush1.bf16.msra.mxu0 %v517
  %1350 = vmatprep.subr.bf16.mxu0 %v522
  %1351 = vmatpush1.bf16.msra.mxu0 %v521
  %1352 = vmatprep.subr.bf16.mxu0 %v526
  %1353 = vmatpush1.bf16.msra.mxu0 %v525
  %1354 = vmatprep.subr.bf16.mxu0 %v530
  %1355 = vmatpush1.bf16.msra.mxu0 %v529
  %1356 = vmatprep.subr.bf16.mxu0 %v534
  %1357 = vmatpush1.bf16.msra.mxu0 %v533
  %1358 = vmatprep.subr.bf16.mxu0 %v538
  %1359 = vmatpush1.bf16.msra.mxu0 %v537
  %1360 = vmatprep.subr.bf16.mxu0 %v542
  %1361 = vmatpush1.bf16.msra.mxu0 %v541
  %1362 = vmatprep.subr.bf16.mxu0 %v546
  %1363 = vmatpush1.bf16.msra.mxu0 %v545
  %1364 = vmatprep.subr.bf16.mxu0 0
  %1365 = vmatpush1.bf16.msra.mxu0 0
  %1366 = vmatprep.subr.bf16.mxu0 0
  %1367 = vmatpush1.bf16.msra.mxu0 0
  %1368 = vmatprep.subr.bf16.mxu0 0
  %1369 = vmatpush1.bf16.msra.mxu0 0
  %1370 = vmatprep.subr.bf16.mxu0 0
  %1371 = vmatpush1.bf16.msra.mxu0 0
  %1372 = vmatprep.subr.bf16.mxu0 0
  %1373 = vmatpush1.bf16.msra.mxu0 0
  %1374 = vmatprep.subr.bf16.mxu0 0
  %1375 = vmatpush1.bf16.msra.mxu0 0
  %1376 = vmatprep.subr.bf16.mxu0 0
  %1377 = vmatpush1.bf16.msra.mxu0 0
  %1378 = vmatprep.subr.bf16.mxu0 0
  %1379 = vmatpush1.bf16.msra.mxu0 0
  %1380 = vmatprep.mubr.bf16.mxu0 0
  %1381 = vmatmul.mubr.bf16.gmra.mrb[0].mxu0 %v1342
  %v1382 = vpop.f32.mrb[0].mxu0
  %v1383 = vadd.f32 0.0, %v1382
  %v1384 = vpop.f32.mrb[0].mxu0
  %v1385 = vadd.f32 0.0, %v1384
  %v1386 = vpop.f32.mrb[0].mxu0
  %v1387 = vpop.f32.mrb[0].mxu0
  %1388 = vdwg.mxu0
  %1389 = vmatprep.subr.bf16.mxu0 %v520
  %1390 = vmatpush1.bf16.msra.mxu0 %v519
  %1391 = vmatprep.subr.bf16.mxu0 %v524
  %1392 = vmatpush1.bf16.msra.mxu0 %v523
  %1393 = vmatprep.subr.bf16.mxu0 %v528
  %1394 = vmatpush1.bf16.msra.mxu0 %v527
  %1395 = vmatprep.subr.bf16.mxu0 %v532
  %1396 = vmatpush1.bf16.msra.mxu0 %v531
  %1397 = vmatprep.subr.bf16.mxu0 %v536
  %1398 = vmatpush1.bf16.msra.mxu0 %v535
  %1399 = vmatprep.subr.bf16.mxu0 %v540
  %1400 = vmatpush1.bf16.msra.mxu0 %v539
  %1401 = vmatprep.subr.bf16.mxu0 %v544
  %1402 = vmatpush1.bf16.msra.mxu0 %v543
  %1403 = vmatprep.subr.bf16.mxu0 %v548
  %1404 = vmatpush1.bf16.msra.mxu0 %v547
  %1405 = vmatprep.subr.bf16.mxu0 0
  %1406 = vmatpush1.bf16.msra.mxu0 0
  %1407 = vmatprep.subr.bf16.mxu0 0
  %1408 = vmatpush1.bf16.msra.mxu0 0
  %1409 = vmatprep.subr.bf16.mxu0 0
  %1410 = vmatpush1.bf16.msra.mxu0 0
  %1411 = vmatprep.subr.bf16.mxu0 0
  %1412 = vmatpush1.bf16.msra.mxu0 0
  %1413 = vmatprep.subr.bf16.mxu0 0
  %1414 = vmatpush1.bf16.msra.mxu0 0
  %1415 = vmatprep.subr.bf16.mxu0 0
  %1416 = vmatpush1.bf16.msra.mxu0 0
  %1417 = vmatprep.subr.bf16.mxu0 0
  %1418 = vmatpush1.bf16.msra.mxu0 0
  %1419 = vmatprep.subr.bf16.mxu0 0
  %1420 = vmatpush1.bf16.msra.mxu0 0
  %1421 = vmatprep.mubr.bf16.mxu0 0
  %1422 = vmatmul.mubr.bf16.gmra.mrb[0].mxu0 %v1342
  %v1423 = vpop.f32.mrb[0].mxu0
  %v1424 = vadd.f32 0.0, %v1423
  %v1425 = vpop.f32.mrb[0].mxu0
  %v1426 = vadd.f32 0.0, %v1425
  %v1427 = vpop.f32.mrb[0].mxu0
  %v1428 = vpop.f32.mrb[0].mxu0
  %1429 = vdwg.mxu0
  %v1430 = vadd.f32 %v1344, %v1383
  %v1431 = vadd.f32 %v1345, %v1385
  %v1432 = vadd.f32 %v1346, %v1424
  %v1433 = vadd.f32 %v1347, %v1426
  %v1434 = vmul.f32 %v1430, 0.5
  %v1435 = vmul.f32 %v1431, 0.5
  %v1436 = vmul.f32 %v1432, 0.5
  %v1437 = vtanh.pop %v1434
  %v1438 = vtanh.pop %v1435
  %v1439 = vtanh.pop %v1436
  %v1440 = vmul.f32 %v1437, 0.5
  %v1441 = vmul.f32 %v1438, 0.5
  %v1442 = vmul.f32 %v1439, 0.5
  %v1443 = vadd.f32 %v1440, 0.5
  %v1444 = vadd.f32 %v1441, 0.5
  %v1445 = vadd.f32 %v1442, 0.5
  %v1446 = vtanh.pop %v1433
  %v1447 = vmul.f32 %v1444, %v1225
  %v1448 = vmul.f32 %v1443, %v1446
  %v1449 = vadd.f32 %v1447, %v1448
  %v1450 = vtanh.pop %v1449
  %v1451 = vmul.f32 %v1445, %v1450
  %v1452 = vpack.c.bf16 %v1451, %v1451
  %1453 = vst [vmem:[#allocation3] sm:$0xf] %v1452
  %v1454 = vld [vmem:[#allocation3] sm:$0xff]
  %v1456 = vunpack.c.l.b16 %v1454
  %v1457 = vunpack.c.h.b16 %v1454
  %v1458 = vpack.c.b16 %v1456, %v1456
  %v1459 = vpack.c.b16 %v1457, %v1457
  %1462 = vmatprep.subr.bf16.mxu0 %v888
  %1463 = vmatpush1.bf16.msra.mxu0 %v887
  %1464 = vmatprep.subr.bf16.mxu0 %v892
  %1465 = vmatpush1.bf16.msra.mxu0 %v891
  %1466 = vmatprep.subr.bf16.mxu0 %v896
  %1467 = vmatpush1.bf16.msra.mxu0 %v895
  %1468 = vmatprep.subr.bf16.mxu0 %v900
  %1469 = vmatpush1.bf16.msra.mxu0 %v899
  %1470 = vmatprep.subr.bf16.mxu0 %v904
  %1471 = vmatpush1.bf16.msra.mxu0 %v903
  %1472 = vmatprep.subr.bf16.mxu0 %v908
  %1473 = vmatpush1.bf16.msra.mxu0 %v907
  %1474 = vmatprep.subr.bf16.mxu0 %v912
  %1475 = vmatpush1.bf16.msra.mxu0 %v911
  %1476 = vmatprep.subr.bf16.mxu0 %v916
  %1477 = vmatpush1.bf16.msra.mxu0 %v915
  %1478 = vmatprep.subr.bf16.mxu0 %v920
  %1479 = vmatpush1.bf16.msra.mxu0 %v919
  %1480 = vmatprep.subr.bf16.mxu0 %v924
  %1481 = vmatpush1.bf16.msra.mxu0 %v923
  %1482 = vmatprep.subr.bf16.mxu0 %v928
  %1483 = vmatpush1.bf16.msra.mxu0 %v927
  %1484 = vmatprep.subr.bf16.mxu0 %v932
  %1485 = vmatpush1.bf16.msra.mxu0 %v931
  %1486 = vmatprep.subr.bf16.mxu0 %v936
  %1487 = vmatpush1.bf16.msra.mxu0 %v935
  %1488 = vmatprep.subr.bf16.mxu0 %v940
  %1489 = vmatpush1.bf16.msra.mxu0 %v939
  %1490 = vmatprep.subr.bf16.mxu0 %v944
  %1491 = vmatpush1.bf16.msra.mxu0 %v943
  %1492 = vmatprep.subr.bf16.mxu0 %v948
  %1493 = vmatpush1.bf16.msra.mxu0 %v947
  %1494 = vmatprep.mubr.bf16.mxu0 %v1459
  %1495 = vmatmul.mubr.bf16.gmra.mrb[0].mxu0 %v1458
  %v1496 = vpop.f32.mrb[0].mxu0
  %v1497 = vadd.f32 %v397, %v1496
  %v1498 = vpop.f32.mrb[0].mxu0
  %v1499 = vadd.f32 %v401, %v1498
  %v1500 = vpop.f32.mrb[0].mxu0
  %v1501 = vpop.f32.mrb[0].mxu0
  %1502 = vdwg.mxu0
  %1503 = vmatprep.subr.bf16.mxu0 %v890
  %1504 = vmatpush1.bf16.msra.mxu0 %v889
  %1505 = vmatprep.subr.bf16.mxu0 %v894
  %1506 = vmatpush1.bf16.msra.mxu0 %v893
  %1507 = vmatprep.subr.bf16.mxu0 %v898
  %1508 = vmatpush1.bf16.msra.mxu0 %v897
  %1509 = vmatprep.subr.bf16.mxu0 %v902
  %1510 = vmatpush1.bf16.msra.mxu0 %v901
  %1511 = vmatprep.subr.bf16.mxu0 %v906
  %1512 = vmatpush1.bf16.msra.mxu0 %v905
  %1513 = vmatprep.subr.bf16.mxu0 %v910
  %1514 = vmatpush1.bf16.msra.mxu0 %v909
  %1515 = vmatprep.subr.bf16.mxu0 %v914
  %1516 = vmatpush1.bf16.msra.mxu0 %v913
  %1517 = vmatprep.subr.bf16.mxu0 %v918
  %1518 = vmatpush1.bf16.msra.mxu0 %v917
  %1519 = vmatprep.subr.bf16.mxu0 %v922
  %1520 = vmatpush1.bf16.msra.mxu0 %v921
  %1521 = vmatprep.subr.bf16.mxu0 %v926
  %1522 = vmatpush1.bf16.msra.mxu0 %v925
  %1523 = vmatprep.subr.bf16.mxu0 %v930
  %1524 = vmatpush1.bf16.msra.mxu0 %v929
  %1525 = vmatprep.subr.bf16.mxu0 %v934
  %1526 = vmatpush1.bf16.msra.mxu0 %v933
  %1527 = vmatprep.subr.bf16.mxu0 %v938
  %1528 = vmatpush1.bf16.msra.mxu0 %v937
  %1529 = vmatprep.subr.bf16.mxu0 %v942
  %1530 = vmatpush1.bf16.msra.mxu0 %v941
  %1531 = vmatprep.subr.bf16.mxu0 %v946
  %1532 = vmatpush1.bf16.msra.mxu0 %v945
  %1533 = vmatprep.subr.bf16.mxu0 %v950
  %1534 = vmatpush1.bf16.msra.mxu0 %v949
  %1535 = vmatprep.mubr.bf16.mxu0 %v1459
  %1536 = vmatmul.mubr.bf16.gmra.mrb[0].mxu0 %v1458
  %v1537 = vpop.f32.mrb[0].mxu0
  %v1538 = vadd.f32 %v405, %v1537
  %v1539 = vpop.f32.mrb[0].mxu0
  %v1540 = vadd.f32 %v409, %v1539
  %v1541 = vpop.f32.mrb[0].mxu0
  %v1542 = vpop.f32.mrb[0].mxu0
  %1543 = vdwg.mxu0
  %v1544 = vmul.f32 %v1497, 0.5
  %v1545 = vmul.f32 %v1499, 0.5
  %v1546 = vmul.f32 %v1538, 0.5
  %v1547 = vtanh.pop %v1544
  %v1548 = vtanh.pop %v1545
  %v1549 = vtanh.pop %v1546
  %v1550 = vmul.f32 %v1547, 0.5
  %v1551 = vmul.f32 %v1548, 0.5
  %v1552 = vmul.f32 %v1549, 0.5
  %v1553 = vadd.f32 %v1550, 0.5
  %v1554 = vadd.f32 %v1551, 0.5
  %v1555 = vadd.f32 %v1552, 0.5
  %v1556 = vtanh.pop %v1540
  %v1557 = vmul.f32 %v1554, %v1335
  %v1558 = vmul.f32 %v1553, %v1556
  %v1559 = vadd.f32 %v1557, %v1558
  %v1560 = vtanh.pop %v1559
  %v1561 = vmul.f32 %v1555, %v1560
  %s1562 = scalar_lea.vmem %s6, 16
  %1563 = vst [vmem:[%s1562] sm:$0xff] %v1561
  %v1564 = vpack.c.bf16 %v1561, %v1561
  %1565 = vst [vmem:[#allocation3 + $0x4] sm:$0xf] %v1564
  %v1566 = vld [vmem:[#allocation3] sm:$0xf]
  %s1567 = scalar_lea.vmem [#allocation2], 96
  %v1568 = vld [vmem:[%s1567] sm:$0xff]
  %v1569 = vld [vmem:[%s1567 + $0x8] sm:$0xff]
  %v1570 = vld [vmem:[%s1567 + $0x10] sm:$0xff]
  %v1571 = vld [vmem:[%s1567 + $0x18] sm:$0xff]
  %1572 = vmatprep.subr.bf16.mxu0 %v518
  %1573 = vmatpush1.bf16.msra.mxu0 %v517
  %1574 = vmatprep.subr.bf16.mxu0 %v522
  %1575 = vmatpush1.bf16.msra.mxu0 %v521
  %1576 = vmatprep.subr.bf16.mxu0 %v526
  %1577 = vmatpush1.bf16.msra.mxu0 %v525
  %1578 = vmatprep.subr.bf16.mxu0 %v530
  %1579 = vmatpush1.bf16.msra.mxu0 %v529
  %1580 = vmatprep.subr.bf16.mxu0 %v534
  %1581 = vmatpush1.bf16.msra.mxu0 %v533
  %1582 = vmatprep.subr.bf16.mxu0 %v538
  %1583 = vmatpush1.bf16.msra.mxu0 %v537
  %1584 = vmatprep.subr.bf16.mxu0 %v542
  %1585 = vmatpush1.bf16.msra.mxu0 %v541
  %1586 = vmatprep.subr.bf16.mxu0 %v546
  %1587 = vmatpush1.bf16.msra.mxu0 %v545
  %1588 = vmatprep.subr.bf16.mxu0 0
  %1589 = vmatpush1.bf16.msra.mxu0 0
  %1590 = vmatprep.subr.bf16.mxu0 0
  %1591 = vmatpush1.bf16.msra.mxu0 0
  %1592 = vmatprep.subr.bf16.mxu0 0
  %1593 = vmatpush1.bf16.msra.mxu0 0
  %1594 = vmatprep.subr.bf16.mxu0 0
  %1595 = vmatpush1.bf16.msra.mxu0 0
  %1596 = vmatprep.subr.bf16.mxu0 0
  %1597 = vmatpush1.bf16.msra.mxu0 0
  %1598 = vmatprep.subr.bf16.mxu0 0
  %1599 = vmatpush1.bf16.msra.mxu0 0
  %1600 = vmatprep.subr.bf16.mxu0 0
  %1601 = vmatpush1.bf16.msra.mxu0 0
  %1602 = vmatprep.subr.bf16.mxu0 0
  %1603 = vmatpush1.bf16.msra.mxu0 0
  %1604 = vmatprep.mubr.bf16.mxu0 0
  %1605 = vmatmul.mubr.bf16.gmra.mrb[0].mxu0 %v1566
  %v1606 = vpop.f32.mrb[0].mxu0
  %v1607 = vadd.f32 0.0, %v1606
  %v1608 = vpop.f32.mrb[0].mxu0
  %v1609 = vadd.f32 0.0, %v1608
  %v1610 = vpop.f32.mrb[0].mxu0
  %v1611 = vpop.f32.mrb[0].mxu0
  %1612 = vdwg.mxu0
  %1613 = vmatprep.subr.bf16.mxu0 %v520
  %1614 = vmatpush1.bf16.msra.mxu0 %v519
  %1615 = vmatprep.subr.bf16.mxu0 %v524
  %1616 = vmatpush1.bf16.msra.mxu0 %v523
  %1617 = vmatprep.subr.bf16.mxu0 %v528
  %1618 = vmatpush1.bf16.msra.mxu0 %v527
  %1619 = vmatprep.subr.bf16.mxu0 %v532
  %1620 = vmatpush1.bf16.msra.mxu0 %v531
  %1621 = vmatprep.subr.bf16.mxu0 %v536
  %1622 = vmatpush1.bf16.msra.mxu0 %v535
  %1623 = vmatprep.subr.bf16.mxu0 %v540
  %1624 = vmatpush1.bf16.msra.mxu0 %v539
  %1625 = vmatprep.subr.bf16.mxu0 %v544
  %1626 = vmatpush1.bf16.msra.mxu0 %v543
  %1627 = vmatprep.subr.bf16.mxu0 %v548
  %1628 = vmatpush1.bf16.msra.mxu0 %v547
  %1629 = vmatprep.subr.bf16.mxu0 0
  %1630 = vmatpush1.bf16.msra.mxu0 0
  %1631 = vmatprep.subr.bf16.mxu0 0
  %1632 = vmatpush1.bf16.msra.mxu0 0
  %1633 = vmatprep.subr.bf16.mxu0 0
  %1634 = vmatpush1.bf16.msra.mxu0 0
  %1635 = vmatprep.subr.bf16.mxu0 0
  %1636 = vmatpush1.bf16.msra.mxu0 0
  %1637 = vmatprep.subr.bf16.mxu0 0
  %1638 = vmatpush1.bf16.msra.mxu0 0
  %1639 = vmatprep.subr.bf16.mxu0 0
  %1640 = vmatpush1.bf16.msra.mxu0 0
  %1641 = vmatprep.subr.bf16.mxu0 0
  %1642 = vmatpush1.bf16.msra.mxu0 0
  %1643 = vmatprep.subr.bf16.mxu0 0
  %1644 = vmatpush1.bf16.msra.mxu0 0
  %1645 = vmatprep.mubr.bf16.mxu0 0
  %1646 = vmatmul.mubr.bf16.gmra.mrb[0].mxu0 %v1566
  %v1647 = vpop.f32.mrb[0].mxu0
  %v1648 = vadd.f32 0.0, %v1647
  %v1649 = vpop.f32.mrb[0].mxu0
  %v1650 = vadd.f32 0.0, %v1649
  %v1651 = vpop.f32.mrb[0].mxu0
  %v1652 = vpop.f32.mrb[0].mxu0
  %1653 = vdwg.mxu0
  %v1654 = vadd.f32 %v1568, %v1607
  %v1655 = vadd.f32 %v1569, %v1609
  %v1656 = vadd.f32 %v1570, %v1648
  %v1657 = vadd.f32 %v1571, %v1650
  %v1658 = vmul.f32 %v1654, 0.5
  %v1659 = vmul.f32 %v1655, 0.5
  %v1660 = vmul.f32 %v1656, 0.5
  %v1661 = vtanh.pop %v1658
  %v1662 = vtanh.pop %v1659
  %v1663 = vtanh.pop %v1660
  %v1664 = vmul.f32 %v1661, 0.5
  %v1665 = vmul.f32 %v1662, 0.5
  %v1666 = vmul.f32 %v1663, 0.5
  %v1667 = vadd.f32 %v1664, 0.5
  %v1668 = vadd.f32 %v1665, 0.5
  %v1669 = vadd.f32 %v1666, 0.5
  %v1670 = vtanh.pop %v1657
  %v1671 = vmul.f32 %v1668, %v1449
  %v1672 = vmul.f32 %v1667, %v1670
  %v1673 = vadd.f32 %v1671, %v1672
  %v1674 = vtanh.pop %v1673
  %v1675 = vmul.f32 %v1669, %v1674
  %v1676 = vpack.c.bf16 %v1675, %v1675
  %1677 = vst [vmem:[#allocation3] sm:$0xf] %v1676
  %v1678 = vld [vmem:[#allocation3] sm:$0xff]
  %v1680 = vunpack.c.l.b16 %v1678
  %v1681 = vunpack.c.h.b16 %v1678
  %v1682 = vpack.c.b16 %v1680, %v1680
  %v1683 = vpack.c.b16 %v1681, %v1681
  %1686 = vmatprep.subr.bf16.mxu0 %v888
  %1687 = vmatpush1.bf16.msra.mxu0 %v887
  %1688 = vmatprep.subr.bf16.mxu0 %v892
  %1689 = vmatpush1.bf16.msra.mxu0 %v891
  %1690 = vmatprep.subr.bf16.mxu0 %v896
  %1691 = vmatpush1.bf16.msra.mxu0 %v895
  %1692 = vmatprep.subr.bf16.mxu0 %v900
  %1693 = vmatpush1.bf16.msra.mxu0 %v899
  %1694 = vmatprep.subr.bf16.mxu0 %v904
  %1695 = vmatpush1.bf16.msra.mxu0 %v903
  %1696 = vmatprep.subr.bf16.mxu0 %v908
  %1697 = vmatpush1.bf16.msra.mxu0 %v907
  %1698 = vmatprep.subr.bf16.mxu0 %v912
  %1699 = vmatpush1.bf16.msra.mxu0 %v911
  %1700 = vmatprep.subr.bf16.mxu0 %v916
  %1701 = vmatpush1.bf16.msra.mxu0 %v915
  %1702 = vmatprep.subr.bf16.mxu0 %v920
  %1703 = vmatpush1.bf16.msra.mxu0 %v919
  %1704 = vmatprep.subr.bf16.mxu0 %v924
  %1705 = vmatpush1.bf16.msra.mxu0 %v923
  %1706 = vmatprep.subr.bf16.mxu0 %v928
  %1707 = vmatpush1.bf16.msra.mxu0 %v927
  %1708 = vmatprep.subr.bf16.mxu0 %v932
  %1709 = vmatpush1.bf16.msra.mxu0 %v931
  %1710 = vmatprep.subr.bf16.mxu0 %v936
  %1711 = vmatpush1.bf16.msra.mxu0 %v935
  %1712 = vmatprep.subr.bf16.mxu0 %v940
  %1713 = vmatpush1.bf16.msra.mxu0 %v939
  %1714 = vmatprep.subr.bf16.mxu0 %v944
  %1715 = vmatpush1.bf16.msra.mxu0 %v943
  %1716 = vmatprep.subr.bf16.mxu0 %v948
  %1717 = vmatpush1.bf16.msra.mxu0 %v947
  %1718 = vmatprep.mubr.bf16.mxu0 %v1683
  %1719 = vmatmul.mubr.bf16.gmra.mrb[0].mxu0 %v1682
  %v1720 = vpop.f32.mrb[0].mxu0
  %v1721 = vadd.f32 %v397, %v1720
  %v1722 = vpop.f32.mrb[0].mxu0
  %v1723 = vadd.f32 %v401, %v1722
  %v1724 = vpop.f32.mrb[0].mxu0
  %v1725 = vpop.f32.mrb[0].mxu0
  %1726 = vdwg.mxu0
  %1727 = vmatprep.subr.bf16.mxu0 %v890
  %1728 = vmatpush1.bf16.msra.mxu0 %v889
  %1729 = vmatprep.subr.bf16.mxu0 %v894
  %1730 = vmatpush1.bf16.msra.mxu0 %v893
  %1731 = vmatprep.subr.bf16.mxu0 %v898
  %1732 = vmatpush1.bf16.msra.mxu0 %v897
  %1733 = vmatprep.subr.bf16.mxu0 %v902
  %1734 = vmatpush1.bf16.msra.mxu0 %v901
  %1735 = vmatprep.subr.bf16.mxu0 %v906
  %1736 = vmatpush1.bf16.msra.mxu0 %v905
  %1737 = vmatprep.subr.bf16.mxu0 %v910
  %1738 = vmatpush1.bf16.msra.mxu0 %v909
  %1739 = vmatprep.subr.bf16.mxu0 %v914
  %1740 = vmatpush1.bf16.msra.mxu0 %v913
  %1741 = vmatprep.subr.bf16.mxu0 %v918
  %1742 = vmatpush1.bf16.msra.mxu0 %v917
  %1743 = vmatprep.subr.bf16.mxu0 %v922
  %1744 = vmatpush1.bf16.msra.mxu0 %v921
  %1745 = vmatprep.subr.bf16.mxu0 %v926
  %1746 = vmatpush1.bf16.msra.mxu0 %v925
  %1747 = vmatprep.subr.bf16.mxu0 %v930
  %1748 = vmatpush1.bf16.msra.mxu0 %v929
  %1749 = vmatprep.subr.bf16.mxu0 %v934
  %1750 = vmatpush1.bf16.msra.mxu0 %v933
  %1751 = vmatprep.subr.bf16.mxu0 %v938
  %1752 = vmatpush1.bf16.msra.mxu0 %v937
  %1753 = vmatprep.subr.bf16.mxu0 %v942
  %1754 = vmatpush1.bf16.msra.mxu0 %v941
  %1755 = vmatprep.subr.bf16.mxu0 %v946
  %1756 = vmatpush1.bf16.msra.mxu0 %v945
  %1757 = vmatprep.subr.bf16.mxu0 %v950
  %1758 = vmatpush1.bf16.msra.mxu0 %v949
  %1759 = vmatprep.mubr.bf16.mxu0 %v1683
  %1760 = vmatmul.mubr.bf16.gmra.mrb[0].mxu0 %v1682
  %v1761 = vpop.f32.mrb[0].mxu0
  %v1762 = vadd.f32 %v405, %v1761
  %v1763 = vpop.f32.mrb[0].mxu0
  %v1764 = vadd.f32 %v409, %v1763
  %v1765 = vpop.f32.mrb[0].mxu0
  %v1766 = vpop.f32.mrb[0].mxu0
  %1767 = vdwg.mxu0
  %v1768 = vmul.f32 %v1721, 0.5
  %v1769 = vmul.f32 %v1723, 0.5
  %v1770 = vmul.f32 %v1762, 0.5
  %v1771 = vtanh.pop %v1768
  %v1772 = vtanh.pop %v1769
  %v1773 = vtanh.pop %v1770
  %v1774 = vmul.f32 %v1771, 0.5
  %v1775 = vmul.f32 %v1772, 0.5
  %v1776 = vmul.f32 %v1773, 0.5
  %v1777 = vadd.f32 %v1774, 0.5
  %v1778 = vadd.f32 %v1775, 0.5
  %v1779 = vadd.f32 %v1776, 0.5
  %v1780 = vtanh.pop %v1764
  %v1781 = vmul.f32 %v1778, %v1559
  %v1782 = vmul.f32 %v1777, %v1780
  %v1783 = vadd.f32 %v1781, %v1782
  %v1784 = vtanh.pop %v1783
  %v1785 = vmul.f32 %v1779, %v1784
  %s1786 = scalar_lea.vmem %s6, 24
  %1787 = vst [vmem:[%s1786] sm:$0xff] %v1785
  %v1788 = vpack.c.bf16 %v1785, %v1785
  %1789 = vst [vmem:[#allocation3 + $0x4] sm:$0xf] %v1788
  %v1790 = vld [vmem:[#allocation3] sm:$0xf]
  %s1791 = scalar_lea.vmem [#allocation2], 128
  %v1792 = vld [vmem:[%s1791] sm:$0xff]
  %v1793 = vld [vmem:[%s1791 + $0x8] sm:$0xff]
  %v1794 = vld [vmem:[%s1791 + $0x10] sm:$0xff]
  %v1795 = vld [vmem:[%s1791 + $0x18] sm:$0xff]
  %1796 = vmatprep.subr.bf16.mxu0 %v518
  %1797 = vmatpush1.bf16.msra.mxu0 %v517
  %1798 = vmatprep.subr.bf16.mxu0 %v522
  %1799 = vmatpush1.bf16.msra.mxu0 %v521
  %1800 = vmatprep.subr.bf16.mxu0 %v526
  %1801 = vmatpush1.bf16.msra.mxu0 %v525
  %1802 = vmatprep.subr.bf16.mxu0 %v530
  %1803 = vmatpush1.bf16.msra.mxu0 %v529
  %1804 = vmatprep.subr.bf16.mxu0 %v534
  %1805 = vmatpush1.bf16.msra.mxu0 %v533
  %1806 = vmatprep.subr.bf16.mxu0 %v538
  %1807 = vmatpush1.bf16.msra.mxu0 %v537
  %1808 = vmatprep.subr.bf16.mxu0 %v542
  %1809 = vmatpush1.bf16.msra.mxu0 %v541
  %1810 = vmatprep.subr.bf16.mxu0 %v546
  %1811 = vmatpush1.bf16.msra.mxu0 %v545
  %1812 = vmatprep.subr.bf16.mxu0 0
  %1813 = vmatpush1.bf16.msra.mxu0 0
  %1814 = vmatprep.subr.bf16.mxu0 0
  %1815 = vmatpush1.bf16.msra.mxu0 0
  %1816 = vmatprep.subr.bf16.mxu0 0
  %1817 = vmatpush1.bf16.msra.mxu0 0
  %1818 = vmatprep.subr.bf16.mxu0 0
  %1819 = vmatpush1.bf16.msra.mxu0 0
  %1820 = vmatprep.subr.bf16.mxu0 0
  %1821 = vmatpush1.bf16.msra.mxu0 0
  %1822 = vmatprep.subr.bf16.mxu0 0
  %1823 = vmatpush1.bf16.msra.mxu0 0
  %1824 = vmatprep.subr.bf16.mxu0 0
  %1825 = vmatpush1.bf16.msra.mxu0 0
  %1826 = vmatprep.subr.bf16.mxu0 0
  %1827 = vmatpush1.bf16.msra.mxu0 0
  %1828 = vmatprep.mubr.bf16.mxu0 0
  %1829 = vmatmul.mubr.bf16.gmra.mrb[0].mxu0 %v1790
  %v1830 = vpop.f32.mrb[0].mxu0
  %v1831 = vadd.f32 0.0, %v1830
  %v1832 = vpop.f32.mrb[0].mxu0
  %v1833 = vadd.f32 0.0, %v1832
  %v1834 = vpop.f32.mrb[0].mxu0
  %v1835 = vpop.f32.mrb[0].mxu0
  %1836 = vdwg.mxu0
  %1837 = vmatprep.subr.bf16.mxu0 %v520
  %1838 = vmatpush1.bf16.msra.mxu0 %v519
  %1839 = vmatprep.subr.bf16.mxu0 %v524
  %1840 = vmatpush1.bf16.msra.mxu0 %v523
  %1841 = vmatprep.subr.bf16.mxu0 %v528
  %1842 = vmatpush1.bf16.msra.mxu0 %v527
  %1843 = vmatprep.subr.bf16.mxu0 %v532
  %1844 = vmatpush1.bf16.msra.mxu0 %v531
  %1845 = vmatprep.subr.bf16.mxu0 %v536
  %1846 = vmatpush1.bf16.msra.mxu0 %v535
  %1847 = vmatprep.subr.bf16.mxu0 %v540
  %1848 = vmatpush1.bf16.msra.mxu0 %v539
  %1849 = vmatprep.subr.bf16.mxu0 %v544
  %1850 = vmatpush1.bf16.msra.mxu0 %v543
  %1851 = vmatprep.subr.bf16.mxu0 %v548
  %1852 = vmatpush1.bf16.msra.mxu0 %v547
  %1853 = vmatprep.subr.bf16.mxu0 0
  %1854 = vmatpush1.bf16.msra.mxu0 0
  %1855 = vmatprep.subr.bf16.mxu0 0
  %1856 = vmatpush1.bf16.msra.mxu0 0
  %1857 = vmatprep.subr.bf16.mxu0 0
  %1858 = vmatpush1.bf16.msra.mxu0 0
  %1859 = vmatprep.subr.bf16.mxu0 0
  %1860 = vmatpush1.bf16.msra.mxu0 0
  %1861 = vmatprep.subr.bf16.mxu0 0
  %1862 = vmatpush1.bf16.msra.mxu0 0
  %1863 = vmatprep.subr.bf16.mxu0 0
  %1864 = vmatpush1.bf16.msra.mxu0 0
  %1865 = vmatprep.subr.bf16.mxu0 0
  %1866 = vmatpush1.bf16.msra.mxu0 0
  %1867 = vmatprep.subr.bf16.mxu0 0
  %1868 = vmatpush1.bf16.msra.mxu0 0
  %1869 = vmatprep.mubr.bf16.mxu0 0
  %1870 = vmatmul.mubr.bf16.gmra.mrb[0].mxu0 %v1790
  %v1871 = vpop.f32.mrb[0].mxu0
  %v1872 = vadd.f32 0.0, %v1871
  %v1873 = vpop.f32.mrb[0].mxu0
  %v1874 = vadd.f32 0.0, %v1873
  %v1875 = vpop.f32.mrb[0].mxu0
  %v1876 = vpop.f32.mrb[0].mxu0
  %1877 = vdwg.mxu0
  %v1878 = vadd.f32 %v1792, %v1831
  %v1879 = vadd.f32 %v1793, %v1833
  %v1880 = vadd.f32 %v1794, %v1872
  %v1881 = vadd.f32 %v1795, %v1874
  %v1882 = vmul.f32 %v1878, 0.5
  %v1883 = vmul.f32 %v1879, 0.5
  %v1884 = vmul.f32 %v1880, 0.5
  %v1885 = vtanh.pop %v1882
  %v1886 = vtanh.pop %v1883
  %v1887 = vtanh.pop %v1884
  %v1888 = vmul.f32 %v1885, 0.5
  %v1889 = vmul.f32 %v1886, 0.5
  %v1890 = vmul.f32 %v1887, 0.5
  %v1891 = vadd.f32 %v1888, 0.5
  %v1892 = vadd.f32 %v1889, 0.5
  %v1893 = vadd.f32 %v1890, 0.5
  %v1894 = vtanh.pop %v1881
  %v1895 = vmul.f32 %v1892, %v1673
  %v1896 = vmul.f32 %v1891, %v1894
  %v1897 = vadd.f32 %v1895, %v1896
  %v1898 = vtanh.pop %v1897
  %v1899 = vmul.f32 %v1893, %v1898
  %v1900 = vpack.c.bf16 %v1899, %v1899
  %1901 = vst [vmem:[#allocation3] sm:$0xf] %v1900
  %v1902 = vld [vmem:[#allocation3] sm:$0xff]
  %v1904 = vunpack.c.l.b16 %v1902
  %v1905 = vunpack.c.h.b16 %v1902
  %v1906 = vpack.c.b16 %v1904, %v1904
  %v1907 = vpack.c.b16 %v1905, %v1905
  %1910 = vmatprep.subr.bf16.mxu0 %v888
  %1911 = vmatpush1.bf16.msra.mxu0 %v887
  %1912 = vmatprep.subr.bf16.mxu0 %v892
  %1913 = vmatpush1.bf16.msra.mxu0 %v891
  %1914 = vmatprep.subr.bf16.mxu0 %v896
  %1915 = vmatpush1.bf16.msra.mxu0 %v895
  %1916 = vmatprep.subr.bf16.mxu0 %v900
  %1917 = vmatpush1.bf16.msra.mxu0 %v899
  %1918 = vmatprep.subr.bf16.mxu0 %v904
  %1919 = vmatpush1.bf16.msra.mxu0 %v903
  %1920 = vmatprep.subr.bf16.mxu0 %v908
  %1921 = vmatpush1.bf16.msra.mxu0 %v907
  %1922 = vmatprep.subr.bf16.mxu0 %v912
  %1923 = vmatpush1.bf16.msra.mxu0 %v911
  %1924 = vmatprep.subr.bf16.mxu0 %v916
  %1925 = vmatpush1.bf16.msra.mxu0 %v915
  %1926 = vmatprep.subr.bf16.mxu0 %v920
  %1927 = vmatpush1.bf16.msra.mxu0 %v919
  %1928 = vmatprep.subr.bf16.mxu0 %v924
  %1929 = vmatpush1.bf16.msra.mxu0 %v923
  %1930 = vmatprep.subr.bf16.mxu0 %v928
  %1931 = vmatpush1.bf16.msra.mxu0 %v927
  %1932 = vmatprep.subr.bf16.mxu0 %v932
  %1933 = vmatpush1.bf16.msra.mxu0 %v931
  %1934 = vmatprep.subr.bf16.mxu0 %v936
  %1935 = vmatpush1.bf16.msra.mxu0 %v935
  %1936 = vmatprep.subr.bf16.mxu0 %v940
  %1937 = vmatpush1.bf16.msra.mxu0 %v939
  %1938 = vmatprep.subr.bf16.mxu0 %v944
  %1939 = vmatpush1.bf16.msra.mxu0 %v943
  %1940 = vmatprep.subr.bf16.mxu0 %v948
  %1941 = vmatpush1.bf16.msra.mxu0 %v947
  %1942 = vmatprep.mubr.bf16.mxu0 %v1907
  %1943 = vmatmul.mubr.bf16.gmra.mrb[0].mxu0 %v1906
  %v1944 = vpop.f32.mrb[0].mxu0
  %v1945 = vadd.f32 %v397, %v1944
  %v1946 = vpop.f32.mrb[0].mxu0
  %v1947 = vadd.f32 %v401, %v1946
  %v1948 = vpop.f32.mrb[0].mxu0
  %v1949 = vpop.f32.mrb[0].mxu0
  %1950 = vdwg.mxu0
  %1951 = vmatprep.subr.bf16.mxu0 %v890
  %1952 = vmatpush1.bf16.msra.mxu0 %v889
  %1953 = vmatprep.subr.bf16.mxu0 %v894
  %1954 = vmatpush1.bf16.msra.mxu0 %v893
  %1955 = vmatprep.subr.bf16.mxu0 %v898
  %1956 = vmatpush1.bf16.msra.mxu0 %v897
  %1957 = vmatprep.subr.bf16.mxu0 %v902
  %1958 = vmatpush1.bf16.msra.mxu0 %v901
  %1959 = vmatprep.subr.bf16.mxu0 %v906
  %1960 = vmatpush1.bf16.msra.mxu0 %v905
  %1961 = vmatprep.subr.bf16.mxu0 %v910
  %1962 = vmatpush1.bf16.msra.mxu0 %v909
  %1963 = vmatprep.subr.bf16.mxu0 %v914
  %1964 = vmatpush1.bf16.msra.mxu0 %v913
  %1965 = vmatprep.subr.bf16.mxu0 %v918
  %1966 = vmatpush1.bf16.msra.mxu0 %v917
  %1967 = vmatprep.subr.bf16.mxu0 %v922
  %1968 = vmatpush1.bf16.msra.mxu0 %v921
  %1969 = vmatprep.subr.bf16.mxu0 %v926
  %1970 = vmatpush1.bf16.msra.mxu0 %v925
  %1971 = vmatprep.subr.bf16.mxu0 %v930
  %1972 = vmatpush1.bf16.msra.mxu0 %v929
  %1973 = vmatprep.subr.bf16.mxu0 %v934
  %1974 = vmatpush1.bf16.msra.mxu0 %v933
  %1975 = vmatprep.subr.bf16.mxu0 %v938
  %1976 = vmatpush1.bf16.msra.mxu0 %v937
  %1977 = vmatprep.subr.bf16.mxu0 %v942
  %1978 = vmatpush1.bf16.msra.mxu0 %v941
  %1979 = vmatprep.subr.bf16.mxu0 %v946
  %1980 = vmatpush1.bf16.msra.mxu0 %v945
  %1981 = vmatprep.subr.bf16.mxu0 %v950
  %1982 = vmatpush1.bf16.msra.mxu0 %v949
  %1983 = vmatprep.mubr.bf16.mxu0 %v1907
  %1984 = vmatmul.mubr.bf16.gmra.mrb[0].mxu0 %v1906
  %v1985 = vpop.f32.mrb[0].mxu0
  %v1986 = vadd.f32 %v405, %v1985
  %v1987 = vpop.f32.mrb[0].mxu0
  %v1988 = vadd.f32 %v409, %v1987
  %v1989 = vpop.f32.mrb[0].mxu0
  %v1990 = vpop.f32.mrb[0].mxu0
  %1991 = vdwg.mxu0
  %v1992 = vmul.f32 %v1945, 0.5
  %v1993 = vmul.f32 %v1947, 0.5
  %v1994 = vmul.f32 %v1986, 0.5
  %v1995 = vtanh.pop %v1992
  %v1996 = vtanh.pop %v1993
  %v1997 = vtanh.pop %v1994
  %v1998 = vmul.f32 %v1995, 0.5
  %v1999 = vmul.f32 %v1996, 0.5
  %v2000 = vmul.f32 %v1997, 0.5
  %v2001 = vadd.f32 %v1998, 0.5
  %v2002 = vadd.f32 %v1999, 0.5
  %v2003 = vadd.f32 %v2000, 0.5
  %v2004 = vtanh.pop %v1988
  %v2005 = vmul.f32 %v2002, %v1783
  %v2006 = vmul.f32 %v2001, %v2004
  %v2007 = vadd.f32 %v2005, %v2006
  %v2008 = vtanh.pop %v2007
  %v2009 = vmul.f32 %v2003, %v2008
  %s2010 = scalar_lea.vmem %s6, 32
  %2011 = vst [vmem:[%s2010] sm:$0xff] %v2009
  %v2012 = vpack.c.bf16 %v2009, %v2009
  %2013 = vst [vmem:[#allocation3 + $0x4] sm:$0xf] %v2012
  %v2014 = vld [vmem:[#allocation3] sm:$0xf]
  %s2015 = scalar_lea.vmem [#allocation2], 160
  %v2016 = vld [vmem:[%s2015] sm:$0xff]
  %v2017 = vld [vmem:[%s2015 + $0x8] sm:$0xff]
  %v2018 = vld [vmem:[%s2015 + $0x10] sm:$0xff]
  %v2019 = vld [vmem:[%s2015 + $0x18] sm:$0xff]
  %2020 = vmatprep.subr.bf16.mxu0 %v518
  %2021 = vmatpush1.bf16.msra.mxu0 %v517
  %2022 = vmatprep.subr.bf16.mxu0 %v522
  %2023 = vmatpush1.bf16.msra.mxu0 %v521
  %2024 = vmatprep.subr.bf16.mxu0 %v526
  %2025 = vmatpush1.bf16.msra.mxu0 %v525
  %2026 = vmatprep.subr.bf16.mxu0 %v530
  %2027 = vmatpush1.bf16.msra.mxu0 %v529
  %2028 = vmatprep.subr.bf16.mxu0 %v534
  %2029 = vmatpush1.bf16.msra.mxu0 %v533
  %2030 = vmatprep.subr.bf16.mxu0 %v538
  %2031 = vmatpush1.bf16.msra.mxu0 %v537
  %2032 = vmatprep.subr.bf16.mxu0 %v542
  %2033 = vmatpush1.bf16.msra.mxu0 %v541
  %2034 = vmatprep.subr.bf16.mxu0 %v546
  %2035 = vmatpush1.bf16.msra.mxu0 %v545
  %2036 = vmatprep.subr.bf16.mxu0 0
  %2037 = vmatpush1.bf16.msra.mxu0 0
  %2038 = vmatprep.subr.bf16.mxu0 0
  %2039 = vmatpush1.bf16.msra.mxu0 0
  %2040 = vmatprep.subr.bf16.mxu0 0
  %2041 = vmatpush1.bf16.msra.mxu0 0
  %2042 = vmatprep.subr.bf16.mxu0 0
  %2043 = vmatpush1.bf16.msra.mxu0 0
  %2044 = vmatprep.subr.bf16.mxu0 0
  %2045 = vmatpush1.bf16.msra.mxu0 0
  %2046 = vmatprep.subr.bf16.mxu0 0
  %2047 = vmatpush1.bf16.msra.mxu0 0
  %2048 = vmatprep.subr.bf16.mxu0 0
  %2049 = vmatpush1.bf16.msra.mxu0 0
  %2050 = vmatprep.subr.bf16.mxu0 0
  %2051 = vmatpush1.bf16.msra.mxu0 0
  %2052 = vmatprep.mubr.bf16.mxu0 0
  %2053 = vmatmul.mubr.bf16.gmra.mrb[0].mxu0 %v2014
  %v2054 = vpop.f32.mrb[0].mxu0
  %v2055 = vadd.f32 0.0, %v2054
  %v2056 = vpop.f32.mrb[0].mxu0
  %v2057 = vadd.f32 0.0, %v2056
  %v2058 = vpop.f32.mrb[0].mxu0
  %v2059 = vpop.f32.mrb[0].mxu0
  %2060 = vdwg.mxu0
  %2061 = vmatprep.subr.bf16.mxu0 %v520
  %2062 = vmatpush1.bf16.msra.mxu0 %v519
  %2063 = vmatprep.subr.bf16.mxu0 %v524
  %2064 = vmatpush1.bf16.msra.mxu0 %v523
  %2065 = vmatprep.subr.bf16.mxu0 %v528
  %2066 = vmatpush1.bf16.msra.mxu0 %v527
  %2067 = vmatprep.subr.bf16.mxu0 %v532
  %2068 = vmatpush1.bf16.msra.mxu0 %v531
  %2069 = vmatprep.subr.bf16.mxu0 %v536
  %2070 = vmatpush1.bf16.msra.mxu0 %v535
  %2071 = vmatprep.subr.bf16.mxu0 %v540
  %2072 = vmatpush1.bf16.msra.mxu0 %v539
  %2073 = vmatprep.subr.bf16.mxu0 %v544
  %2074 = vmatpush1.bf16.msra.mxu0 %v543
  %2075 = vmatprep.subr.bf16.mxu0 %v548
  %2076 = vmatpush1.bf16.msra.mxu0 %v547
  %2077 = vmatprep.subr.bf16.mxu0 0
  %2078 = vmatpush1.bf16.msra.mxu0 0
  %2079 = vmatprep.subr.bf16.mxu0 0
  %2080 = vmatpush1.bf16.msra.mxu0 0
  %2081 = vmatprep.subr.bf16.mxu0 0
  %2082 = vmatpush1.bf16.msra.mxu0 0
  %2083 = vmatprep.subr.bf16.mxu0 0
  %2084 = vmatpush1.bf16.msra.mxu0 0
  %2085 = vmatprep.subr.bf16.mxu0 0
  %2086 = vmatpush1.bf16.msra.mxu0 0
  %2087 = vmatprep.subr.bf16.mxu0 0
  %2088 = vmatpush1.bf16.msra.mxu0 0
  %2089 = vmatprep.subr.bf16.mxu0 0
  %2090 = vmatpush1.bf16.msra.mxu0 0
  %2091 = vmatprep.subr.bf16.mxu0 0
  %2092 = vmatpush1.bf16.msra.mxu0 0
  %2093 = vmatprep.mubr.bf16.mxu0 0
  %2094 = vmatmul.mubr.bf16.gmra.mrb[0].mxu0 %v2014
  %v2095 = vpop.f32.mrb[0].mxu0
  %v2096 = vadd.f32 0.0, %v2095
  %v2097 = vpop.f32.mrb[0].mxu0
  %v2098 = vadd.f32 0.0, %v2097
  %v2099 = vpop.f32.mrb[0].mxu0
  %v2100 = vpop.f32.mrb[0].mxu0
  %2101 = vdwg.mxu0
  %v2102 = vadd.f32 %v2016, %v2055
  %v2103 = vadd.f32 %v2017, %v2057
  %v2104 = vadd.f32 %v2018, %v2096
  %v2105 = vadd.f32 %v2019, %v2098
  %v2106 = vmul.f32 %v2102, 0.5
  %v2107 = vmul.f32 %v2103, 0.5
  %v2108 = vmul.f32 %v2104, 0.5
  %v2109 = vtanh.pop %v2106
  %v2110 = vtanh.pop %v2107
  %v2111 = vtanh.pop %v2108
  %v2112 = vmul.f32 %v2109, 0.5
  %v2113 = vmul.f32 %v2110, 0.5
  %v2114 = vmul.f32 %v2111, 0.5
  %v2115 = vadd.f32 %v2112, 0.5
  %v2116 = vadd.f32 %v2113, 0.5
  %v2117 = vadd.f32 %v2114, 0.5
  %v2118 = vtanh.pop %v2105
  %v2119 = vmul.f32 %v2116, %v1897
  %v2120 = vmul.f32 %v2115, %v2118
  %v2121 = vadd.f32 %v2119, %v2120
  %v2122 = vtanh.pop %v2121
  %v2123 = vmul.f32 %v2117, %v2122
  %v2124 = vpack.c.bf16 %v2123, %v2123
  %2125 = vst [vmem:[#allocation3] sm:$0xf] %v2124
  %v2126 = vld [vmem:[#allocation3] sm:$0xff]
  %v2128 = vunpack.c.l.b16 %v2126
  %v2129 = vunpack.c.h.b16 %v2126
  %v2130 = vpack.c.b16 %v2128, %v2128
  %v2131 = vpack.c.b16 %v2129, %v2129
  %2134 = vmatprep.subr.bf16.mxu0 %v888
  %2135 = vmatpush1.bf16.msra.mxu0 %v887
  %2136 = vmatprep.subr.bf16.mxu0 %v892
  %2137 = vmatpush1.bf16.msra.mxu0 %v891
  %2138 = vmatprep.subr.bf16.mxu0 %v896
  %2139 = vmatpush1.bf16.msra.mxu0 %v895
  %2140 = vmatprep.subr.bf16.mxu0 %v900
  %2141 = vmatpush1.bf16.msra.mxu0 %v899
  %2142 = vmatprep.subr.bf16.mxu0 %v904
  %2143 = vmatpush1.bf16.msra.mxu0 %v903
  %2144 = vmatprep.subr.bf16.mxu0 %v908
  %2145 = vmatpush1.bf16.msra.mxu0 %v907
  %2146 = vmatprep.subr.bf16.mxu0 %v912
  %2147 = vmatpush1.bf16.msra.mxu0 %v911
  %2148 = vmatprep.subr.bf16.mxu0 %v916
  %2149 = vmatpush1.bf16.msra.mxu0 %v915
  %2150 = vmatprep.subr.bf16.mxu0 %v920
  %2151 = vmatpush1.bf16.msra.mxu0 %v919
  %2152 = vmatprep.subr.bf16.mxu0 %v924
  %2153 = vmatpush1.bf16.msra.mxu0 %v923
  %2154 = vmatprep.subr.bf16.mxu0 %v928
  %2155 = vmatpush1.bf16.msra.mxu0 %v927
  %2156 = vmatprep.subr.bf16.mxu0 %v932
  %2157 = vmatpush1.bf16.msra.mxu0 %v931
  %2158 = vmatprep.subr.bf16.mxu0 %v936
  %2159 = vmatpush1.bf16.msra.mxu0 %v935
  %2160 = vmatprep.subr.bf16.mxu0 %v940
  %2161 = vmatpush1.bf16.msra.mxu0 %v939
  %2162 = vmatprep.subr.bf16.mxu0 %v944
  %2163 = vmatpush1.bf16.msra.mxu0 %v943
  %2164 = vmatprep.subr.bf16.mxu0 %v948
  %2165 = vmatpush1.bf16.msra.mxu0 %v947
  %2166 = vmatprep.mubr.bf16.mxu0 %v2131
  %2167 = vmatmul.mubr.bf16.gmra.mrb[0].mxu0 %v2130
  %v2168 = vpop.f32.mrb[0].mxu0
  %v2169 = vadd.f32 %v397, %v2168
  %v2170 = vpop.f32.mrb[0].mxu0
  %v2171 = vadd.f32 %v401, %v2170
  %v2172 = vpop.f32.mrb[0].mxu0
  %v2173 = vpop.f32.mrb[0].mxu0
  %2174 = vdwg.mxu0
  %2175 = vmatprep.subr.bf16.mxu0 %v890
  %2176 = vmatpush1.bf16.msra.mxu0 %v889
  %2177 = vmatprep.subr.bf16.mxu0 %v894
  %2178 = vmatpush1.bf16.msra.mxu0 %v893
  %2179 = vmatprep.subr.bf16.mxu0 %v898
  %2180 = vmatpush1.bf16.msra.mxu0 %v897
  %2181 = vmatprep.subr.bf16.mxu0 %v902
  %2182 = vmatpush1.bf16.msra.mxu0 %v901
  %2183 = vmatprep.subr.bf16.mxu0 %v906
  %2184 = vmatpush1.bf16.msra.mxu0 %v905
  %2185 = vmatprep.subr.bf16.mxu0 %v910
  %2186 = vmatpush1.bf16.msra.mxu0 %v909
  %2187 = vmatprep.subr.bf16.mxu0 %v914
  %2188 = vmatpush1.bf16.msra.mxu0 %v913
  %2189 = vmatprep.subr.bf16.mxu0 %v918
  %2190 = vmatpush1.bf16.msra.mxu0 %v917
  %2191 = vmatprep.subr.bf16.mxu0 %v922
  %2192 = vmatpush1.bf16.msra.mxu0 %v921
  %2193 = vmatprep.subr.bf16.mxu0 %v926
  %2194 = vmatpush1.bf16.msra.mxu0 %v925
  %2195 = vmatprep.subr.bf16.mxu0 %v930
  %2196 = vmatpush1.bf16.msra.mxu0 %v929
  %2197 = vmatprep.subr.bf16.mxu0 %v934
  %2198 = vmatpush1.bf16.msra.mxu0 %v933
  %2199 = vmatprep.subr.bf16.mxu0 %v938
  %2200 = vmatpush1.bf16.msra.mxu0 %v937
  %2201 = vmatprep.subr.bf16.mxu0 %v942
  %2202 = vmatpush1.bf16.msra.mxu0 %v941
  %2203 = vmatprep.subr.bf16.mxu0 %v946
  %2204 = vmatpush1.bf16.msra.mxu0 %v945
  %2205 = vmatprep.subr.bf16.mxu0 %v950
  %2206 = vmatpush1.bf16.msra.mxu0 %v949
  %2207 = vmatprep.mubr.bf16.mxu0 %v2131
  %2208 = vmatmul.mubr.bf16.gmra.mrb[0].mxu0 %v2130
  %v2209 = vpop.f32.mrb[0].mxu0
  %v2210 = vadd.f32 %v405, %v2209
  %v2211 = vpop.f32.mrb[0].mxu0
  %v2212 = vadd.f32 %v409, %v2211
  %v2213 = vpop.f32.mrb[0].mxu0
  %v2214 = vpop.f32.mrb[0].mxu0
  %2215 = vdwg.mxu0
  %v2216 = vmul.f32 %v2169, 0.5
  %v2217 = vmul.f32 %v2171, 0.5
  %v2218 = vmul.f32 %v2210, 0.5
  %v2219 = vtanh.pop %v2216
  %v2220 = vtanh.pop %v2217
  %v2221 = vtanh.pop %v2218
  %v2222 = vmul.f32 %v2219, 0.5
  %v2223 = vmul.f32 %v2220, 0.5
  %v2224 = vmul.f32 %v2221, 0.5
  %v2225 = vadd.f32 %v2222, 0.5
  %v2226 = vadd.f32 %v2223, 0.5
  %v2227 = vadd.f32 %v2224, 0.5
  %v2228 = vtanh.pop %v2212
  %v2229 = vmul.f32 %v2226, %v2007
  %v2230 = vmul.f32 %v2225, %v2228
  %v2231 = vadd.f32 %v2229, %v2230
  %v2232 = vtanh.pop %v2231
  %v2233 = vmul.f32 %v2227, %v2232
  %s2234 = scalar_lea.vmem %s6, 40
  %2235 = vst [vmem:[%s2234] sm:$0xff] %v2233
  %v2236 = vpack.c.bf16 %v2233, %v2233
  %2237 = vst [vmem:[#allocation3 + $0x4] sm:$0xf] %v2236
  %v2238 = vld [vmem:[#allocation3] sm:$0xf]
  %s2239 = scalar_lea.vmem [#allocation2], 192
  %v2240 = vld [vmem:[%s2239] sm:$0xff]
  %v2241 = vld [vmem:[%s2239 + $0x8] sm:$0xff]
  %v2242 = vld [vmem:[%s2239 + $0x10] sm:$0xff]
  %v2243 = vld [vmem:[%s2239 + $0x18] sm:$0xff]
  %2244 = vmatprep.subr.bf16.mxu0 %v518
  %2245 = vmatpush1.bf16.msra.mxu0 %v517
  %2246 = vmatprep.subr.bf16.mxu0 %v522
  %2247 = vmatpush1.bf16.msra.mxu0 %v521
  %2248 = vmatprep.subr.bf16.mxu0 %v526
  %2249 = vmatpush1.bf16.msra.mxu0 %v525
  %2250 = vmatprep.subr.bf16.mxu0 %v530
  %2251 = vmatpush1.bf16.msra.mxu0 %v529
  %2252 = vmatprep.subr.bf16.mxu0 %v534
  %2253 = vmatpush1.bf16.msra.mxu0 %v533
  %2254 = vmatprep.subr.bf16.mxu0 %v538
  %2255 = vmatpush1.bf16.msra.mxu0 %v537
  %2256 = vmatprep.subr.bf16.mxu0 %v542
  %2257 = vmatpush1.bf16.msra.mxu0 %v541
  %2258 = vmatprep.subr.bf16.mxu0 %v546
  %2259 = vmatpush1.bf16.msra.mxu0 %v545
  %2260 = vmatprep.subr.bf16.mxu0 0
  %2261 = vmatpush1.bf16.msra.mxu0 0
  %2262 = vmatprep.subr.bf16.mxu0 0
  %2263 = vmatpush1.bf16.msra.mxu0 0
  %2264 = vmatprep.subr.bf16.mxu0 0
  %2265 = vmatpush1.bf16.msra.mxu0 0
  %2266 = vmatprep.subr.bf16.mxu0 0
  %2267 = vmatpush1.bf16.msra.mxu0 0
  %2268 = vmatprep.subr.bf16.mxu0 0
  %2269 = vmatpush1.bf16.msra.mxu0 0
  %2270 = vmatprep.subr.bf16.mxu0 0
  %2271 = vmatpush1.bf16.msra.mxu0 0
  %2272 = vmatprep.subr.bf16.mxu0 0
  %2273 = vmatpush1.bf16.msra.mxu0 0
  %2274 = vmatprep.subr.bf16.mxu0 0
  %2275 = vmatpush1.bf16.msra.mxu0 0
  %2276 = vmatprep.mubr.bf16.mxu0 0
  %2277 = vmatmul.mubr.bf16.gmra.mrb[0].mxu0 %v2238
  %v2278 = vpop.f32.mrb[0].mxu0
  %v2279 = vadd.f32 0.0, %v2278
  %v2280 = vpop.f32.mrb[0].mxu0
  %v2281 = vadd.f32 0.0, %v2280
  %v2282 = vpop.f32.mrb[0].mxu0
  %v2283 = vpop.f32.mrb[0].mxu0
  %2284 = vdwg.mxu0
  %2285 = vmatprep.subr.bf16.mxu0 %v520
  %2286 = vmatpush1.bf16.msra.mxu0 %v519
  %2287 = vmatprep.subr.bf16.mxu0 %v524
  %2288 = vmatpush1.bf16.msra.mxu0 %v523
  %2289 = vmatprep.subr.bf16.mxu0 %v528
  %2290 = vmatpush1.bf16.msra.mxu0 %v527
  %2291 = vmatprep.subr.bf16.mxu0 %v532
  %2292 = vmatpush1.bf16.msra.mxu0 %v531
  %2293 = vmatprep.subr.bf16.mxu0 %v536
  %2294 = vmatpush1.bf16.msra.mxu0 %v535
  %2295 = vmatprep.subr.bf16.mxu0 %v540
  %2296 = vmatpush1.bf16.msra.mxu0 %v539
  %2297 = vmatprep.subr.bf16.mxu0 %v544
  %2298 = vmatpush1.bf16.msra.mxu0 %v543
  %2299 = vmatprep.subr.bf16.mxu0 %v548
  %2300 = vmatpush1.bf16.msra.mxu0 %v547
  %2301 = vmatprep.subr.bf16.mxu0 0
  %2302 = vmatpush1.bf16.msra.mxu0 0
  %2303 = vmatprep.subr.bf16.mxu0 0
  %2304 = vmatpush1.bf16.msra.mxu0 0
  %2305 = vmatprep.subr.bf16.mxu0 0
  %2306 = vmatpush1.bf16.msra.mxu0 0
  %2307 = vmatprep.subr.bf16.mxu0 0
  %2308 = vmatpush1.bf16.msra.mxu0 0
  %2309 = vmatprep.subr.bf16.mxu0 0
  %2310 = vmatpush1.bf16.msra.mxu0 0
  %2311 = vmatprep.subr.bf16.mxu0 0
  %2312 = vmatpush1.bf16.msra.mxu0 0
  %2313 = vmatprep.subr.bf16.mxu0 0
  %2314 = vmatpush1.bf16.msra.mxu0 0
  %2315 = vmatprep.subr.bf16.mxu0 0
  %2316 = vmatpush1.bf16.msra.mxu0 0
  %2317 = vmatprep.mubr.bf16.mxu0 0
  %2318 = vmatmul.mubr.bf16.gmra.mrb[0].mxu0 %v2238
  %v2319 = vpop.f32.mrb[0].mxu0
  %v2320 = vadd.f32 0.0, %v2319
  %v2321 = vpop.f32.mrb[0].mxu0
  %v2322 = vadd.f32 0.0, %v2321
  %v2323 = vpop.f32.mrb[0].mxu0
  %v2324 = vpop.f32.mrb[0].mxu0
  %2325 = vdwg.mxu0
  %v2326 = vadd.f32 %v2240, %v2279
  %v2327 = vadd.f32 %v2241, %v2281
  %v2328 = vadd.f32 %v2242, %v2320
  %v2329 = vadd.f32 %v2243, %v2322
  %v2330 = vmul.f32 %v2326, 0.5
  %v2331 = vmul.f32 %v2327, 0.5
  %v2332 = vmul.f32 %v2328, 0.5
  %v2333 = vtanh.pop %v2330
  %v2334 = vtanh.pop %v2331
  %v2335 = vtanh.pop %v2332
  %v2336 = vmul.f32 %v2333, 0.5
  %v2337 = vmul.f32 %v2334, 0.5
  %v2338 = vmul.f32 %v2335, 0.5
  %v2339 = vadd.f32 %v2336, 0.5
  %v2340 = vadd.f32 %v2337, 0.5
  %v2341 = vadd.f32 %v2338, 0.5
  %v2342 = vtanh.pop %v2329
  %v2343 = vmul.f32 %v2340, %v2121
  %v2344 = vmul.f32 %v2339, %v2342
  %v2345 = vadd.f32 %v2343, %v2344
  %v2346 = vtanh.pop %v2345
  %v2347 = vmul.f32 %v2341, %v2346
  %v2348 = vpack.c.bf16 %v2347, %v2347
  %2349 = vst [vmem:[#allocation3] sm:$0xf] %v2348
  %v2350 = vld [vmem:[#allocation3] sm:$0xff]
  %v2352 = vunpack.c.l.b16 %v2350
  %v2353 = vunpack.c.h.b16 %v2350
  %v2354 = vpack.c.b16 %v2352, %v2352
  %v2355 = vpack.c.b16 %v2353, %v2353
  %2358 = vmatprep.subr.bf16.mxu0 %v888
  %2359 = vmatpush1.bf16.msra.mxu0 %v887
  %2360 = vmatprep.subr.bf16.mxu0 %v892
  %2361 = vmatpush1.bf16.msra.mxu0 %v891
  %2362 = vmatprep.subr.bf16.mxu0 %v896
  %2363 = vmatpush1.bf16.msra.mxu0 %v895
  %2364 = vmatprep.subr.bf16.mxu0 %v900
  %2365 = vmatpush1.bf16.msra.mxu0 %v899
  %2366 = vmatprep.subr.bf16.mxu0 %v904
  %2367 = vmatpush1.bf16.msra.mxu0 %v903
  %2368 = vmatprep.subr.bf16.mxu0 %v908
  %2369 = vmatpush1.bf16.msra.mxu0 %v907
  %2370 = vmatprep.subr.bf16.mxu0 %v912
  %2371 = vmatpush1.bf16.msra.mxu0 %v911
  %2372 = vmatprep.subr.bf16.mxu0 %v916
  %2373 = vmatpush1.bf16.msra.mxu0 %v915
  %2374 = vmatprep.subr.bf16.mxu0 %v920
  %2375 = vmatpush1.bf16.msra.mxu0 %v919
  %2376 = vmatprep.subr.bf16.mxu0 %v924
  %2377 = vmatpush1.bf16.msra.mxu0 %v923
  %2378 = vmatprep.subr.bf16.mxu0 %v928
  %2379 = vmatpush1.bf16.msra.mxu0 %v927
  %2380 = vmatprep.subr.bf16.mxu0 %v932
  %2381 = vmatpush1.bf16.msra.mxu0 %v931
  %2382 = vmatprep.subr.bf16.mxu0 %v936
  %2383 = vmatpush1.bf16.msra.mxu0 %v935
  %2384 = vmatprep.subr.bf16.mxu0 %v940
  %2385 = vmatpush1.bf16.msra.mxu0 %v939
  %2386 = vmatprep.subr.bf16.mxu0 %v944
  %2387 = vmatpush1.bf16.msra.mxu0 %v943
  %2388 = vmatprep.subr.bf16.mxu0 %v948
  %2389 = vmatpush1.bf16.msra.mxu0 %v947
  %2390 = vmatprep.mubr.bf16.mxu0 %v2355
  %2391 = vmatmul.mubr.bf16.gmra.mrb[0].mxu0 %v2354
  %v2392 = vpop.f32.mrb[0].mxu0
  %v2393 = vadd.f32 %v397, %v2392
  %v2394 = vpop.f32.mrb[0].mxu0
  %v2395 = vadd.f32 %v401, %v2394
  %v2396 = vpop.f32.mrb[0].mxu0
  %v2397 = vpop.f32.mrb[0].mxu0
  %2398 = vdwg.mxu0
  %2399 = vmatprep.subr.bf16.mxu0 %v890
  %2400 = vmatpush1.bf16.msra.mxu0 %v889
  %2401 = vmatprep.subr.bf16.mxu0 %v894
  %2402 = vmatpush1.bf16.msra.mxu0 %v893
  %2403 = vmatprep.subr.bf16.mxu0 %v898
  %2404 = vmatpush1.bf16.msra.mxu0 %v897
  %2405 = vmatprep.subr.bf16.mxu0 %v902
  %2406 = vmatpush1.bf16.msra.mxu0 %v901
  %2407 = vmatprep.subr.bf16.mxu0 %v906
  %2408 = vmatpush1.bf16.msra.mxu0 %v905
  %2409 = vmatprep.subr.bf16.mxu0 %v910
  %2410 = vmatpush1.bf16.msra.mxu0 %v909
  %2411 = vmatprep.subr.bf16.mxu0 %v914
  %2412 = vmatpush1.bf16.msra.mxu0 %v913
  %2413 = vmatprep.subr.bf16.mxu0 %v918
  %2414 = vmatpush1.bf16.msra.mxu0 %v917
  %2415 = vmatprep.subr.bf16.mxu0 %v922
  %2416 = vmatpush1.bf16.msra.mxu0 %v921
  %2417 = vmatprep.subr.bf16.mxu0 %v926
  %2418 = vmatpush1.bf16.msra.mxu0 %v925
  %2419 = vmatprep.subr.bf16.mxu0 %v930
  %2420 = vmatpush1.bf16.msra.mxu0 %v929
  %2421 = vmatprep.subr.bf16.mxu0 %v934
  %2422 = vmatpush1.bf16.msra.mxu0 %v933
  %2423 = vmatprep.subr.bf16.mxu0 %v938
  %2424 = vmatpush1.bf16.msra.mxu0 %v937
  %2425 = vmatprep.subr.bf16.mxu0 %v942
  %2426 = vmatpush1.bf16.msra.mxu0 %v941
  %2427 = vmatprep.subr.bf16.mxu0 %v946
  %2428 = vmatpush1.bf16.msra.mxu0 %v945
  %2429 = vmatprep.subr.bf16.mxu0 %v950
  %2430 = vmatpush1.bf16.msra.mxu0 %v949
  %2431 = vmatprep.mubr.bf16.mxu0 %v2355
  %2432 = vmatmul.mubr.bf16.gmra.mrb[0].mxu0 %v2354
  %v2433 = vpop.f32.mrb[0].mxu0
  %v2434 = vadd.f32 %v405, %v2433
  %v2435 = vpop.f32.mrb[0].mxu0
  %v2436 = vadd.f32 %v409, %v2435
  %v2437 = vpop.f32.mrb[0].mxu0
  %v2438 = vpop.f32.mrb[0].mxu0
  %2439 = vdwg.mxu0
  %v2440 = vmul.f32 %v2393, 0.5
  %v2441 = vmul.f32 %v2395, 0.5
  %v2442 = vmul.f32 %v2434, 0.5
  %v2443 = vtanh.pop %v2440
  %v2444 = vtanh.pop %v2441
  %v2445 = vtanh.pop %v2442
  %v2446 = vmul.f32 %v2443, 0.5
  %v2447 = vmul.f32 %v2444, 0.5
  %v2448 = vmul.f32 %v2445, 0.5
  %v2449 = vadd.f32 %v2446, 0.5
  %v2450 = vadd.f32 %v2447, 0.5
  %v2451 = vadd.f32 %v2448, 0.5
  %v2452 = vtanh.pop %v2436
  %v2453 = vmul.f32 %v2450, %v2231
  %v2454 = vmul.f32 %v2449, %v2452
  %v2455 = vadd.f32 %v2453, %v2454
  %v2456 = vtanh.pop %v2455
  %v2457 = vmul.f32 %v2451, %v2456
  %s2458 = scalar_lea.vmem %s6, 48
  %2459 = vst [vmem:[%s2458] sm:$0xff] %v2457
  %v2460 = vpack.c.bf16 %v2457, %v2457
  %2461 = vst [vmem:[#allocation3 + $0x4] sm:$0xf] %v2460
  %v2462 = vld [vmem:[#allocation3] sm:$0xf]
  %s2463 = scalar_lea.vmem [#allocation2], 224
  %v2464 = vld [vmem:[%s2463] sm:$0xff]
  %v2465 = vld [vmem:[%s2463 + $0x8] sm:$0xff]
  %v2466 = vld [vmem:[%s2463 + $0x10] sm:$0xff]
  %v2467 = vld [vmem:[%s2463 + $0x18] sm:$0xff]
  %2468 = vmatprep.subr.bf16.mxu0 %v518
  %2469 = vmatpush1.bf16.msra.mxu0 %v517
  %2470 = vmatprep.subr.bf16.mxu0 %v522
  %2471 = vmatpush1.bf16.msra.mxu0 %v521
  %2472 = vmatprep.subr.bf16.mxu0 %v526
  %2473 = vmatpush1.bf16.msra.mxu0 %v525
  %2474 = vmatprep.subr.bf16.mxu0 %v530
  %2475 = vmatpush1.bf16.msra.mxu0 %v529
  %2476 = vmatprep.subr.bf16.mxu0 %v534
  %2477 = vmatpush1.bf16.msra.mxu0 %v533
  %2478 = vmatprep.subr.bf16.mxu0 %v538
  %2479 = vmatpush1.bf16.msra.mxu0 %v537
  %2480 = vmatprep.subr.bf16.mxu0 %v542
  %2481 = vmatpush1.bf16.msra.mxu0 %v541
  %2482 = vmatprep.subr.bf16.mxu0 %v546
  %2483 = vmatpush1.bf16.msra.mxu0 %v545
  %2484 = vmatprep.subr.bf16.mxu0 0
  %2485 = vmatpush1.bf16.msra.mxu0 0
  %2486 = vmatprep.subr.bf16.mxu0 0
  %2487 = vmatpush1.bf16.msra.mxu0 0
  %2488 = vmatprep.subr.bf16.mxu0 0
  %2489 = vmatpush1.bf16.msra.mxu0 0
  %2490 = vmatprep.subr.bf16.mxu0 0
  %2491 = vmatpush1.bf16.msra.mxu0 0
  %2492 = vmatprep.subr.bf16.mxu0 0
  %2493 = vmatpush1.bf16.msra.mxu0 0
  %2494 = vmatprep.subr.bf16.mxu0 0
  %2495 = vmatpush1.bf16.msra.mxu0 0
  %2496 = vmatprep.subr.bf16.mxu0 0
  %2497 = vmatpush1.bf16.msra.mxu0 0
  %2498 = vmatprep.subr.bf16.mxu0 0
  %2499 = vmatpush1.bf16.msra.mxu0 0
  %2500 = vmatprep.mubr.bf16.mxu0 0
  %2501 = vmatmul.mubr.bf16.gmra.mrb[0].mxu0 %v2462
  %v2502 = vpop.f32.mrb[0].mxu0
  %v2503 = vadd.f32 0.0, %v2502
  %v2504 = vpop.f32.mrb[0].mxu0
  %v2505 = vadd.f32 0.0, %v2504
  %v2506 = vpop.f32.mrb[0].mxu0
  %v2507 = vpop.f32.mrb[0].mxu0
  %2508 = vdwg.mxu0
  %2509 = vmatprep.subr.bf16.mxu0 %v520
  %2510 = vmatpush1.bf16.msra.mxu0 %v519
  %2511 = vmatprep.subr.bf16.mxu0 %v524
  %2512 = vmatpush1.bf16.msra.mxu0 %v523
  %2513 = vmatprep.subr.bf16.mxu0 %v528
  %2514 = vmatpush1.bf16.msra.mxu0 %v527
  %2515 = vmatprep.subr.bf16.mxu0 %v532
  %2516 = vmatpush1.bf16.msra.mxu0 %v531
  %2517 = vmatprep.subr.bf16.mxu0 %v536
  %2518 = vmatpush1.bf16.msra.mxu0 %v535
  %2519 = vmatprep.subr.bf16.mxu0 %v540
  %2520 = vmatpush1.bf16.msra.mxu0 %v539
  %2521 = vmatprep.subr.bf16.mxu0 %v544
  %2522 = vmatpush1.bf16.msra.mxu0 %v543
  %2523 = vmatprep.subr.bf16.mxu0 %v548
  %2524 = vmatpush1.bf16.msra.mxu0 %v547
  %2525 = vmatprep.subr.bf16.mxu0 0
  %2526 = vmatpush1.bf16.msra.mxu0 0
  %2527 = vmatprep.subr.bf16.mxu0 0
  %2528 = vmatpush1.bf16.msra.mxu0 0
  %2529 = vmatprep.subr.bf16.mxu0 0
  %2530 = vmatpush1.bf16.msra.mxu0 0
  %2531 = vmatprep.subr.bf16.mxu0 0
  %2532 = vmatpush1.bf16.msra.mxu0 0
  %2533 = vmatprep.subr.bf16.mxu0 0
  %2534 = vmatpush1.bf16.msra.mxu0 0
  %2535 = vmatprep.subr.bf16.mxu0 0
  %2536 = vmatpush1.bf16.msra.mxu0 0
  %2537 = vmatprep.subr.bf16.mxu0 0
  %2538 = vmatpush1.bf16.msra.mxu0 0
  %2539 = vmatprep.subr.bf16.mxu0 0
  %2540 = vmatpush1.bf16.msra.mxu0 0
  %2541 = vmatprep.mubr.bf16.mxu0 0
  %2542 = vmatmul.mubr.bf16.gmra.mrb[0].mxu0 %v2462
  %v2543 = vpop.f32.mrb[0].mxu0
  %v2544 = vadd.f32 0.0, %v2543
  %v2545 = vpop.f32.mrb[0].mxu0
  %v2546 = vadd.f32 0.0, %v2545
  %v2547 = vpop.f32.mrb[0].mxu0
  %v2548 = vpop.f32.mrb[0].mxu0
  %2549 = vdwg.mxu0
  %v2550 = vadd.f32 %v2464, %v2503
  %v2551 = vadd.f32 %v2465, %v2505
  %v2552 = vadd.f32 %v2466, %v2544
  %v2553 = vadd.f32 %v2467, %v2546
  %v2554 = vmul.f32 %v2550, 0.5
  %v2555 = vmul.f32 %v2551, 0.5
  %v2556 = vmul.f32 %v2552, 0.5
  %v2557 = vtanh.pop %v2554
  %v2558 = vtanh.pop %v2555
  %v2559 = vtanh.pop %v2556
  %v2560 = vmul.f32 %v2557, 0.5
  %v2561 = vmul.f32 %v2558, 0.5
  %v2562 = vmul.f32 %v2559, 0.5
  %v2563 = vadd.f32 %v2560, 0.5
  %v2564 = vadd.f32 %v2561, 0.5
  %v2565 = vadd.f32 %v2562, 0.5
  %v2566 = vtanh.pop %v2553
  %v2567 = vmul.f32 %v2564, %v2345
  %v2568 = vmul.f32 %v2563, %v2566
  %v2569 = vadd.f32 %v2567, %v2568
  %v2570 = vtanh.pop %v2569
  %v2571 = vmul.f32 %v2565, %v2570
  %v2572 = vpack.c.bf16 %v2571, %v2571
  %2573 = vst [vmem:[#allocation3] sm:$0xf] %v2572
  %v2574 = vld [vmem:[#allocation3] sm:$0xff]
  %v2576 = vunpack.c.l.b16 %v2574
  %v2577 = vunpack.c.h.b16 %v2574
  %v2578 = vpack.c.b16 %v2576, %v2576
  %v2579 = vpack.c.b16 %v2577, %v2577
  %2582 = vmatprep.subr.bf16.mxu0 %v888
  %2583 = vmatpush1.bf16.msra.mxu0 %v887
  %2584 = vmatprep.subr.bf16.mxu0 %v892
  %2585 = vmatpush1.bf16.msra.mxu0 %v891
  %2586 = vmatprep.subr.bf16.mxu0 %v896
  %2587 = vmatpush1.bf16.msra.mxu0 %v895
  %2588 = vmatprep.subr.bf16.mxu0 %v900
  %2589 = vmatpush1.bf16.msra.mxu0 %v899
  %2590 = vmatprep.subr.bf16.mxu0 %v904
  %2591 = vmatpush1.bf16.msra.mxu0 %v903
  %2592 = vmatprep.subr.bf16.mxu0 %v908
  %2593 = vmatpush1.bf16.msra.mxu0 %v907
  %2594 = vmatprep.subr.bf16.mxu0 %v912
  %2595 = vmatpush1.bf16.msra.mxu0 %v911
  %2596 = vmatprep.subr.bf16.mxu0 %v916
  %2597 = vmatpush1.bf16.msra.mxu0 %v915
  %2598 = vmatprep.subr.bf16.mxu0 %v920
  %2599 = vmatpush1.bf16.msra.mxu0 %v919
  %2600 = vmatprep.subr.bf16.mxu0 %v924
  %2601 = vmatpush1.bf16.msra.mxu0 %v923
  %2602 = vmatprep.subr.bf16.mxu0 %v928
  %2603 = vmatpush1.bf16.msra.mxu0 %v927
  %2604 = vmatprep.subr.bf16.mxu0 %v932
  %2605 = vmatpush1.bf16.msra.mxu0 %v931
  %2606 = vmatprep.subr.bf16.mxu0 %v936
  %2607 = vmatpush1.bf16.msra.mxu0 %v935
  %2608 = vmatprep.subr.bf16.mxu0 %v940
  %2609 = vmatpush1.bf16.msra.mxu0 %v939
  %2610 = vmatprep.subr.bf16.mxu0 %v944
  %2611 = vmatpush1.bf16.msra.mxu0 %v943
  %2612 = vmatprep.subr.bf16.mxu0 %v948
  %2613 = vmatpush1.bf16.msra.mxu0 %v947
  %2614 = vmatprep.mubr.bf16.mxu0 %v2579
  %2615 = vmatmul.mubr.bf16.gmra.mrb[0].mxu0 %v2578
  %v2616 = vpop.f32.mrb[0].mxu0
  %v2617 = vadd.f32 %v397, %v2616
  %v2618 = vpop.f32.mrb[0].mxu0
  %v2619 = vadd.f32 %v401, %v2618
  %v2620 = vpop.f32.mrb[0].mxu0
  %v2621 = vpop.f32.mrb[0].mxu0
  %2622 = vdwg.mxu0
  %2623 = vmatprep.subr.bf16.mxu0 %v890
  %2624 = vmatpush1.bf16.msra.mxu0 %v889
  %2625 = vmatprep.subr.bf16.mxu0 %v894
  %2626 = vmatpush1.bf16.msra.mxu0 %v893
  %2627 = vmatprep.subr.bf16.mxu0 %v898
  %2628 = vmatpush1.bf16.msra.mxu0 %v897
  %2629 = vmatprep.subr.bf16.mxu0 %v902
  %2630 = vmatpush1.bf16.msra.mxu0 %v901
  %2631 = vmatprep.subr.bf16.mxu0 %v906
  %2632 = vmatpush1.bf16.msra.mxu0 %v905
  %2633 = vmatprep.subr.bf16.mxu0 %v910
  %2634 = vmatpush1.bf16.msra.mxu0 %v909
  %2635 = vmatprep.subr.bf16.mxu0 %v914
  %2636 = vmatpush1.bf16.msra.mxu0 %v913
  %2637 = vmatprep.subr.bf16.mxu0 %v918
  %2638 = vmatpush1.bf16.msra.mxu0 %v917
  %2639 = vmatprep.subr.bf16.mxu0 %v922
  %2640 = vmatpush1.bf16.msra.mxu0 %v921
  %2641 = vmatprep.subr.bf16.mxu0 %v926
  %2642 = vmatpush1.bf16.msra.mxu0 %v925
  %2643 = vmatprep.subr.bf16.mxu0 %v930
  %2644 = vmatpush1.bf16.msra.mxu0 %v929
  %2645 = vmatprep.subr.bf16.mxu0 %v934
  %2646 = vmatpush1.bf16.msra.mxu0 %v933
  %2647 = vmatprep.subr.bf16.mxu0 %v938
  %2648 = vmatpush1.bf16.msra.mxu0 %v937
  %2649 = vmatprep.subr.bf16.mxu0 %v942
  %2650 = vmatpush1.bf16.msra.mxu0 %v941
  %2651 = vmatprep.subr.bf16.mxu0 %v946
  %2652 = vmatpush1.bf16.msra.mxu0 %v945
  %2653 = vmatprep.subr.bf16.mxu0 %v950
  %2654 = vmatpush1.bf16.msra.mxu0 %v949
  %2655 = vmatprep.mubr.bf16.mxu0 %v2579
  %2656 = vmatmul.mubr.bf16.gmra.mrb[0].mxu0 %v2578
  %v2657 = vpop.f32.mrb[0].mxu0
  %v2658 = vadd.f32 %v405, %v2657
  %v2659 = vpop.f32.mrb[0].mxu0
  %v2660 = vadd.f32 %v409, %v2659
  %v2661 = vpop.f32.mrb[0].mxu0
  %v2662 = vpop.f32.mrb[0].mxu0
  %2663 = vdwg.mxu0
  %v2664 = vmul.f32 %v2617, 0.5
  %v2665 = vmul.f32 %v2619, 0.5
  %v2666 = vmul.f32 %v2658, 0.5
  %v2667 = vtanh.pop %v2664
  %v2668 = vtanh.pop %v2665
  %v2669 = vtanh.pop %v2666
  %v2670 = vmul.f32 %v2667, 0.5
  %v2671 = vmul.f32 %v2668, 0.5
  %v2672 = vmul.f32 %v2669, 0.5
  %v2673 = vadd.f32 %v2670, 0.5
  %v2674 = vadd.f32 %v2671, 0.5
  %v2675 = vadd.f32 %v2672, 0.5
  %v2676 = vtanh.pop %v2660
  %v2677 = vmul.f32 %v2674, %v2455
  %v2678 = vmul.f32 %v2673, %v2676
  %v2679 = vadd.f32 %v2677, %v2678
  %v2680 = vtanh.pop %v2679
  %v2681 = vmul.f32 %v2675, %v2680
  %s2682 = scalar_lea.vmem %s6, 56
  %2683 = vst [vmem:[%s2682] sm:$0xff] %v2681
  %v2684 = vpack.c.bf16 %v2681, %v2681
  %2685 = vst [vmem:[#allocation3 + $0x4] sm:$0xf] %v2684
  %2686 = vst [vmem:[#allocation4] sm:$0xff] %v2569
  %2687 = vst [vmem:[#allocation5] sm:$0xff] %v2679
  // Predicated region
  $region30: #{lstm_classifier_forward.1} parent=0 // pred_check
    _
  $region31: #{lstm_classifier_forward.1} parent=0 // pred_check_branch
    %2689 = sbr.rel (0) target = $region33
  $region32: #{lstm_classifier_forward.1} parent=0 // pred_region
    _
  $region33: #{lstm_classifier_forward.1} parent=0 // pred_fallthru
    _
  // Predicated region
  $region34: #{lstm_classifier_forward.1} parent=0 // pred_check
    _
  $region35: #{lstm_classifier_forward.1} parent=0 // pred_check_branch
    %2691 = sbr.rel (0) target = $region37
  $region36: #{lstm_classifier_forward.1} parent=0 // pred_region
    _
  $region37: #{lstm_classifier_forward.1} parent=0 // pred_fallthru
    _

</llo_original>
